<compile_context>
chip_gen: v6e
topology: v6e:2x2x1
jax: 0.10.0
libtpu: 0.0.40
codegen_flags: <defaults>
</compile_context>

<pallas_src>
import jax
import jax.numpy as jnp
from jax.experimental import pallas as pl
from jax.experimental.pallas import tpu as pltpu

BN_EPS = 1e-5


# ---------------------------------------------------------------------------
# Fused kernel: backbone stub + Linear -> BatchNorm1d -> ReLU -> Linear
# ---------------------------------------------------------------------------
def fused_kernel(x_ref, wp_ref, bp_ref, w1_ref, gamma_ref, beta_ref,
                 w2_ref, b2_ref, out_ref, h_scr, sum_scr, sq_scr):
    # x_ref:   (TN, C, H*W)  f32   (lane-dense, H*W multiple of 128)
    # wp_ref:  (C, F)        bf16
    # bp_ref:  (1, F)        f32
    # w1_ref:  (F, 2048)     bf16
    # gamma/beta: (1, 2048)  f32
    # w2_ref:  (2048, 128)   bf16
    # b2_ref:  (1, 128)      f32
    # out_ref: (N, 128)      f32   (resident across the grid, written at last step)
    # h_scr:   (N, 2048)     f32 VMEM scratch (pre-BN hidden activations)
    # sum_scr / sq_scr: (1, 2048) f32 BN statistics accumulators
    i = pl.program_id(0)
    n_tiles = pl.num_programs(0)
    tn = x_ref.shape[0]

    @pl.when(i == 0)
    def _init():
        sum_scr[...] = jnp.zeros_like(sum_scr)
        sq_scr[...] = jnp.zeros_like(sq_scr)

    # ---- backbone stub: global average pool (lane-axis reduce) + projection ----
    pooled = jnp.mean(x_ref[...], axis=-1)                     # (TN, C) f32, XLU
    feat = jnp.dot(pooled.astype(jnp.bfloat16), wp_ref[...],
                   preferred_element_type=jnp.float32) + bp_ref[...]   # (TN, F)

    # ---- head: first Linear (bias b1 dropped -- cancelled by BN mean subtract) ----
    h = jnp.dot(feat.astype(jnp.bfloat16), w1_ref[...],
                preferred_element_type=jnp.float32)            # (TN, 2048) f32, MXU

    row = pl.multiple_of(i * tn, tn)
    h_scr[pl.ds(row, tn), :] = h
    sum_scr[...] += jnp.sum(h, axis=0, keepdims=True)
    sq_scr[...] += jnp.sum(h * h, axis=0, keepdims=True)

    # ---- last tile: full-batch BatchNorm1d + ReLU + second Linear ----
    @pl.when(i == n_tiles - 1)
    def _finalize():
        inv_n = 1.0 / float(h_scr.shape[0])                    # static batch size
        mu = sum_scr[...] * inv_n                              # (1, 2048)
        var = sq_scr[...] * inv_n - mu * mu                    # biased batch var
        scale = jax.lax.rsqrt(var + BN_EPS) * gamma_ref[...]   # EUP rsqrt (f32)
        hn = (h_scr[...] - mu) * scale + beta_ref[...]         # (N, 2048) f32, VPU
        hn = jnp.maximum(hn, 0.0)                              # ReLU
        out_ref[...] = (
            jnp.dot(hn.astype(jnp.bfloat16), w2_ref[...],
                    preferred_element_type=jnp.float32)
            + b2_ref[...]
        ).astype(out_ref.dtype)                                # (N, 128)  MXU


# ---------------------------------------------------------------------------
# Wrapper
# ---------------------------------------------------------------------------
def feature_supcon_forward(x, params, *, n_tile=8):
    n, c, hh, ww = x.shape
    hw = hh * ww
    assert n % n_tile == 0, "batch must be divisible by the N tile"
    assert hw % 128 == 0, "H*W must be a multiple of 128 for lane-dense pooling"

    x3 = x.reshape(n, c, hw)            # lane-dense layout done in the wrapper

    f = params["w_proj"].shape[1]
    hidden = params["w1"].shape[1]
    out_dim = params["w2"].shape[1]

    kernel = pl.pallas_call(
        fused_kernel,
        out_shape=jax.ShapeDtypeStruct((n, out_dim), jnp.float32),
        grid_spec=pltpu.PrefetchScalarGridSpec(
            num_scalar_prefetch=0,
            grid=(n // n_tile,),
            in_specs=[
                pl.BlockSpec((n_tile, c, hw), lambda i: (i, 0, 0)),   # x tiles over N
                pl.BlockSpec((c, f), lambda i: (0, 0)),               # resident weights
                pl.BlockSpec((1, f), lambda i: (0, 0)),
                pl.BlockSpec((f, hidden), lambda i: (0, 0)),
                pl.BlockSpec((1, hidden), lambda i: (0, 0)),
                pl.BlockSpec((1, hidden), lambda i: (0, 0)),
                pl.BlockSpec((hidden, out_dim), lambda i: (0, 0)),
                pl.BlockSpec((1, out_dim), lambda i: (0, 0)),
            ],
            out_specs=pl.BlockSpec((n, out_dim), lambda i: (0, 0)),   # resident output
            scratch_shapes=[
                pltpu.VMEM((n, hidden), jnp.float32),   # h (pre-BN) for the whole batch
                pltpu.VMEM((1, hidden), jnp.float32),   # sum
                pltpu.VMEM((1, hidden), jnp.float32),   # sum of squares
            ],
        ),
        compiler_params=pltpu.CompilerParams(
            # BN stats + final full-batch pass are sequential across N tiles.
            dimension_semantics=("arbitrary",),
            vmem_limit_bytes=48 * 1024 * 1024,
        ),
    )
    return kernel(
        x3,
        params["w_proj"], params["b_proj"],
        params["w1"],
        params["gamma"], params["beta"],
        params["w2"], params["b2"],
    )


# Pure-JAX reference (faithful to the PyTorch module, incl. b1; same bf16 dot
# operand casts so the comparison is apples-to-apples).
def reference_forward(x, params):
    n, c, hh, ww = x.shape
    pooled = jnp.mean(x.reshape(n, c, hh * ww), axis=-1)
    feat = jnp.dot(pooled.astype(jnp.bfloat16), params["w_proj"],
                   preferred_element_type=jnp.float32) + params["b_proj"]
    h = jnp.dot(feat.astype(jnp.bfloat16), params["w1"],
                preferred_element_type=jnp.float32) + params["b1"]
    mu = jnp.mean(h, axis=0, keepdims=True)
    var = jnp.mean((h - mu) ** 2, axis=0, keepdims=True)        # biased (PyTorch BN)
    h = (h - mu) * jax.lax.rsqrt(var + BN_EPS) * params["gamma"] + params["beta"]
    h = jnp.maximum(h, 0.0)
    return jnp.dot(h.astype(jnp.bfloat16), params["w2"],
                   preferred_element_type=jnp.float32) + params["b2"]


# ---------------------------------------------------------------------------
# Parameter init (deterministic, PyTorch-shaped; weights pre-transposed (in,out))
# ---------------------------------------------------------------------------
def init_params(key, c, n_features, hidden=2048, out_dim=128):
    ks = jax.random.split(key, 6)

    def uniform(k, shape, fan_in):
        bound = 1.0 / jnp.sqrt(float(fan_in))
        return jax.random.uniform(k, shape, jnp.float32, -bound, bound)

    return {
        # backbone stub projection: C -> n_features (bf16 matmul operand)
        "w_proj": uniform(ks[0], (c, n_features), c).astype(jnp.bfloat16),
        "b_proj": uniform(ks[1], (1, n_features), c),
        # SupConHead: Linear(n_features, 2048)
        "w1": uniform(ks[2], (n_features, hidden), n_features).astype(jnp.bfloat16),
        "b1": uniform(ks[3], (1, hidden), n_features),  # kept for API / reference;
                                                        # cancelled by batch-stat BN
        # BatchNorm1d(2048): PyTorch init gamma=1, beta=0
        "gamma": jnp.ones((1, hidden), jnp.float32),
        "beta": jnp.zeros((1, hidden), jnp.float32),
        # Linear(2048, 128)
        "w2": uniform(ks[4], (hidden, out_dim), hidden).astype(jnp.bfloat16),
        "b2": uniform(ks[5], (1, out_dim), hidden),
    }


# ---------------------------------------------------------------------------
if __name__ == "__main__":
    key = jax.random.PRNGKey(0)
    k_x, k_p = jax.random.split(key)

    N, C, H, W = 16, 4, 16, 16      # small NCHW input; H*W = 256 (lane-dense)
    N_FEATURES = 128                # backbone feature width, multiple of 128
    x = jax.random.normal(k_x, (N, C, H, W), jnp.float32)
    params = init_params(k_p, C, N_FEATURES)

    out = feature_supcon_forward(x, params, n_tile=8)   # grid of 2 N-tiles
    out = jax.block_until_ready(out)

    ref = reference_forward(x, params)
    assert out.shape == (N, 128), out.shape
    assert jnp.allclose(out, ref, atol=1e-2, rtol=1e-2), "mismatch vs reference"

    print("KERNEL_OK")
</pallas_src>

<mosaic_0001>
module attributes {stable_mosaic.version = 11 : i64} {
  func.func @fused_kernel(%arg0: i32, %arg1: memref<8x4x256xf32, #tpu.memory_space<vmem>>, %arg2: memref<4x128xbf16, #tpu.memory_space<vmem>>, %arg3: memref<1x128xf32, #tpu.memory_space<vmem>>, %arg4: memref<128x2048xbf16, #tpu.memory_space<vmem>>, %arg5: memref<1x2048xf32, #tpu.memory_space<vmem>>, %arg6: memref<1x2048xf32, #tpu.memory_space<vmem>>, %arg7: memref<2048x128xbf16, #tpu.memory_space<vmem>>, %arg8: memref<1x128xf32, #tpu.memory_space<vmem>>, %arg9: memref<16x128xf32, #tpu.memory_space<vmem>>, %arg10: memref<16x2048xf32, #tpu.memory_space<vmem>>, %arg11: memref<1x2048xf32, #tpu.memory_space<vmem>>, %arg12: memref<1x2048xf32, #tpu.memory_space<vmem>>) attributes {dimension_semantics = [#tpu.dimension_semantics<arbitrary>], iteration_bounds = array<i64: 2>, scalar_prefetch = 0 : i64, scratch_operands = 3 : i64, tpu.core_type = #tpu.core_type<tc>, window_params = [{transform_indices = @transform_0, window_bounds = array<i64: 8, 4, 256>}, {pipeline_mode = #tpu.pipeline_mode<synchronous>, transform_indices = @transform_1, window_bounds = array<i64: 4, 128>}, {pipeline_mode = #tpu.pipeline_mode<synchronous>, transform_indices = @transform_2, window_bounds = array<i64: 1, 128>}, {pipeline_mode = #tpu.pipeline_mode<synchronous>, transform_indices = @transform_3, window_bounds = array<i64: 128, 2048>}, {pipeline_mode = #tpu.pipeline_mode<synchronous>, transform_indices = @transform_4, window_bounds = array<i64: 1, 2048>}, {pipeline_mode = #tpu.pipeline_mode<synchronous>, transform_indices = @transform_5, window_bounds = array<i64: 1, 2048>}, {pipeline_mode = #tpu.pipeline_mode<synchronous>, transform_indices = @transform_6, window_bounds = array<i64: 2048, 128>}, {pipeline_mode = #tpu.pipeline_mode<synchronous>, transform_indices = @transform_7, window_bounds = array<i64: 1, 128>}, {pipeline_mode = #tpu.pipeline_mode<synchronous>, transform_indices = @transform_8, window_bounds = array<i64: 16, 128>}]} {
    %c0_i32 = arith.constant 0 : i32
    %0 = arith.cmpi eq, %arg0, %c0_i32 : i32
    %1 = arith.extui %0 : i1 to i32
    %c0_i32_0 = arith.constant 0 : i32
    %2 = arith.cmpi ne, %1, %c0_i32_0 : i32
    scf.if %2 {
      %cst_24 = arith.constant 0.000000e+00 : f32
      %34 = vector.broadcast %cst_24 : f32 to vector<1x2048xf32>
      %c0_25 = arith.constant 0 : index
      %c0_26 = arith.constant 0 : index
      %35 = vector.load %arg11[%c0_25, %c0_26] : memref<1x2048xf32, #tpu.memory_space<vmem>>, vector<1x2048xf32>
      tpu.vector_store %arg11[%c0_25, %c0_26], %34 {strides = array<i32>} : memref<1x2048xf32, #tpu.memory_space<vmem>>, vector<1x2048xf32>,
      %cst_27 = arith.constant 0.000000e+00 : f32
      %36 = vector.broadcast %cst_27 : f32 to vector<1x2048xf32>
      %c0_28 = arith.constant 0 : index
      %c0_29 = arith.constant 0 : index
      %37 = vector.load %arg12[%c0_28, %c0_29] : memref<1x2048xf32, #tpu.memory_space<vmem>>, vector<1x2048xf32>
      tpu.vector_store %arg12[%c0_28, %c0_29], %36 {strides = array<i32>} : memref<1x2048xf32, #tpu.memory_space<vmem>>, vector<1x2048xf32>,
    } else {
    }
    %c0 = arith.constant 0 : index
    %c0_1 = arith.constant 0 : index
    %c0_2 = arith.constant 0 : index
    %3 = vector.load %arg1[%c0, %c0_1, %c0_2] : memref<8x4x256xf32, #tpu.memory_space<vmem>>, vector<8x4x256xf32>
    %cst = arith.constant dense<0.000000e+00> : vector<8x4xf32>
    %4 = vector.multi_reduction <add>, %3, %cst [2] : vector<8x4x256xf32> to vector<8x4xf32>
    %cst_3 = arith.constant 2.560000e+02 : f32
    %5 = vector.broadcast %cst_3 : f32 to vector<8x4xf32>
    %6 = arith.divf %4, %5 : vector<8x4xf32>
    %7 = arith.truncf %6 : vector<8x4xf32> to vector<8x4xbf16>
    %c0_4 = arith.constant 0 : index
    %c0_5 = arith.constant 0 : index
    %8 = vector.load %arg2[%c0_4, %c0_5] : memref<4x128xbf16, #tpu.memory_space<vmem>>, vector<4x128xbf16>
    %cst_6 = arith.constant dense<0.000000e+00> : vector<8x128xf32>
    %9 = tpu.matmul %7, %8, %cst_6 {dimension_numbers = #tpu.dot_dimension_numbers<[1], [0], [0], [1], [0, 0, 1, 1], [], []>} : vector<8x4xbf16>, vector<4x128xbf16>, vector<8x128xf32> -> vector<8x128xf32>
    %c0_7 = arith.constant 0 : index
    %c0_8 = arith.constant 0 : index
    %10 = vector.load %arg3[%c0_7, %c0_8] : memref<1x128xf32, #tpu.memory_space<vmem>>, vector<1x128xf32>
    %11 = vector.broadcast %10 : vector<1x128xf32> to vector<8x128xf32>
    %12 = arith.addf %9, %11 : vector<8x128xf32>
    %13 = arith.truncf %12 : vector<8x128xf32> to vector<8x128xbf16>
    %c0_9 = arith.constant 0 : index
    %c0_10 = arith.constant 0 : index
    %14 = vector.load %arg4[%c0_9, %c0_10] : memref<128x2048xbf16, #tpu.memory_space<vmem>>, vector<128x2048xbf16>
    %cst_11 = arith.constant dense<0.000000e+00> : vector<8x2048xf32>
    %15 = tpu.matmul %13, %14, %cst_11 {dimension_numbers = #tpu.dot_dimension_numbers<[1], [0], [0], [1], [0, 0, 1, 1], [], []>} : vector<8x128xbf16>, vector<128x2048xbf16>, vector<8x2048xf32> -> vector<8x2048xf32>
    %c8_i32 = arith.constant 8 : i32
    %16 = arith.muli %arg0, %c8_i32 : i32
    %17 = tpu.assume_multiple %16, 8 : i32
    %18 = arith.index_cast %17 : i32 to index
    %c0_12 = arith.constant 0 : index
    %19 = vector.load %arg10[%18, %c0_12] : memref<16x2048xf32, #tpu.memory_space<vmem>>, vector<8x2048xf32>
    tpu.vector_store %arg10[%18, %c0_12], %15 {strides = array<i32>} : memref<16x2048xf32, #tpu.memory_space<vmem>>, vector<8x2048xf32>,
    %c0_13 = arith.constant 0 : index
    %c0_14 = arith.constant 0 : index
    %20 = vector.load %arg11[%c0_13, %c0_14] : memref<1x2048xf32, #tpu.memory_space<vmem>>, vector<1x2048xf32>
    %cst_15 = arith.constant dense<0.000000e+00> : vector<2048xf32>
    %21 = vector.multi_reduction <add>, %15, %cst_15 [0] : vector<8x2048xf32> to vector<2048xf32>
    %22 = vector.shape_cast %21 : vector<2048xf32> to vector<1x2048xf32>
    %23 = arith.addf %20, %22 : vector<1x2048xf32>
    %c0_16 = arith.constant 0 : index
    %c0_17 = arith.constant 0 : index
    %24 = vector.load %arg11[%c0_16, %c0_17] : memref<1x2048xf32, #tpu.memory_space<vmem>>, vector<1x2048xf32>
    tpu.vector_store %arg11[%c0_16, %c0_17], %23 {strides = array<i32>} : memref<1x2048xf32, #tpu.memory_space<vmem>>, vector<1x2048xf32>,
    %c0_18 = arith.constant 0 : index
    %c0_19 = arith.constant 0 : index
    %25 = vector.load %arg12[%c0_18, %c0_19] : memref<1x2048xf32, #tpu.memory_space<vmem>>, vector<1x2048xf32>
    %26 = arith.mulf %15, %15 : vector<8x2048xf32>
    %cst_20 = arith.constant dense<0.000000e+00> : vector<2048xf32>
    %27 = vector.multi_reduction <add>, %26, %cst_20 [0] : vector<8x2048xf32> to vector<2048xf32>
    %28 = vector.shape_cast %27 : vector<2048xf32> to vector<1x2048xf32>
    %29 = arith.addf %25, %28 : vector<1x2048xf32>
    %c0_21 = arith.constant 0 : index
    %c0_22 = arith.constant 0 : index
    %30 = vector.load %arg12[%c0_21, %c0_22] : memref<1x2048xf32, #tpu.memory_space<vmem>>, vector<1x2048xf32>
    tpu.vector_store %arg12[%c0_21, %c0_22], %29 {strides = array<i32>} : memref<1x2048xf32, #tpu.memory_space<vmem>>, vector<1x2048xf32>,
    %c1_i32 = arith.constant 1 : i32
    %31 = arith.cmpi eq, %arg0, %c1_i32 : i32
    %32 = arith.extui %31 : i1 to i32
    %c0_i32_23 = arith.constant 0 : i32
    %33 = arith.cmpi ne, %32, %c0_i32_23 : i32
    scf.if %33 {
      %c0_24 = arith.constant 0 : index
      %c0_25 = arith.constant 0 : index
      %34 = vector.load %arg11[%c0_24, %c0_25] : memref<1x2048xf32, #tpu.memory_space<vmem>>, vector<1x2048xf32>
      %cst_26 = arith.constant 6.250000e-02 : f32
      %35 = vector.broadcast %cst_26 : f32 to vector<1x2048xf32>
      %36 = arith.mulf %34, %35 : vector<1x2048xf32>
      %c0_27 = arith.constant 0 : index
      %c0_28 = arith.constant 0 : index
      %37 = vector.load %arg12[%c0_27, %c0_28] : memref<1x2048xf32, #tpu.memory_space<vmem>>, vector<1x2048xf32>
      %cst_29 = arith.constant 6.250000e-02 : f32
      %38 = vector.broadcast %cst_29 : f32 to vector<1x2048xf32>
      %39 = arith.mulf %37, %38 : vector<1x2048xf32>
      %40 = arith.mulf %36, %36 : vector<1x2048xf32>
      %41 = arith.subf %39, %40 : vector<1x2048xf32>
      %cst_30 = arith.constant 9.99999974E-6 : f32
      %42 = vector.broadcast %cst_30 : f32 to vector<1x2048xf32>
      %43 = arith.addf %41, %42 : vector<1x2048xf32>
      %44 = math.rsqrt %43 : vector<1x2048xf32>
      %c0_31 = arith.constant 0 : index
      %c0_32 = arith.constant 0 : index
      %45 = vector.load %arg5[%c0_31, %c0_32] : memref<1x2048xf32, #tpu.memory_space<vmem>>, vector<1x2048xf32>
      %46 = arith.mulf %44, %45 : vector<1x2048xf32>
      %c0_33 = arith.constant 0 : index
      %c0_34 = arith.constant 0 : index
      %47 = vector.load %arg10[%c0_33, %c0_34] : memref<16x2048xf32, #tpu.memory_space<vmem>>, vector<16x2048xf32>
      %48 = vector.broadcast %36 : vector<1x2048xf32> to vector<16x2048xf32>
      %49 = arith.subf %47, %48 : vector<16x2048xf32>
      %50 = vector.broadcast %46 : vector<1x2048xf32> to vector<16x2048xf32>
      %51 = arith.mulf %49, %50 : vector<16x2048xf32>
      %c0_35 = arith.constant 0 : index
      %c0_36 = arith.constant 0 : index
      %52 = vector.load %arg6[%c0_35, %c0_36] : memref<1x2048xf32, #tpu.memory_space<vmem>>, vector<1x2048xf32>
      %53 = vector.broadcast %52 : vector<1x2048xf32> to vector<16x2048xf32>
      %54 = arith.addf %51, %53 : vector<16x2048xf32>
      %cst_37 = arith.constant 0.000000e+00 : f32
      %55 = vector.broadcast %cst_37 : f32 to vector<16x2048xf32>
      %56 = arith.maximumf %54, %55 : vector<16x2048xf32>
      %57 = arith.truncf %56 : vector<16x2048xf32> to vector<16x2048xbf16>
      %c0_38 = arith.constant 0 : index
      %c0_39 = arith.constant 0 : index
      %58 = vector.load %arg7[%c0_38, %c0_39] : memref<2048x128xbf16, #tpu.memory_space<vmem>>, vector<2048x128xbf16>
      %cst_40 = arith.constant dense<0.000000e+00> : vector<16x128xf32>
      %59 = tpu.matmul %57, %58, %cst_40 {dimension_numbers = #tpu.dot_dimension_numbers<[1], [0], [0], [1], [0, 0, 1, 1], [], []>} : vector<16x2048xbf16>, vector<2048x128xbf16>, vector<16x128xf32> -> vector<16x128xf32>
      %c0_41 = arith.constant 0 : index
      %c0_42 = arith.constant 0 : index
      %60 = vector.load %arg8[%c0_41, %c0_42] : memref<1x128xf32, #tpu.memory_space<vmem>>, vector<1x128xf32>
      %61 = vector.broadcast %60 : vector<1x128xf32> to vector<16x128xf32>
      %62 = arith.addf %59, %61 : vector<16x128xf32>
      %c0_43 = arith.constant 0 : index
      %c0_44 = arith.constant 0 : index
      %63 = vector.load %arg9[%c0_43, %c0_44] : memref<16x128xf32, #tpu.memory_space<vmem>>, vector<16x128xf32>
      tpu.vector_store %arg9[%c0_43, %c0_44], %62 {strides = array<i32>} : memref<16x128xf32, #tpu.memory_space<vmem>>, vector<16x128xf32>,
    } else {
    }
    return
  }
  func.func @transform_0(%arg0: i32) -> (i32, i32, i32) {
    %c0_i32 = arith.constant 0 : i32
    %c0_i32_0 = arith.constant 0 : i32
    %c0_i32_1 = arith.constant 0 : i32
    return %arg0, %c0_i32, %c0_i32_0 : i32, i32, i32
  }
  func.func @transform_1(%arg0: i32) -> (i32, i32) {
    %c0_i32 = arith.constant 0 : i32
    %c0_i32_0 = arith.constant 0 : i32
    %c0_i32_1 = arith.constant 0 : i32
    return %c0_i32, %c0_i32_0 : i32, i32
  }
  func.func @transform_2(%arg0: i32) -> (i32, i32) {
    %c0_i32 = arith.constant 0 : i32
    %c0_i32_0 = arith.constant 0 : i32
    %c0_i32_1 = arith.constant 0 : i32
    return %c0_i32, %c0_i32_0 : i32, i32
  }
  func.func @transform_3(%arg0: i32) -> (i32, i32) {
    %c0_i32 = arith.constant 0 : i32
    %c0_i32_0 = arith.constant 0 : i32
    %c0_i32_1 = arith.constant 0 : i32
    return %c0_i32, %c0_i32_0 : i32, i32
  }
  func.func @transform_4(%arg0: i32) -> (i32, i32) {
    %c0_i32 = arith.constant 0 : i32
    %c0_i32_0 = arith.constant 0 : i32
    %c0_i32_1 = arith.constant 0 : i32
    return %c0_i32, %c0_i32_0 : i32, i32
  }
  func.func @transform_5(%arg0: i32) -> (i32, i32) {
    %c0_i32 = arith.constant 0 : i32
    %c0_i32_0 = arith.constant 0 : i32
    %c0_i32_1 = arith.constant 0 : i32
    return %c0_i32, %c0_i32_0 : i32, i32
  }
  func.func @transform_6(%arg0: i32) -> (i32, i32) {
    %c0_i32 = arith.constant 0 : i32
    %c0_i32_0 = arith.constant 0 : i32
    %c0_i32_1 = arith.constant 0 : i32
    return %c0_i32, %c0_i32_0 : i32, i32
  }
  func.func @transform_7(%arg0: i32) -> (i32, i32) {
    %c0_i32 = arith.constant 0 : i32
    %c0_i32_0 = arith.constant 0 : i32
    %c0_i32_1 = arith.constant 0 : i32
    return %c0_i32, %c0_i32_0 : i32, i32
  }
  func.func @transform_8(%arg0: i32) -> (i32, i32) {
    %c0_i32 = arith.constant 0 : i32
    %c0_i32_0 = arith.constant 0 : i32
    %c0_i32_1 = arith.constant 0 : i32
    return %c0_i32, %c0_i32_0 : i32, i32
  }
}

</mosaic_0001>

<llo_original>
// kernel: tpu_custom_call.1
$region0: #{tpu_custom_call.1}
  #allocation0 [shape = 'u32[]', space=smem, size = 0x4, offset = 0x4, fixed_abs, tag = 'smem constant byte address 0x4 - core index']
  #allocation1 [shape = 'u32[144,128]{1,0:T(1,128)}', space=vmem, size = 0x12000, scoped, tag = 'internal scratch']
  #allocation2 [shape = 'f32[16,2048]{1,0:T(8,128)}', space=vmem, size = 0x20000, scoped, tag = 'scratch operand']
  #allocation3 [shape = 'f32[1,2048]{1,0:T(1,128)}', space=vmem, size = 0x2000, scoped, tag = 'scratch operand']
  #allocation4 [shape = 'f32[1,2048]{1,0:T(1,128)}', space=vmem, size = 0x2000, scoped, tag = 'scratch operand']
  %s0 = inlined_call_operand.hbm [shape: f32[16,4,256], index: 0, kind: input, shape index: {}]
  %s1 = inlined_call_operand.hbm [shape: bf16[4,128], index: 1, kind: input, shape index: {}]
  %s2 = inlined_call_operand.vmem [shape: f32[1,128], index: 2, kind: input, shape index: {}]
  %s3 = inlined_call_operand.hbm [shape: bf16[128,2048], index: 3, kind: input, shape index: {}]
  %s4 = inlined_call_operand.hbm [shape: f32[1,2048], index: 4, kind: input, shape index: {}]
  %s5 = inlined_call_operand.hbm [shape: f32[1,2048], index: 5, kind: input, shape index: {}]
  %s6 = inlined_call_operand.hbm [shape: bf16[2048,128], index: 6, kind: input, shape index: {}]
  %s7 = inlined_call_operand.vmem [shape: f32[1,128], index: 7, kind: input, shape index: {}]
  %s8 = inlined_call_operand.hbm [shape: f32[16,128], index: 8, kind: output, shape index: {}]
  %s9 = sld [smem:[#allocation0]]
  $region97: #{tpu_custom_call.1} parent=0
    _
  %s11 = ssub.s32 1, %s9
  %s12 = scalar_select 0, %s11, %s9
  $region1: #{tpu_custom_call.1} parent=0
    #allocation5 [shape = 'u8[65536]{0}', space=vmem, size = 0x10000, scoped, tag = 'input window, operand 0']
    #allocation6 [shape = 's32[2]{0}', space=sflag, size = 0x8, scoped, tag = 'scoped memory for tpu_custom_call.1']
    #allocation7 [shape = 's32[2]{0}', space=sflag, size = 0x8, scoped, tag = 'scoped memory for tpu_custom_call.1']
    #allocation8 [shape = 'u8[1024]{0}', space=vmem, size = 0x400, scoped, tag = 'input window, operand 1, single buffered']
    #allocation9 [shape = 's32[1]{0}', space=sflag, size = 0x4, scoped, tag = 'scoped memory for tpu_custom_call.1']
    #allocation10 [shape = 'u8[524288]{0}', space=vmem, size = 0x80000, scoped, tag = 'input window, operand 3, single buffered']
    #allocation11 [shape = 'u8[8192]{0}', space=vmem, size = 0x2000, scoped, tag = 'input window, operand 4, single buffered']
    #allocation12 [shape = 's32[1]{0}', space=sflag, size = 0x4, scoped, tag = 'scoped memory for tpu_custom_call.1']
    #allocation13 [shape = 'u8[8192]{0}', space=vmem, size = 0x2000, scoped, tag = 'input window, operand 5, single buffered']
    #allocation14 [shape = 'u8[524288]{0}', space=vmem, size = 0x80000, scoped, tag = 'input window, operand 6, single buffered']
    #allocation15 [shape = 's32[1]{0}', space=sflag, size = 0x4, scoped, tag = 'scoped memory for tpu_custom_call.1']
    #allocation16 [shape = 'u8[8192]{0}', space=vmem, size = 0x2000, scoped, tag = 'output window, operand 0, single buffered']
    %13 = vsyncpa [#allocation6], 0
    %s14 = scalar_lea.sflag [#allocation6], 1
    %15 = vsyncpa %s14, 0
    %16 = vsyncpa [#allocation9], 0
    %17 = vsyncpa [#allocation12], 0
    %18 = vsyncpa [#allocation15], 0
    %19 = vsyncpa [#allocation7], 0
    loop: start=0, step=1, limit=4
    $region2: #{tpu_custom_call.1} parent=1 // loop_pre_header
      _
    $region3: #{tpu_custom_call.1} parent=1 // loop_header
      %s21 = sphi 0, %s25
      %p22 = scmp.ge.s32.totalorder %s21, 4
      %s31 = sphi 0, %s33
      %s34 = sphi 0, %s31
      %s35 = sphi 0, %s34
      %s51 = sphi 0, %s35
      %s55 = sphi 0, %s55
      %s57 = sphi 0, %s55
      %s58 = sphi 0, %s57
      %s72 = sphi 0, %s58
      %s76 = sphi 0, %s76
      %s78 = sphi 0, %s76
      %s79 = sphi 0, %s78
      %s93 = sphi 0, %s79
      %s97 = sphi 0, %s97
      %s99 = sphi 0, %s97
      %s100 = sphi 0, %s99
      %s114 = sphi 0, %s100
      %s118 = sphi 0, %s118
      %s120 = sphi 0, %s118
      %s121 = sphi 0, %s120
      %s135 = sphi 0, %s121
      %s139 = sphi 0, %s139
      %s141 = sphi 0, %s139
      %s142 = sphi 0, %s141
      %s156 = sphi 0, %s142
      %s160 = sphi 0, %s160
      %s162 = sphi 0, %s160
      %s163 = sphi 0, %s162
      %s177 = sphi 0, %s163
      %s181 = sphi 0, %s181
      %s183 = sphi 0, %s181
      %s184 = sphi 0, %s183
      %s198 = sphi 0, %s184
      %s202 = sphi 0, %s202
      %s204 = sphi 0, %s202
      %s205 = sphi 0, %s204
      %s219 = sphi 0, %s205
    $region4: #{tpu_custom_call.1} parent=1 // loop_header_branch
      %24 = sbr.rel (%p22) target = $region8
    $region5: #{tpu_custom_call.1} parent=1 // loop_body
      %s26 = ssub.s32 %s21, 1
      %s27 = ssub.s32 %s21, 2
      %s28 = sadd.s32 %s21, 1
      %s29 = ssub.s32 %s21, %s28
      %p30 = scmp.eq.s32.totalorder %s29, 0
      %s32 = sadd.s32 %s31, 1
      %s33 = scalar_select %p30, %s31, %s32
      %p36 = pneg %p30
      %p37 = scmp.eq.s32.totalorder %s21, 1
      %p38 = por %p36, %p37
      %p39 = scmp.ne.s32.totalorder %s31, %s34
      %p40 = scmp.eq.s32.totalorder %s21, 0
      %p41 = por %p39, %p40
      %p42 = scmp.ne.s32.totalorder %s31, %s34
      %p43 = scmp.eq.s32.totalorder %s26, 1
      %p44 = por %p42, %p43
      %p45 = scmp.ne.s32.totalorder %s34, %s35
      %p46 = scmp.eq.s32.totalorder %s26, 0
      %p47 = por %p45, %p46
      %p48 = scmp.ne.s32.totalorder %s34, %s35
      %p49 = scmp.eq.s32.totalorder %s27, 1
      %p50 = por %p48, %p49
      %p52 = scmp.ne.s32.totalorder %s35, %s51
      %p53 = scmp.eq.s32.totalorder %s27, 0
      %p54 = por %p52, %p53
      %s56 = sadd.s32 %s55, 1
      %p59 = scmp.eq.s32.totalorder %s21, 1
      %p60 = scmp.ne.s32.totalorder %s55, %s57
      %p61 = scmp.eq.s32.totalorder %s21, 0
      %p62 = por %p60, %p61
      %p63 = scmp.ne.s32.totalorder %s55, %s57
      %p64 = scmp.eq.s32.totalorder %s26, 1
      %p65 = por %p63, %p64
      %p66 = scmp.ne.s32.totalorder %s57, %s58
      %p67 = scmp.eq.s32.totalorder %s26, 0
      %p68 = por %p66, %p67
      %p69 = scmp.ne.s32.totalorder %s57, %s58
      %p70 = scmp.eq.s32.totalorder %s27, 1
      %p71 = por %p69, %p70
      %p73 = scmp.ne.s32.totalorder %s58, %s72
      %p74 = scmp.eq.s32.totalorder %s27, 0
      %p75 = por %p73, %p74
      %s77 = sadd.s32 %s76, 1
      %p80 = scmp.eq.s32.totalorder %s21, 1
      %p81 = scmp.ne.s32.totalorder %s76, %s78
      %p82 = scmp.eq.s32.totalorder %s21, 0
      %p83 = por %p81, %p82
      %p84 = scmp.ne.s32.totalorder %s76, %s78
      %p85 = scmp.eq.s32.totalorder %s26, 1
      %p86 = por %p84, %p85
      %p87 = scmp.ne.s32.totalorder %s78, %s79
      %p88 = scmp.eq.s32.totalorder %s26, 0
      %p89 = por %p87, %p88
      %p90 = scmp.ne.s32.totalorder %s78, %s79
      %p91 = scmp.eq.s32.totalorder %s27, 1
      %p92 = por %p90, %p91
      %p94 = scmp.ne.s32.totalorder %s79, %s93
      %p95 = scmp.eq.s32.totalorder %s27, 0
      %p96 = por %p94, %p95
      %s98 = sadd.s32 %s97, 1
      %p101 = scmp.eq.s32.totalorder %s21, 1
      %p102 = scmp.ne.s32.totalorder %s97, %s99
      %p103 = scmp.eq.s32.totalorder %s21, 0
      %p104 = por %p102, %p103
      %p105 = scmp.ne.s32.totalorder %s97, %s99
      %p106 = scmp.eq.s32.totalorder %s26, 1
      %p107 = por %p105, %p106
      %p108 = scmp.ne.s32.totalorder %s99, %s100
      %p109 = scmp.eq.s32.totalorder %s26, 0
      %p110 = por %p108, %p109
      %p111 = scmp.ne.s32.totalorder %s99, %s100
      %p112 = scmp.eq.s32.totalorder %s27, 1
      %p113 = por %p111, %p112
      %p115 = scmp.ne.s32.totalorder %s100, %s114
      %p116 = scmp.eq.s32.totalorder %s27, 0
      %p117 = por %p115, %p116
      %s119 = sadd.s32 %s118, 1
      %p122 = scmp.eq.s32.totalorder %s21, 1
      %p123 = scmp.ne.s32.totalorder %s118, %s120
      %p124 = scmp.eq.s32.totalorder %s21, 0
      %p125 = por %p123, %p124
      %p126 = scmp.ne.s32.totalorder %s118, %s120
      %p127 = scmp.eq.s32.totalorder %s26, 1
      %p128 = por %p126, %p127
      %p129 = scmp.ne.s32.totalorder %s120, %s121
      %p130 = scmp.eq.s32.totalorder %s26, 0
      %p131 = por %p129, %p130
      %p132 = scmp.ne.s32.totalorder %s120, %s121
      %p133 = scmp.eq.s32.totalorder %s27, 1
      %p134 = por %p132, %p133
      %p136 = scmp.ne.s32.totalorder %s121, %s135
      %p137 = scmp.eq.s32.totalorder %s27, 0
      %p138 = por %p136, %p137
      %s140 = sadd.s32 %s139, 1
      %p143 = scmp.eq.s32.totalorder %s21, 1
      %p144 = scmp.ne.s32.totalorder %s139, %s141
      %p145 = scmp.eq.s32.totalorder %s21, 0
      %p146 = por %p144, %p145
      %p147 = scmp.ne.s32.totalorder %s139, %s141
      %p148 = scmp.eq.s32.totalorder %s26, 1
      %p149 = por %p147, %p148
      %p150 = scmp.ne.s32.totalorder %s141, %s142
      %p151 = scmp.eq.s32.totalorder %s26, 0
      %p152 = por %p150, %p151
      %p153 = scmp.ne.s32.totalorder %s141, %s142
      %p154 = scmp.eq.s32.totalorder %s27, 1
      %p155 = por %p153, %p154
      %p157 = scmp.ne.s32.totalorder %s142, %s156
      %p158 = scmp.eq.s32.totalorder %s27, 0
      %p159 = por %p157, %p158
      %s161 = sadd.s32 %s160, 1
      %p164 = scmp.eq.s32.totalorder %s21, 1
      %p165 = scmp.ne.s32.totalorder %s160, %s162
      %p166 = scmp.eq.s32.totalorder %s21, 0
      %p167 = por %p165, %p166
      %p168 = scmp.ne.s32.totalorder %s160, %s162
      %p169 = scmp.eq.s32.totalorder %s26, 1
      %p170 = por %p168, %p169
      %p171 = scmp.ne.s32.totalorder %s162, %s163
      %p172 = scmp.eq.s32.totalorder %s26, 0
      %p173 = por %p171, %p172
      %p174 = scmp.ne.s32.totalorder %s162, %s163
      %p175 = scmp.eq.s32.totalorder %s27, 1
      %p176 = por %p174, %p175
      %p178 = scmp.ne.s32.totalorder %s163, %s177
      %p179 = scmp.eq.s32.totalorder %s27, 0
      %p180 = por %p178, %p179
      %s182 = sadd.s32 %s181, 1
      %p185 = scmp.eq.s32.totalorder %s21, 1
      %p186 = scmp.ne.s32.totalorder %s181, %s183
      %p187 = scmp.eq.s32.totalorder %s21, 0
      %p188 = por %p186, %p187
      %p189 = scmp.ne.s32.totalorder %s181, %s183
      %p190 = scmp.eq.s32.totalorder %s26, 1
      %p191 = por %p189, %p190
      %p192 = scmp.ne.s32.totalorder %s183, %s184
      %p193 = scmp.eq.s32.totalorder %s26, 0
      %p194 = por %p192, %p193
      %p195 = scmp.ne.s32.totalorder %s183, %s184
      %p196 = scmp.eq.s32.totalorder %s27, 1
      %p197 = por %p195, %p196
      %p199 = scmp.ne.s32.totalorder %s184, %s198
      %p200 = scmp.eq.s32.totalorder %s27, 0
      %p201 = por %p199, %p200
      %s203 = sadd.s32 %s202, 1
      %p206 = scmp.eq.s32.totalorder %s21, 1
      %p207 = scmp.ne.s32.totalorder %s202, %s204
      %p208 = scmp.eq.s32.totalorder %s21, 0
      %p209 = por %p207, %p208
      %p210 = scmp.ne.s32.totalorder %s202, %s204
      %p211 = scmp.eq.s32.totalorder %s26, 1
      %p212 = por %p210, %p211
      %p213 = scmp.ne.s32.totalorder %s204, %s205
      %p214 = scmp.eq.s32.totalorder %s26, 0
      %p215 = por %p213, %p214
      %p216 = scmp.ne.s32.totalorder %s204, %s205
      %p217 = scmp.eq.s32.totalorder %s27, 1
      %p218 = por %p216, %p217
      %p220 = scmp.ne.s32.totalorder %s205, %s219
      %p221 = scmp.eq.s32.totalorder %s27, 0
      %p222 = por %p220, %p221
      %p223 = scmp.le.s32.totalorder 1, %s21
      %p224 = scmp.lt.s32.totalorder %s21, 3
      %p225 = pnand %p223, %p224
      %p226 = pneg %p225
      // Predicated region
      $region9: #{tpu_custom_call.1} parent=5 // pred_check
        _
      $region10: #{tpu_custom_call.1} parent=5 // pred_check_branch
        %228 = sbr.rel (%p225) target = $region12
      $region11: #{tpu_custom_call.1} parent=5 // pred_region
        %s229 = ssub.s32 %s21, 1
        // Predicated region
        $region13: #{tpu_custom_call.1} parent=11 // pred_check
          %p230 = pneg %p68
        $region14: #{tpu_custom_call.1} parent=11 // pred_check_branch
          %232 = sbr.rel (%p230) target = $region16
        $region15: #{tpu_custom_call.1} parent=11 // pred_region
          %s234 = ssub.s32 32, 32
          %235 = vsyncadd [#allocation9], %s234
          %s237 = sshll.u32 [#allocation8], 4
          %s238 = int_to_ptr.vmem [resolvable:$true] %s237
          %240 = dma.hbm_to_vmem [thread:$0]  %s1, 32, %s238, [#allocation9]
        $region16: #{tpu_custom_call.1} parent=11 // pred_fallthru
          _
        // Predicated region
        $region17: #{tpu_custom_call.1} parent=11 // pred_check
          %p241 = pneg %p89
        $region18: #{tpu_custom_call.1} parent=11 // pred_check_branch
          %243 = sbr.rel (%p241) target = $region20
        $region19: #{tpu_custom_call.1} parent=11 // pred_region
          _
        $region20: #{tpu_custom_call.1} parent=11 // pred_fallthru
          _
        // Predicated region
        $region21: #{tpu_custom_call.1} parent=11 // pred_check
          %p244 = pneg %p110
        $region22: #{tpu_custom_call.1} parent=11 // pred_check_branch
          %246 = sbr.rel (%p244) target = $region24
        $region23: #{tpu_custom_call.1} parent=11 // pred_region
          %s248 = ssub.s32 16384, 16384
          %249 = vsyncadd [#allocation9], %s248
          %s250 = sshll.u32 [#allocation10], 4
          %s251 = int_to_ptr.vmem [resolvable:$true] %s250
          %256 = dma.hbm_to_vmem [thread:$0]  %s3, 16384, %s251, [#allocation9], 1024, 1024, 64
        $region24: #{tpu_custom_call.1} parent=11 // pred_fallthru
          _
        // Predicated region
        $region25: #{tpu_custom_call.1} parent=11 // pred_check
          %p257 = pneg %p131
        $region26: #{tpu_custom_call.1} parent=11 // pred_check_branch
          %259 = sbr.rel (%p257) target = $region28
        $region27: #{tpu_custom_call.1} parent=11 // pred_region
          %s261 = ssub.s32 256, 256
          %262 = vsyncadd [#allocation12], %s261
          %s264 = sshll.u32 [#allocation11], 4
          %s265 = int_to_ptr.vmem [resolvable:$true] %s264
          %267 = dma.hbm_to_vmem [thread:$0]  %s4, 256, %s265, [#allocation12]
        $region28: #{tpu_custom_call.1} parent=11 // pred_fallthru
          _
        // Predicated region
        $region29: #{tpu_custom_call.1} parent=11 // pred_check
          %p268 = pneg %p152
        $region30: #{tpu_custom_call.1} parent=11 // pred_check_branch
          %270 = sbr.rel (%p268) target = $region32
        $region31: #{tpu_custom_call.1} parent=11 // pred_region
          %s272 = ssub.s32 256, 256
          %273 = vsyncadd [#allocation12], %s272
          %s275 = sshll.u32 [#allocation13], 4
          %s276 = int_to_ptr.vmem [resolvable:$true] %s275
          %278 = dma.hbm_to_vmem [thread:$0]  %s5, 256, %s276, [#allocation12]
        $region32: #{tpu_custom_call.1} parent=11 // pred_fallthru
          _
        // Predicated region
        $region33: #{tpu_custom_call.1} parent=11 // pred_check
          %p279 = pneg %p173
        $region34: #{tpu_custom_call.1} parent=11 // pred_check_branch
          %281 = sbr.rel (%p279) target = $region36
        $region35: #{tpu_custom_call.1} parent=11 // pred_region
          %s283 = ssub.s32 16384, 16384
          %284 = vsyncadd [#allocation15], %s283
          %s285 = sshll.u32 [#allocation14], 4
          %s286 = int_to_ptr.vmem [resolvable:$true] %s285
          %291 = dma.hbm_to_vmem [thread:$0]  %s6, 16384, %s286, [#allocation15], 64, 64, 4
        $region36: #{tpu_custom_call.1} parent=11 // pred_fallthru
          _
        // Predicated region
        $region37: #{tpu_custom_call.1} parent=11 // pred_check
          %p292 = pneg %p194
        $region38: #{tpu_custom_call.1} parent=11 // pred_check_branch
          %294 = sbr.rel (%p292) target = $region40
        $region39: #{tpu_custom_call.1} parent=11 // pred_region
          _
        $region40: #{tpu_custom_call.1} parent=11 // pred_fallthru
          _
      $region12: #{tpu_custom_call.1} parent=5 // pred_fallthru
        _
      %p295 = scmp.lt.s32.totalorder %s21, 2
      // Predicated region
      $region41: #{tpu_custom_call.1} parent=5 // pred_check
        %p296 = pneg %p295
      $region42: #{tpu_custom_call.1} parent=5 // pred_check_branch
        %298 = sbr.rel (%p296) target = $region44
      $region43: #{tpu_custom_call.1} parent=5 // pred_region
        // Predicated region
        $region45: #{tpu_custom_call.1} parent=43 // pred_check
          %p299 = pneg %p41
        $region46: #{tpu_custom_call.1} parent=43 // pred_check_branch
          %301 = sbr.rel (%p299) target = $region48
        $region47: #{tpu_custom_call.1} parent=43 // pred_region
          %s302 = sand.u32 %s31, 1
          %s303 = scalar_lea.sflag [#allocation6], %s302
          %s304 = sand.u32 %s31, 1
          %s305 = smul.addr %s304, 64
          %s306 = scalar_lea.vmem [#allocation5], %s305
          %s307 = smul.u32 8, %s21
          %s309 = ssub.s32 1024, 1024
          %310 = vsyncadd %s303, %s309
          %s311 = smul.addr %s307, 2
          %s312 = smul.addr %s311, 64
          %s313 = scalar_lea.hbm %s0, %s312
          %s314 = sshll.u32 %s306, 4
          %s315 = int_to_ptr.vmem [resolvable:$true] %s314
          %320 = dma.hbm_to_vmem [thread:$0]  %s313, 1024, %s315, %s303, 128, 128, 8
        $region48: #{tpu_custom_call.1} parent=43 // pred_fallthru
          _
      $region44: #{tpu_custom_call.1} parent=5 // pred_fallthru
        _
      %p321 = scmp.le.s32.totalorder 1, %s21
      %p322 = scmp.lt.s32.totalorder %s21, 3
      %p323 = pnand %p321, %p322
      %p324 = pneg %p323
      // Predicated region
      $region49: #{tpu_custom_call.1} parent=5 // pred_check
        _
      $region50: #{tpu_custom_call.1} parent=5 // pred_check_branch
        %326 = sbr.rel (%p323) target = $region52
      $region51: #{tpu_custom_call.1} parent=5 // pred_region
        %s327 = ssub.s32 %s21, 1
        %s328 = sand.u32 %s34, 1
        %s329 = scalar_lea.sflag [#allocation6], %s328
        %s330 = sand.u32 %s34, 1
        %s331 = smul.addr %s330, 64
        %s332 = scalar_lea.vmem [#allocation5], %s331
        // Predicated region
        $region53: #{tpu_custom_call.1} parent=51 // pred_check
          %p333 = pneg %p47
        $region54: #{tpu_custom_call.1} parent=51 // pred_check_branch
          %335 = sbr.rel (%p333) target = $region56
        $region55: #{tpu_custom_call.1} parent=51 // pred_region
          %336 = dma.done %s329, 1024
        $region56: #{tpu_custom_call.1} parent=51 // pred_fallthru
          _
        // Predicated region
        $region57: #{tpu_custom_call.1} parent=51 // pred_check
          %p337 = pneg %p68
        $region58: #{tpu_custom_call.1} parent=51 // pred_check_branch
          %339 = sbr.rel (%p337) target = $region60
        $region59: #{tpu_custom_call.1} parent=51 // pred_region
          %340 = dma.done [#allocation9], 32
        $region60: #{tpu_custom_call.1} parent=51 // pred_fallthru
          _
        // Predicated region
        $region61: #{tpu_custom_call.1} parent=51 // pred_check
          %p341 = pneg %p110
        $region62: #{tpu_custom_call.1} parent=51 // pred_check_branch
          %343 = sbr.rel (%p341) target = $region64
        $region63: #{tpu_custom_call.1} parent=51 // pred_region
          %344 = dma.done [#allocation9], 16384
        $region64: #{tpu_custom_call.1} parent=51 // pred_fallthru
          _
        // Predicated region
        $region65: #{tpu_custom_call.1} parent=51 // pred_check
          %p345 = pneg %p131
        $region66: #{tpu_custom_call.1} parent=51 // pred_check_branch
          %347 = sbr.rel (%p345) target = $region68
        $region67: #{tpu_custom_call.1} parent=51 // pred_region
          %348 = dma.done [#allocation12], 256
        $region68: #{tpu_custom_call.1} parent=51 // pred_fallthru
          _
        // Predicated region
        $region69: #{tpu_custom_call.1} parent=51 // pred_check
          %p349 = pneg %p152
        $region70: #{tpu_custom_call.1} parent=51 // pred_check_branch
          %351 = sbr.rel (%p349) target = $region72
        $region71: #{tpu_custom_call.1} parent=51 // pred_region
          %352 = dma.done [#allocation12], 256
        $region72: #{tpu_custom_call.1} parent=51 // pred_fallthru
          _
        // Predicated region
        $region73: #{tpu_custom_call.1} parent=51 // pred_check
          %p353 = pneg %p173
        $region74: #{tpu_custom_call.1} parent=51 // pred_check_branch
          %355 = sbr.rel (%p353) target = $region76
        $region75: #{tpu_custom_call.1} parent=51 // pred_region
          %356 = dma.done [#allocation15], 16384
        $region76: #{tpu_custom_call.1} parent=51 // pred_fallthru
          _
        %s357 = sand.u32 %s34, 1
        %s358 = scalar_lea.sflag [#allocation6], %s357
        %s359 = sand.u32 %s34, 1
        %s360 = smul.addr %s359, 64
        %s361 = scalar_lea.vmem [#allocation5], %s360
        %p362 = pneg %p47
        %p363 = pneg %p44
        %p364 = pneg %p68
        %p365 = pneg %p65
        %p366 = pneg %p89
        %p367 = pneg %p86
        %p368 = pneg %p110
        %p369 = pneg %p107
        %p370 = pneg %p131
        %p371 = pneg %p128
        %p372 = pneg %p152
        %p373 = pneg %p149
        %p374 = pneg %p173
        %p375 = pneg %p170
        %p376 = pneg %p194
        %p377 = pneg %p191
        %p378 = pneg %p215
        %p379 = pneg %p212
        %s380 = smul.u32 8, %s26
        %p382 = scmp.eq.s32.totalorder %s26, 0
        // Predicated region
        $region77: #{tpu_custom_call.1} parent=51 // pred_check
          %p383 = pneg %p382
        $region78: #{tpu_custom_call.1} parent=51 // pred_check_branch
          %385 = sbr.rel (%p383) target = $region80
        $region79: #{tpu_custom_call.1} parent=51 // pred_region
          %386 = vst [vmem:[#allocation3] sm:$0xff] 0.0
          %387 = vst [vmem:[#allocation3 + $0x8] sm:$0xff] 0.0
          %388 = vst [vmem:[#allocation4] sm:$0xff] 0.0
          %389 = vst [vmem:[#allocation4 + $0x8] sm:$0xff] 0.0
        $region80: #{tpu_custom_call.1} parent=51 // pred_fallthru
          _
        %v390 = vld [vmem:[%s332] sm:$0xff]
        %v391 = vld [vmem:[%s332 + $0x8] sm:$0xff]
        %v392 = vld [vmem:[%s332 + $0x10] sm:$0xff]
        %v393 = vld [vmem:[%s332 + $0x18] sm:$0xff]
        %v394 = vld [vmem:[%s332 + $0x20] sm:$0xff]
        %v395 = vld [vmem:[%s332 + $0x28] sm:$0xff]
        %v396 = vld [vmem:[%s332 + $0x30] sm:$0xff]
        %v397 = vld [vmem:[%s332 + $0x38] sm:$0xff]
        %v406 = vcombine.high %v390, %v390
        %v407 = vcombine.high %v391, %v391
        %v408 = vcombine.high %v392, %v392
        %v409 = vcombine.high %v393, %v393
        %v410 = vcombine.high %v394, %v394
        %v411 = vcombine.high %v395, %v395
        %v412 = vcombine.high %v396, %v396
        %v413 = vcombine.high %v397, %v397
        %vm422 = vcmask 1043456
        %v423 = vsel %vm422, %v390, 0.0
        %v424 = vsel %vm422, %v406, 0.0
        %v425 = vadd.f32 %v423, %v424
        %426 = vadd.xlane.f32.xlu0 %v425
        %v427 = vpop.xlane.xlu0 %426
        %v428 = vsel %vm422, %v391, 0.0
        %v429 = vsel %vm422, %v407, 0.0
        %v430 = vadd.f32 %v428, %v429
        %431 = vadd.xlane.f32.xlu0 %v430
        %v432 = vpop.xlane.xlu0 %431
        %v433 = vsel %vm422, %v392, 0.0
        %v434 = vsel %vm422, %v408, 0.0
        %v435 = vadd.f32 %v433, %v434
        %436 = vadd.xlane.f32.xlu0 %v435
        %v437 = vpop.xlane.xlu0 %436
        %v438 = vsel %vm422, %v393, 0.0
        %v439 = vsel %vm422, %v409, 0.0
        %v440 = vadd.f32 %v438, %v439
        %441 = vadd.xlane.f32.xlu0 %v440
        %v442 = vpop.xlane.xlu0 %441
        %v443 = vsel %vm422, %v394, 0.0
        %v444 = vsel %vm422, %v410, 0.0
        %v445 = vadd.f32 %v443, %v444
        %446 = vadd.xlane.f32.xlu0 %v445
        %v447 = vpop.xlane.xlu0 %446
        %v448 = vsel %vm422, %v395, 0.0
        %v449 = vsel %vm422, %v411, 0.0
        %v450 = vadd.f32 %v448, %v449
        %451 = vadd.xlane.f32.xlu0 %v450
        %v452 = vpop.xlane.xlu0 %451
        %v453 = vsel %vm422, %v396, 0.0
        %v454 = vsel %vm422, %v412, 0.0
        %v455 = vadd.f32 %v453, %v454
        %456 = vadd.xlane.f32.xlu0 %v455
        %v457 = vpop.xlane.xlu0 %456
        %v458 = vsel %vm422, %v397, 0.0
        %v459 = vsel %vm422, %v413, 0.0
        %v460 = vadd.f32 %v458, %v459
        %461 = vadd.xlane.f32.xlu0 %v460
        %v462 = vpop.xlane.xlu0 %461
        %v463 = vrcp.pop 256.0
        %v464 = vmul.f32 %v427, %v463
        %v465 = vmul.f32 %v432, %v463
        %v466 = vmul.f32 %v437, %v463
        %v467 = vmul.f32 %v442, %v463
        %v468 = vmul.f32 %v447, %v463
        %v469 = vmul.f32 %v452, %v463
        %v470 = vmul.f32 %v457, %v463
        %v471 = vmul.f32 %v462, %v463
        %v472 = vpack.c.bf16 %v464, %v464
        %v473 = vpack.c.bf16 %v465, %v465
        %v474 = vpack.c.bf16 %v466, %v466
        %v475 = vpack.c.bf16 %v467, %v467
        %v476 = vpack.c.bf16 %v468, %v468
        %v477 = vpack.c.bf16 %v469, %v469
        %v478 = vpack.c.bf16 %v470, %v470
        %v479 = vpack.c.bf16 %v471, %v471
        %v480 = vld [vmem:[#allocation8] sm:$0x3]
        %v481 = vld [vmem:[%s2] sm:$0x1]
        %v483 = vlaneseq
        %v484 = vshrl.u32 %v483, 7
        %v485 = vsub.s32 0, %v484
        %v486 = vrot.slane %v481, %v485
        %v496 = vunpack.c.l.b16 %v472
        %v497 = vunpack.c.l.b16 %v473
        %v498 = vunpack.c.l.b16 %v474
        %v499 = vunpack.c.l.b16 %v475
        %v500 = vunpack.c.l.b16 %v476
        %v501 = vunpack.c.l.b16 %v477
        %v502 = vunpack.c.l.b16 %v478
        %v503 = vunpack.c.l.b16 %v479
        %v504 = vlaneseq
        %v505 = vand.u32 %v504, 127
        %v506 = vlaneseq
        %v507 = vshrl.u32 %v506, 7
        %v508 = vsub.s32 %v505, %v507
        %v509 = vrot.slane %v496, %v508
        %v510 = vlaneseq
        %v511 = vshrl.u32 %v510, 7
        %v512 = vsub.s32 %v505, %v511
        %v513 = vrot.slane %v497, %v512
        %v514 = vlaneseq
        %v515 = vshrl.u32 %v514, 7
        %v516 = vsub.s32 %v505, %v515
        %v517 = vrot.slane %v498, %v516
        %v518 = vlaneseq
        %v519 = vshrl.u32 %v518, 7
        %v520 = vsub.s32 %v505, %v519
        %v521 = vrot.slane %v499, %v520
        %v522 = vlaneseq
        %v523 = vshrl.u32 %v522, 7
        %v524 = vsub.s32 %v505, %v523
        %v525 = vrot.slane %v500, %v524
        %v526 = vlaneseq
        %v527 = vshrl.u32 %v526, 7
        %v528 = vsub.s32 %v505, %v527
        %v529 = vrot.slane %v501, %v528
        %v530 = vlaneseq
        %v531 = vshrl.u32 %v530, 7
        %v532 = vsub.s32 %v505, %v531
        %v533 = vrot.slane %v502, %v532
        %v534 = vlaneseq
        %v535 = vshrl.u32 %v534, 7
        %v536 = vsub.s32 %v505, %v535
        %v537 = vrot.slane %v503, %v536
        %vm538 = vcmask 1041409
        %v539 = vsel %vm538, %v513, %v509
        %vm540 = vcmask 1042434
        %v541 = vsel %vm540, %v517, %v539
        %vm542 = vcmask 1043459
        %v543 = vsel %vm542, %v521, %v541
        %vm544 = vcmask 1044484
        %v545 = vsel %vm544, %v525, %v543
        %vm546 = vcmask 1045509
        %v547 = vsel %vm546, %v529, %v545
        %vm548 = vcmask 1046534
        %v549 = vsel %vm548, %v533, %v547
        %vm550 = vcmask 1047559
        %v551 = vsel %vm550, %v537, %v549
        %v552 = vpack.c.b16 %v551, %v551
        %vm553 = vcmask 31744
        %v555 = vsel %vm553, %v552, 0
        %vm557 = vcmask 1041408
        %v559 = vsel %vm557, %v480, 0
        %561 = vmatprep.subr.bf16.mxu0 0
        %562 = vmatpush1.bf16.msra.mxu0 0
        %563 = vmatprep.subr.bf16.mxu0 0
        %564 = vmatpush1.bf16.msra.mxu0 0
        %565 = vmatprep.subr.bf16.mxu0 0
        %566 = vmatpush1.bf16.msra.mxu0 0
        %567 = vmatprep.subr.bf16.mxu0 0
        %568 = vmatpush1.bf16.msra.mxu0 0
        %569 = vmatprep.subr.bf16.mxu0 0
        %570 = vmatpush1.bf16.msra.mxu0 0
        %571 = vmatprep.subr.bf16.mxu0 0
        %572 = vmatpush1.bf16.msra.mxu0 0
        %573 = vmatprep.subr.bf16.mxu0 0
        %574 = vmatpush1.bf16.msra.mxu0 0
        %575 = vmatprep.subr.bf16.mxu0 0
        %576 = vmatpush1.bf16.msra.mxu0 %v559
        %577 = vmatprep.subr.bf16.mxu0 0
        %578 = vmatpush2.bf16.msra.mxu0 0
        %579 = vmatprep.subr.bf16.mxu0 0
        %580 = vmatpush2.bf16.msra.mxu0 0
        %581 = vmatprep.subr.bf16.mxu0 0
        %582 = vmatpush2.bf16.msra.mxu0 0
        %583 = vmatprep.subr.bf16.mxu0 0
        %584 = vmatpush2.bf16.msra.mxu0 0
        %585 = vmatprep.subr.bf16.mxu0 0
        %586 = vmatpush2.bf16.msra.mxu0 0
        %587 = vmatprep.subr.bf16.mxu0 0
        %588 = vmatpush2.bf16.msra.mxu0 0
        %589 = vmatprep.subr.bf16.mxu0 0
        %590 = vmatpush2.bf16.msra.mxu0 0
        %591 = vmatprep.subr.bf16.mxu0 0
        %592 = vmatpush2.bf16.msra.mxu0 0
        %593 = vmatprep.mubr.bf16.mxu0 0
        %594 = vmatmul.mubr.bf16.gmra.mxu0 %v555
        %v595 = vpop.f32.mrf.mxu0
        %v596 = vadd.f32 %v486, %v595
        %v597 = vpop.f32.mrf.mxu0
        %v598 = vpop.f32.mrf.mxu0
        %v599 = vpop.f32.mrf.mxu0
        %600 = vdwg.mxu0
        %v601 = vpack.c.bf16 %v596, %v596
        %v602 = vld [vmem:[#allocation10] sm:$0xff]
        %v603 = vld [vmem:[#allocation10 + $0x8] sm:$0xff]
        %v604 = vld [vmem:[#allocation10 + $0x10] sm:$0xff]
        %v605 = vld [vmem:[#allocation10 + $0x18] sm:$0xff]
        %v606 = vld [vmem:[#allocation10 + $0x20] sm:$0xff]
        %v607 = vld [vmem:[#allocation10 + $0x28] sm:$0xff]
        %v608 = vld [vmem:[#allocation10 + $0x30] sm:$0xff]
        %v609 = vld [vmem:[#allocation10 + $0x38] sm:$0xff]
        %v610 = vld [vmem:[#allocation10 + $0x40] sm:$0xff]
        %v611 = vld [vmem:[#allocation10 + $0x48] sm:$0xff]
        %v612 = vld [vmem:[#allocation10 + $0x50] sm:$0xff]
        %v613 = vld [vmem:[#allocation10 + $0x58] sm:$0xff]
        %v614 = vld [vmem:[#allocation10 + $0x60] sm:$0xff]
        %v615 = vld [vmem:[#allocation10 + $0x68] sm:$0xff]
        %v616 = vld [vmem:[#allocation10 + $0x70] sm:$0xff]
        %v617 = vld [vmem:[#allocation10 + $0x78] sm:$0xff]
        %v618 = vld [vmem:[#allocation10 + $0x80] sm:$0xff]
        %v619 = vld [vmem:[#allocation10 + $0x88] sm:$0xff]
        %v620 = vld [vmem:[#allocation10 + $0x90] sm:$0xff]
        %v621 = vld [vmem:[#allocation10 + $0x98] sm:$0xff]
        %v622 = vld [vmem:[#allocation10 + $0xa0] sm:$0xff]
        %v623 = vld [vmem:[#allocation10 + $0xa8] sm:$0xff]
        %v624 = vld [vmem:[#allocation10 + $0xb0] sm:$0xff]
        %v625 = vld [vmem:[#allocation10 + $0xb8] sm:$0xff]
        %v626 = vld [vmem:[#allocation10 + $0xc0] sm:$0xff]
        %v627 = vld [vmem:[#allocation10 + $0xc8] sm:$0xff]
        %v628 = vld [vmem:[#allocation10 + $0xd0] sm:$0xff]
        %v629 = vld [vmem:[#allocation10 + $0xd8] sm:$0xff]
        %v630 = vld [vmem:[#allocation10 + $0xe0] sm:$0xff]
        %v631 = vld [vmem:[#allocation10 + $0xe8] sm:$0xff]
        %v632 = vld [vmem:[#allocation10 + $0xf0] sm:$0xff]
        %v633 = vld [vmem:[#allocation10 + $0xf8] sm:$0xff]
        %v634 = vld [vmem:[#allocation10 + $0x100] sm:$0xff]
        %v635 = vld [vmem:[#allocation10 + $0x108] sm:$0xff]
        %v636 = vld [vmem:[#allocation10 + $0x110] sm:$0xff]
        %v637 = vld [vmem:[#allocation10 + $0x118] sm:$0xff]
        %v638 = vld [vmem:[#allocation10 + $0x120] sm:$0xff]
        %v639 = vld [vmem:[#allocation10 + $0x128] sm:$0xff]
        %v640 = vld [vmem:[#allocation10 + $0x130] sm:$0xff]
        %v641 = vld [vmem:[#allocation10 + $0x138] sm:$0xff]
        %v642 = vld [vmem:[#allocation10 + $0x140] sm:$0xff]
        %v643 = vld [vmem:[#allocation10 + $0x148] sm:$0xff]
        %v644 = vld [vmem:[#allocation10 + $0x150] sm:$0xff]
        %v645 = vld [vmem:[#allocation10 + $0x158] sm:$0xff]
        %v646 = vld [vmem:[#allocation10 + $0x160] sm:$0xff]
        %v647 = vld [vmem:[#allocation10 + $0x168] sm:$0xff]
        %v648 = vld [vmem:[#allocation10 + $0x170] sm:$0xff]
        %v649 = vld [vmem:[#allocation10 + $0x178] sm:$0xff]
        %v650 = vld [vmem:[#allocation10 + $0x180] sm:$0xff]
        %v651 = vld [vmem:[#allocation10 + $0x188] sm:$0xff]
        %v652 = vld [vmem:[#allocation10 + $0x190] sm:$0xff]
        %v653 = vld [vmem:[#allocation10 + $0x198] sm:$0xff]
        %v654 = vld [vmem:[#allocation10 + $0x1a0] sm:$0xff]
        %v655 = vld [vmem:[#allocation10 + $0x1a8] sm:$0xff]
        %v656 = vld [vmem:[#allocation10 + $0x1b0] sm:$0xff]
        %v657 = vld [vmem:[#allocation10 + $0x1b8] sm:$0xff]
        %v658 = vld [vmem:[#allocation10 + $0x1c0] sm:$0xff]
        %v659 = vld [vmem:[#allocation10 + $0x1c8] sm:$0xff]
        %v660 = vld [vmem:[#allocation10 + $0x1d0] sm:$0xff]
        %v661 = vld [vmem:[#allocation10 + $0x1d8] sm:$0xff]
        %v662 = vld [vmem:[#allocation10 + $0x1e0] sm:$0xff]
        %v663 = vld [vmem:[#allocation10 + $0x1e8] sm:$0xff]
        %v664 = vld [vmem:[#allocation10 + $0x1f0] sm:$0xff]
        %v665 = vld [vmem:[#allocation10 + $0x1f8] sm:$0xff]
        %v666 = vld [vmem:[#allocation10 + $0x200] sm:$0xff]
        %v667 = vld [vmem:[#allocation10 + $0x208] sm:$0xff]
        %v668 = vld [vmem:[#allocation10 + $0x210] sm:$0xff]
        %v669 = vld [vmem:[#allocation10 + $0x218] sm:$0xff]
        %v670 = vld [vmem:[#allocation10 + $0x220] sm:$0xff]
        %v671 = vld [vmem:[#allocation10 + $0x228] sm:$0xff]
        %v672 = vld [vmem:[#allocation10 + $0x230] sm:$0xff]
        %v673 = vld [vmem:[#allocation10 + $0x238] sm:$0xff]
        %v674 = vld [vmem:[#allocation10 + $0x240] sm:$0xff]
        %v675 = vld [vmem:[#allocation10 + $0x248] sm:$0xff]
        %v676 = vld [vmem:[#allocation10 + $0x250] sm:$0xff]
        %v677 = vld [vmem:[#allocation10 + $0x258] sm:$0xff]
        %v678 = vld [vmem:[#allocation10 + $0x260] sm:$0xff]
        %v679 = vld [vmem:[#allocation10 + $0x268] sm:$0xff]
        %v680 = vld [vmem:[#allocation10 + $0x270] sm:$0xff]
        %v681 = vld [vmem:[#allocation10 + $0x278] sm:$0xff]
        %v682 = vld [vmem:[#allocation10 + $0x280] sm:$0xff]
        %v683 = vld [vmem:[#allocation10 + $0x288] sm:$0xff]
        %v684 = vld [vmem:[#allocation10 + $0x290] sm:$0xff]
        %v685 = vld [vmem:[#allocation10 + $0x298] sm:$0xff]
        %v686 = vld [vmem:[#allocation10 + $0x2a0] sm:$0xff]
        %v687 = vld [vmem:[#allocation10 + $0x2a8] sm:$0xff]
        %v688 = vld [vmem:[#allocation10 + $0x2b0] sm:$0xff]
        %v689 = vld [vmem:[#allocation10 + $0x2b8] sm:$0xff]
        %v690 = vld [vmem:[#allocation10 + $0x2c0] sm:$0xff]
        %v691 = vld [vmem:[#allocation10 + $0x2c8] sm:$0xff]
        %v692 = vld [vmem:[#allocation10 + $0x2d0] sm:$0xff]
        %v693 = vld [vmem:[#allocation10 + $0x2d8] sm:$0xff]
        %v694 = vld [vmem:[#allocation10 + $0x2e0] sm:$0xff]
        %v695 = vld [vmem:[#allocation10 + $0x2e8] sm:$0xff]
        %v696 = vld [vmem:[#allocation10 + $0x2f0] sm:$0xff]
        %v697 = vld [vmem:[#allocation10 + $0x2f8] sm:$0xff]
        %v698 = vld [vmem:[#allocation10 + $0x300] sm:$0xff]
        %v699 = vld [vmem:[#allocation10 + $0x308] sm:$0xff]
        %v700 = vld [vmem:[#allocation10 + $0x310] sm:$0xff]
        %v701 = vld [vmem:[#allocation10 + $0x318] sm:$0xff]
        %v702 = vld [vmem:[#allocation10 + $0x320] sm:$0xff]
        %v703 = vld [vmem:[#allocation10 + $0x328] sm:$0xff]
        %v704 = vld [vmem:[#allocation10 + $0x330] sm:$0xff]
        %v705 = vld [vmem:[#allocation10 + $0x338] sm:$0xff]
        %v706 = vld [vmem:[#allocation10 + $0x340] sm:$0xff]
        %v707 = vld [vmem:[#allocation10 + $0x348] sm:$0xff]
        %v708 = vld [vmem:[#allocation10 + $0x350] sm:$0xff]
        %v709 = vld [vmem:[#allocation10 + $0x358] sm:$0xff]
        %v710 = vld [vmem:[#allocation10 + $0x360] sm:$0xff]
        %v711 = vld [vmem:[#allocation10 + $0x368] sm:$0xff]
        %v712 = vld [vmem:[#allocation10 + $0x370] sm:$0xff]
        %v713 = vld [vmem:[#allocation10 + $0x378] sm:$0xff]
        %v714 = vld [vmem:[#allocation10 + $0x380] sm:$0xff]
        %v715 = vld [vmem:[#allocation10 + $0x388] sm:$0xff]
        %v716 = vld [vmem:[#allocation10 + $0x390] sm:$0xff]
        %v717 = vld [vmem:[#allocation10 + $0x398] sm:$0xff]
        %v718 = vld [vmem:[#allocation10 + $0x3a0] sm:$0xff]
        %v719 = vld [vmem:[#allocation10 + $0x3a8] sm:$0xff]
        %v720 = vld [vmem:[#allocation10 + $0x3b0] sm:$0xff]
        %v721 = vld [vmem:[#allocation10 + $0x3b8] sm:$0xff]
        %v722 = vld [vmem:[#allocation10 + $0x3c0] sm:$0xff]
        %v723 = vld [vmem:[#allocation10 + $0x3c8] sm:$0xff]
        %v724 = vld [vmem:[#allocation10 + $0x3d0] sm:$0xff]
        %v725 = vld [vmem:[#allocation10 + $0x3d8] sm:$0xff]
        %v726 = vld [vmem:[#allocation10 + $0x3e0] sm:$0xff]
        %v727 = vld [vmem:[#allocation10 + $0x3e8] sm:$0xff]
        %v728 = vld [vmem:[#allocation10 + $0x3f0] sm:$0xff]
        %v729 = vld [vmem:[#allocation10 + $0x3f8] sm:$0xff]
        %v858 = vunpack.c.l.b16 %v602
        %v859 = vunpack.c.h.b16 %v602
        %v860 = vunpack.c.l.b16 %v603
        %v861 = vunpack.c.h.b16 %v603
        %v862 = vunpack.c.l.b16 %v604
        %v863 = vunpack.c.h.b16 %v604
        %v864 = vunpack.c.l.b16 %v605
        %v865 = vunpack.c.h.b16 %v605
        %v866 = vunpack.c.l.b16 %v606
        %v867 = vunpack.c.h.b16 %v606
        %v868 = vunpack.c.l.b16 %v607
        %v869 = vunpack.c.h.b16 %v607
        %v870 = vunpack.c.l.b16 %v608
        %v871 = vunpack.c.h.b16 %v608
        %v872 = vunpack.c.l.b16 %v609
        %v873 = vunpack.c.h.b16 %v609
        %v874 = vunpack.c.l.b16 %v610
        %v875 = vunpack.c.h.b16 %v610
        %v876 = vunpack.c.l.b16 %v611
        %v877 = vunpack.c.h.b16 %v611
        %v878 = vunpack.c.l.b16 %v612
        %v879 = vunpack.c.h.b16 %v612
        %v880 = vunpack.c.l.b16 %v613
        %v881 = vunpack.c.h.b16 %v613
        %v882 = vunpack.c.l.b16 %v614
        %v883 = vunpack.c.h.b16 %v614
        %v884 = vunpack.c.l.b16 %v615
        %v885 = vunpack.c.h.b16 %v615
        %v886 = vunpack.c.l.b16 %v616
        %v887 = vunpack.c.h.b16 %v616
        %v888 = vunpack.c.l.b16 %v617
        %v889 = vunpack.c.h.b16 %v617
        %v890 = vunpack.c.l.b16 %v618
        %v891 = vunpack.c.h.b16 %v618
        %v892 = vunpack.c.l.b16 %v619
        %v893 = vunpack.c.h.b16 %v619
        %v894 = vunpack.c.l.b16 %v620
        %v895 = vunpack.c.h.b16 %v620
        %v896 = vunpack.c.l.b16 %v621
        %v897 = vunpack.c.h.b16 %v621
        %v898 = vunpack.c.l.b16 %v622
        %v899 = vunpack.c.h.b16 %v622
        %v900 = vunpack.c.l.b16 %v623
        %v901 = vunpack.c.h.b16 %v623
        %v902 = vunpack.c.l.b16 %v624
        %v903 = vunpack.c.h.b16 %v624
        %v904 = vunpack.c.l.b16 %v625
        %v905 = vunpack.c.h.b16 %v625
        %v906 = vunpack.c.l.b16 %v626
        %v907 = vunpack.c.h.b16 %v626
        %v908 = vunpack.c.l.b16 %v627
        %v909 = vunpack.c.h.b16 %v627
        %v910 = vunpack.c.l.b16 %v628
        %v911 = vunpack.c.h.b16 %v628
        %v912 = vunpack.c.l.b16 %v629
        %v913 = vunpack.c.h.b16 %v629
        %v914 = vunpack.c.l.b16 %v630
        %v915 = vunpack.c.h.b16 %v630
        %v916 = vunpack.c.l.b16 %v631
        %v917 = vunpack.c.h.b16 %v631
        %v918 = vunpack.c.l.b16 %v632
        %v919 = vunpack.c.h.b16 %v632
        %v920 = vunpack.c.l.b16 %v633
        %v921 = vunpack.c.h.b16 %v633
        %v922 = vunpack.c.l.b16 %v634
        %v923 = vunpack.c.h.b16 %v634
        %v924 = vunpack.c.l.b16 %v635
        %v925 = vunpack.c.h.b16 %v635
        %v926 = vunpack.c.l.b16 %v636
        %v927 = vunpack.c.h.b16 %v636
        %v928 = vunpack.c.l.b16 %v637
        %v929 = vunpack.c.h.b16 %v637
        %v930 = vunpack.c.l.b16 %v638
        %v931 = vunpack.c.h.b16 %v638
        %v932 = vunpack.c.l.b16 %v639
        %v933 = vunpack.c.h.b16 %v639
        %v934 = vunpack.c.l.b16 %v640
        %v935 = vunpack.c.h.b16 %v640
        %v936 = vunpack.c.l.b16 %v641
        %v937 = vunpack.c.h.b16 %v641
        %v938 = vunpack.c.l.b16 %v642
        %v939 = vunpack.c.h.b16 %v642
        %v940 = vunpack.c.l.b16 %v643
        %v941 = vunpack.c.h.b16 %v643
        %v942 = vunpack.c.l.b16 %v644
        %v943 = vunpack.c.h.b16 %v644
        %v944 = vunpack.c.l.b16 %v645
        %v945 = vunpack.c.h.b16 %v645
        %v946 = vunpack.c.l.b16 %v646
        %v947 = vunpack.c.h.b16 %v646
        %v948 = vunpack.c.l.b16 %v647
        %v949 = vunpack.c.h.b16 %v647
        %v950 = vunpack.c.l.b16 %v648
        %v951 = vunpack.c.h.b16 %v648
        %v952 = vunpack.c.l.b16 %v649
        %v953 = vunpack.c.h.b16 %v649
        %v954 = vunpack.c.l.b16 %v650
        %v955 = vunpack.c.h.b16 %v650
        %v956 = vunpack.c.l.b16 %v651
        %v957 = vunpack.c.h.b16 %v651
        %v958 = vunpack.c.l.b16 %v652
        %v959 = vunpack.c.h.b16 %v652
        %v960 = vunpack.c.l.b16 %v653
        %v961 = vunpack.c.h.b16 %v653
        %v962 = vunpack.c.l.b16 %v654
        %v963 = vunpack.c.h.b16 %v654
        %v964 = vunpack.c.l.b16 %v655
        %v965 = vunpack.c.h.b16 %v655
        %v966 = vunpack.c.l.b16 %v656
        %v967 = vunpack.c.h.b16 %v656
        %v968 = vunpack.c.l.b16 %v657
        %v969 = vunpack.c.h.b16 %v657
        %v970 = vunpack.c.l.b16 %v658
        %v971 = vunpack.c.h.b16 %v658
        %v972 = vunpack.c.l.b16 %v659
        %v973 = vunpack.c.h.b16 %v659
        %v974 = vunpack.c.l.b16 %v660
        %v975 = vunpack.c.h.b16 %v660
        %v976 = vunpack.c.l.b16 %v661
        %v977 = vunpack.c.h.b16 %v661
        %v978 = vunpack.c.l.b16 %v662
        %v979 = vunpack.c.h.b16 %v662
        %v980 = vunpack.c.l.b16 %v663
        %v981 = vunpack.c.h.b16 %v663
        %v982 = vunpack.c.l.b16 %v664
        %v983 = vunpack.c.h.b16 %v664
        %v984 = vunpack.c.l.b16 %v665
        %v985 = vunpack.c.h.b16 %v665
        %v986 = vunpack.c.l.b16 %v666
        %v987 = vunpack.c.h.b16 %v666
        %v988 = vunpack.c.l.b16 %v667
        %v989 = vunpack.c.h.b16 %v667
        %v990 = vunpack.c.l.b16 %v668
        %v991 = vunpack.c.h.b16 %v668
        %v992 = vunpack.c.l.b16 %v669
        %v993 = vunpack.c.h.b16 %v669
        %v994 = vunpack.c.l.b16 %v670
        %v995 = vunpack.c.h.b16 %v670
        %v996 = vunpack.c.l.b16 %v671
        %v997 = vunpack.c.h.b16 %v671
        %v998 = vunpack.c.l.b16 %v672
        %v999 = vunpack.c.h.b16 %v672
        %v1000 = vunpack.c.l.b16 %v673
        %v1001 = vunpack.c.h.b16 %v673
        %v1002 = vunpack.c.l.b16 %v674
        %v1003 = vunpack.c.h.b16 %v674
        %v1004 = vunpack.c.l.b16 %v675
        %v1005 = vunpack.c.h.b16 %v675
        %v1006 = vunpack.c.l.b16 %v676
        %v1007 = vunpack.c.h.b16 %v676
        %v1008 = vunpack.c.l.b16 %v677
        %v1009 = vunpack.c.h.b16 %v677
        %v1010 = vunpack.c.l.b16 %v678
        %v1011 = vunpack.c.h.b16 %v678
        %v1012 = vunpack.c.l.b16 %v679
        %v1013 = vunpack.c.h.b16 %v679
        %v1014 = vunpack.c.l.b16 %v680
        %v1015 = vunpack.c.h.b16 %v680
        %v1016 = vunpack.c.l.b16 %v681
        %v1017 = vunpack.c.h.b16 %v681
        %v1018 = vunpack.c.l.b16 %v682
        %v1019 = vunpack.c.h.b16 %v682
        %v1020 = vunpack.c.l.b16 %v683
        %v1021 = vunpack.c.h.b16 %v683
        %v1022 = vunpack.c.l.b16 %v684
        %v1023 = vunpack.c.h.b16 %v684
        %v1024 = vunpack.c.l.b16 %v685
        %v1025 = vunpack.c.h.b16 %v685
        %v1026 = vunpack.c.l.b16 %v686
        %v1027 = vunpack.c.h.b16 %v686
        %v1028 = vunpack.c.l.b16 %v687
        %v1029 = vunpack.c.h.b16 %v687
        %v1030 = vunpack.c.l.b16 %v688
        %v1031 = vunpack.c.h.b16 %v688
        %v1032 = vunpack.c.l.b16 %v689
        %v1033 = vunpack.c.h.b16 %v689
        %v1034 = vunpack.c.l.b16 %v690
        %v1035 = vunpack.c.h.b16 %v690
        %v1036 = vunpack.c.l.b16 %v691
        %v1037 = vunpack.c.h.b16 %v691
        %v1038 = vunpack.c.l.b16 %v692
        %v1039 = vunpack.c.h.b16 %v692
        %v1040 = vunpack.c.l.b16 %v693
        %v1041 = vunpack.c.h.b16 %v693
        %v1042 = vunpack.c.l.b16 %v694
        %v1043 = vunpack.c.h.b16 %v694
        %v1044 = vunpack.c.l.b16 %v695
        %v1045 = vunpack.c.h.b16 %v695
        %v1046 = vunpack.c.l.b16 %v696
        %v1047 = vunpack.c.h.b16 %v696
        %v1048 = vunpack.c.l.b16 %v697
        %v1049 = vunpack.c.h.b16 %v697
        %v1050 = vunpack.c.l.b16 %v698
        %v1051 = vunpack.c.h.b16 %v698
        %v1052 = vunpack.c.l.b16 %v699
        %v1053 = vunpack.c.h.b16 %v699
        %v1054 = vunpack.c.l.b16 %v700
        %v1055 = vunpack.c.h.b16 %v700
        %v1056 = vunpack.c.l.b16 %v701
        %v1057 = vunpack.c.h.b16 %v701
        %v1058 = vunpack.c.l.b16 %v702
        %v1059 = vunpack.c.h.b16 %v702
        %v1060 = vunpack.c.l.b16 %v703
        %v1061 = vunpack.c.h.b16 %v703
        %v1062 = vunpack.c.l.b16 %v704
        %v1063 = vunpack.c.h.b16 %v704
        %v1064 = vunpack.c.l.b16 %v705
        %v1065 = vunpack.c.h.b16 %v705
        %v1066 = vunpack.c.l.b16 %v706
        %v1067 = vunpack.c.h.b16 %v706
        %v1068 = vunpack.c.l.b16 %v707
        %v1069 = vunpack.c.h.b16 %v707
        %v1070 = vunpack.c.l.b16 %v708
        %v1071 = vunpack.c.h.b16 %v708
        %v1072 = vunpack.c.l.b16 %v709
        %v1073 = vunpack.c.h.b16 %v709
        %v1074 = vunpack.c.l.b16 %v710
        %v1075 = vunpack.c.h.b16 %v710
        %v1076 = vunpack.c.l.b16 %v711
        %v1077 = vunpack.c.h.b16 %v711
        %v1078 = vunpack.c.l.b16 %v712
        %v1079 = vunpack.c.h.b16 %v712
        %v1080 = vunpack.c.l.b16 %v713
        %v1081 = vunpack.c.h.b16 %v713
        %v1082 = vunpack.c.l.b16 %v714
        %v1083 = vunpack.c.h.b16 %v714
        %v1084 = vunpack.c.l.b16 %v715
        %v1085 = vunpack.c.h.b16 %v715
        %v1086 = vunpack.c.l.b16 %v716
        %v1087 = vunpack.c.h.b16 %v716
        %v1088 = vunpack.c.l.b16 %v717
        %v1089 = vunpack.c.h.b16 %v717
        %v1090 = vunpack.c.l.b16 %v718
        %v1091 = vunpack.c.h.b16 %v718
        %v1092 = vunpack.c.l.b16 %v719
        %v1093 = vunpack.c.h.b16 %v719
        %v1094 = vunpack.c.l.b16 %v720
        %v1095 = vunpack.c.h.b16 %v720
        %v1096 = vunpack.c.l.b16 %v721
        %v1097 = vunpack.c.h.b16 %v721
        %v1098 = vunpack.c.l.b16 %v722
        %v1099 = vunpack.c.h.b16 %v722
        %v1100 = vunpack.c.l.b16 %v723
        %v1101 = vunpack.c.h.b16 %v723
        %v1102 = vunpack.c.l.b16 %v724
        %v1103 = vunpack.c.h.b16 %v724
        %v1104 = vunpack.c.l.b16 %v725
        %v1105 = vunpack.c.h.b16 %v725
        %v1106 = vunpack.c.l.b16 %v726
        %v1107 = vunpack.c.h.b16 %v726
        %v1108 = vunpack.c.l.b16 %v727
        %v1109 = vunpack.c.h.b16 %v727
        %v1110 = vunpack.c.l.b16 %v728
        %v1111 = vunpack.c.h.b16 %v728
        %v1112 = vunpack.c.l.b16 %v729
        %v1113 = vunpack.c.h.b16 %v729
        %v1114 = vpack.c.b16 %v874, %v858
        %v1115 = vpack.c.b16 %v875, %v859
        %v1116 = vpack.c.b16 %v876, %v860
        %v1117 = vpack.c.b16 %v877, %v861
        %v1118 = vpack.c.b16 %v878, %v862
        %v1119 = vpack.c.b16 %v879, %v863
        %v1120 = vpack.c.b16 %v880, %v864
        %v1121 = vpack.c.b16 %v881, %v865
        %v1122 = vpack.c.b16 %v882, %v866
        %v1123 = vpack.c.b16 %v883, %v867
        %v1124 = vpack.c.b16 %v884, %v868
        %v1125 = vpack.c.b16 %v885, %v869
        %v1126 = vpack.c.b16 %v886, %v870
        %v1127 = vpack.c.b16 %v887, %v871
        %v1128 = vpack.c.b16 %v888, %v872
        %v1129 = vpack.c.b16 %v889, %v873
        %v1130 = vpack.c.b16 %v906, %v890
        %v1131 = vpack.c.b16 %v907, %v891
        %v1132 = vpack.c.b16 %v908, %v892
        %v1133 = vpack.c.b16 %v909, %v893
        %v1134 = vpack.c.b16 %v910, %v894
        %v1135 = vpack.c.b16 %v911, %v895
        %v1136 = vpack.c.b16 %v912, %v896
        %v1137 = vpack.c.b16 %v913, %v897
        %v1138 = vpack.c.b16 %v914, %v898
        %v1139 = vpack.c.b16 %v915, %v899
        %v1140 = vpack.c.b16 %v916, %v900
        %v1141 = vpack.c.b16 %v917, %v901
        %v1142 = vpack.c.b16 %v918, %v902
        %v1143 = vpack.c.b16 %v919, %v903
        %v1144 = vpack.c.b16 %v920, %v904
        %v1145 = vpack.c.b16 %v921, %v905
        %v1146 = vpack.c.b16 %v938, %v922
        %v1147 = vpack.c.b16 %v939, %v923
        %v1148 = vpack.c.b16 %v940, %v924
        %v1149 = vpack.c.b16 %v941, %v925
        %v1150 = vpack.c.b16 %v942, %v926
        %v1151 = vpack.c.b16 %v943, %v927
        %v1152 = vpack.c.b16 %v944, %v928
        %v1153 = vpack.c.b16 %v945, %v929
        %v1154 = vpack.c.b16 %v946, %v930
        %v1155 = vpack.c.b16 %v947, %v931
        %v1156 = vpack.c.b16 %v948, %v932
        %v1157 = vpack.c.b16 %v949, %v933
        %v1158 = vpack.c.b16 %v950, %v934
        %v1159 = vpack.c.b16 %v951, %v935
        %v1160 = vpack.c.b16 %v952, %v936
        %v1161 = vpack.c.b16 %v953, %v937
        %v1162 = vpack.c.b16 %v970, %v954
        %v1163 = vpack.c.b16 %v971, %v955
        %v1164 = vpack.c.b16 %v972, %v956
        %v1165 = vpack.c.b16 %v973, %v957
        %v1166 = vpack.c.b16 %v974, %v958
        %v1167 = vpack.c.b16 %v975, %v959
        %v1168 = vpack.c.b16 %v976, %v960
        %v1169 = vpack.c.b16 %v977, %v961
        %v1170 = vpack.c.b16 %v978, %v962
        %v1171 = vpack.c.b16 %v979, %v963
        %v1172 = vpack.c.b16 %v980, %v964
        %v1173 = vpack.c.b16 %v981, %v965
        %v1174 = vpack.c.b16 %v982, %v966
        %v1175 = vpack.c.b16 %v983, %v967
        %v1176 = vpack.c.b16 %v984, %v968
        %v1177 = vpack.c.b16 %v985, %v969
        %v1178 = vpack.c.b16 %v1002, %v986
        %v1179 = vpack.c.b16 %v1003, %v987
        %v1180 = vpack.c.b16 %v1004, %v988
        %v1181 = vpack.c.b16 %v1005, %v989
        %v1182 = vpack.c.b16 %v1006, %v990
        %v1183 = vpack.c.b16 %v1007, %v991
        %v1184 = vpack.c.b16 %v1008, %v992
        %v1185 = vpack.c.b16 %v1009, %v993
        %v1186 = vpack.c.b16 %v1010, %v994
        %v1187 = vpack.c.b16 %v1011, %v995
        %v1188 = vpack.c.b16 %v1012, %v996
        %v1189 = vpack.c.b16 %v1013, %v997
        %v1190 = vpack.c.b16 %v1014, %v998
        %v1191 = vpack.c.b16 %v1015, %v999
        %v1192 = vpack.c.b16 %v1016, %v1000
        %v1193 = vpack.c.b16 %v1017, %v1001
        %v1194 = vpack.c.b16 %v1034, %v1018
        %v1195 = vpack.c.b16 %v1035, %v1019
        %v1196 = vpack.c.b16 %v1036, %v1020
        %v1197 = vpack.c.b16 %v1037, %v1021
        %v1198 = vpack.c.b16 %v1038, %v1022
        %v1199 = vpack.c.b16 %v1039, %v1023
        %v1200 = vpack.c.b16 %v1040, %v1024
        %v1201 = vpack.c.b16 %v1041, %v1025
        %v1202 = vpack.c.b16 %v1042, %v1026
        %v1203 = vpack.c.b16 %v1043, %v1027
        %v1204 = vpack.c.b16 %v1044, %v1028
        %v1205 = vpack.c.b16 %v1045, %v1029
        %v1206 = vpack.c.b16 %v1046, %v1030
        %v1207 = vpack.c.b16 %v1047, %v1031
        %v1208 = vpack.c.b16 %v1048, %v1032
        %v1209 = vpack.c.b16 %v1049, %v1033
        %v1210 = vpack.c.b16 %v1066, %v1050
        %v1211 = vpack.c.b16 %v1067, %v1051
        %v1212 = vpack.c.b16 %v1068, %v1052
        %v1213 = vpack.c.b16 %v1069, %v1053
        %v1214 = vpack.c.b16 %v1070, %v1054
        %v1215 = vpack.c.b16 %v1071, %v1055
        %v1216 = vpack.c.b16 %v1072, %v1056
        %v1217 = vpack.c.b16 %v1073, %v1057
        %v1218 = vpack.c.b16 %v1074, %v1058
        %v1219 = vpack.c.b16 %v1075, %v1059
        %v1220 = vpack.c.b16 %v1076, %v1060
        %v1221 = vpack.c.b16 %v1077, %v1061
        %v1222 = vpack.c.b16 %v1078, %v1062
        %v1223 = vpack.c.b16 %v1079, %v1063
        %v1224 = vpack.c.b16 %v1080, %v1064
        %v1225 = vpack.c.b16 %v1081, %v1065
        %v1226 = vpack.c.b16 %v1098, %v1082
        %v1227 = vpack.c.b16 %v1099, %v1083
        %v1228 = vpack.c.b16 %v1100, %v1084
        %v1229 = vpack.c.b16 %v1101, %v1085
        %v1230 = vpack.c.b16 %v1102, %v1086
        %v1231 = vpack.c.b16 %v1103, %v1087
        %v1232 = vpack.c.b16 %v1104, %v1088
        %v1233 = vpack.c.b16 %v1105, %v1089
        %v1234 = vpack.c.b16 %v1106, %v1090
        %v1235 = vpack.c.b16 %v1107, %v1091
        %v1236 = vpack.c.b16 %v1108, %v1092
        %v1237 = vpack.c.b16 %v1109, %v1093
        %v1238 = vpack.c.b16 %v1110, %v1094
        %v1239 = vpack.c.b16 %v1111, %v1095
        %v1240 = vpack.c.b16 %v1112, %v1096
        %v1241 = vpack.c.b16 %v1113, %v1097
        %1370 = vmatprep.subr.bf16.mxu0 %v1227
        %1371 = vmatpush1.bf16.msra.mxu0 %v1226
        %1372 = vmatprep.subr.bf16.mxu0 %v1211
        %1373 = vmatpush1.bf16.msra.mxu0 %v1210
        %1374 = vmatprep.subr.bf16.mxu0 %v1195
        %1375 = vmatpush1.bf16.msra.mxu0 %v1194
        %1376 = vmatprep.subr.bf16.mxu0 %v1179
        %1377 = vmatpush1.bf16.msra.mxu0 %v1178
        %1378 = vmatprep.subr.bf16.mxu0 %v1163
        %1379 = vmatpush1.bf16.msra.mxu0 %v1162
        %1380 = vmatprep.subr.bf16.mxu0 %v1147
        %1381 = vmatpush1.bf16.msra.mxu0 %v1146
        %1382 = vmatprep.subr.bf16.mxu0 %v1131
        %1383 = vmatpush1.bf16.msra.mxu0 %v1130
        %1384 = vmatprep.subr.bf16.mxu0 %v1115
        %1385 = vmatpush1.bf16.msra.mxu0 %v1114
        %1386 = vmatprep.subr.bf16.mxu0 0
        %1387 = vmatpush2.bf16.msra.mxu0 0
        %1388 = vmatprep.subr.bf16.mxu0 0
        %1389 = vmatpush2.bf16.msra.mxu0 0
        %1390 = vmatprep.subr.bf16.mxu0 0
        %1391 = vmatpush2.bf16.msra.mxu0 0
        %1392 = vmatprep.subr.bf16.mxu0 0
        %1393 = vmatpush2.bf16.msra.mxu0 0
        %1394 = vmatprep.subr.bf16.mxu0 0
        %1395 = vmatpush2.bf16.msra.mxu0 0
        %1396 = vmatprep.subr.bf16.mxu0 0
        %1397 = vmatpush2.bf16.msra.mxu0 0
        %1398 = vmatprep.subr.bf16.mxu0 0
        %1399 = vmatpush2.bf16.msra.mxu0 0
        %1400 = vmatprep.subr.bf16.mxu0 0
        %1401 = vmatpush2.bf16.msra.mxu0 0
        %1402 = vmatprep.mubr.bf16.mxu0 0
        %1403 = vmatmul.mubr.bf16.gmra.mxu0 %v601
        %v1404 = vpop.f32.mrf.mxu0
        %v1405 = vadd.f32 0.0, %v1404
        %v1406 = vpop.f32.mrf.mxu0
        %v1407 = vadd.f32 0.0, %v1406
        %v1408 = vpop.f32.mrf.mxu0
        %v1409 = vpop.f32.mrf.mxu0
        %1410 = vdwg.mxu0
        %1411 = vmatprep.subr.bf16.mxu0 %v1229
        %1412 = vmatpush1.bf16.msra.mxu0 %v1228
        %1413 = vmatprep.subr.bf16.mxu0 %v1213
        %1414 = vmatpush1.bf16.msra.mxu0 %v1212
        %1415 = vmatprep.subr.bf16.mxu0 %v1197
        %1416 = vmatpush1.bf16.msra.mxu0 %v1196
        %1417 = vmatprep.subr.bf16.mxu0 %v1181
        %1418 = vmatpush1.bf16.msra.mxu0 %v1180
        %1419 = vmatprep.subr.bf16.mxu0 %v1165
        %1420 = vmatpush1.bf16.msra.mxu0 %v1164
        %1421 = vmatprep.subr.bf16.mxu0 %v1149
        %1422 = vmatpush1.bf16.msra.mxu0 %v1148
        %1423 = vmatprep.subr.bf16.mxu0 %v1133
        %1424 = vmatpush1.bf16.msra.mxu0 %v1132
        %1425 = vmatprep.subr.bf16.mxu0 %v1117
        %1426 = vmatpush1.bf16.msra.mxu0 %v1116
        %1427 = vmatprep.subr.bf16.mxu0 0
        %1428 = vmatpush2.bf16.msra.mxu0 0
        %1429 = vmatprep.subr.bf16.mxu0 0
        %1430 = vmatpush2.bf16.msra.mxu0 0
        %1431 = vmatprep.subr.bf16.mxu0 0
        %1432 = vmatpush2.bf16.msra.mxu0 0
        %1433 = vmatprep.subr.bf16.mxu0 0
        %1434 = vmatpush2.bf16.msra.mxu0 0
        %1435 = vmatprep.subr.bf16.mxu0 0
        %1436 = vmatpush2.bf16.msra.mxu0 0
        %1437 = vmatprep.subr.bf16.mxu0 0
        %1438 = vmatpush2.bf16.msra.mxu0 0
        %1439 = vmatprep.subr.bf16.mxu0 0
        %1440 = vmatpush2.bf16.msra.mxu0 0
        %1441 = vmatprep.subr.bf16.mxu0 0
        %1442 = vmatpush2.bf16.msra.mxu0 0
        %1443 = vmatprep.mubr.bf16.mxu0 0
        %1444 = vmatmul.mubr.bf16.gmra.mxu0 %v601
        %v1445 = vpop.f32.mrf.mxu0
        %v1446 = vadd.f32 0.0, %v1445
        %v1447 = vpop.f32.mrf.mxu0
        %v1448 = vadd.f32 0.0, %v1447
        %v1449 = vpop.f32.mrf.mxu0
        %v1450 = vpop.f32.mrf.mxu0
        %1451 = vdwg.mxu0
        %1452 = vmatprep.subr.bf16.mxu0 %v1231
        %1453 = vmatpush1.bf16.msra.mxu0 %v1230
        %1454 = vmatprep.subr.bf16.mxu0 %v1215
        %1455 = vmatpush1.bf16.msra.mxu0 %v1214
        %1456 = vmatprep.subr.bf16.mxu0 %v1199
        %1457 = vmatpush1.bf16.msra.mxu0 %v1198
        %1458 = vmatprep.subr.bf16.mxu0 %v1183
        %1459 = vmatpush1.bf16.msra.mxu0 %v1182
        %1460 = vmatprep.subr.bf16.mxu0 %v1167
        %1461 = vmatpush1.bf16.msra.mxu0 %v1166
        %1462 = vmatprep.subr.bf16.mxu0 %v1151
        %1463 = vmatpush1.bf16.msra.mxu0 %v1150
        %1464 = vmatprep.subr.bf16.mxu0 %v1135
        %1465 = vmatpush1.bf16.msra.mxu0 %v1134
        %1466 = vmatprep.subr.bf16.mxu0 %v1119
        %1467 = vmatpush1.bf16.msra.mxu0 %v1118
        %1468 = vmatprep.subr.bf16.mxu0 0
        %1469 = vmatpush2.bf16.msra.mxu0 0
        %1470 = vmatprep.subr.bf16.mxu0 0
        %1471 = vmatpush2.bf16.msra.mxu0 0
        %1472 = vmatprep.subr.bf16.mxu0 0
        %1473 = vmatpush2.bf16.msra.mxu0 0
        %1474 = vmatprep.subr.bf16.mxu0 0
        %1475 = vmatpush2.bf16.msra.mxu0 0
        %1476 = vmatprep.subr.bf16.mxu0 0
        %1477 = vmatpush2.bf16.msra.mxu0 0
        %1478 = vmatprep.subr.bf16.mxu0 0
        %1479 = vmatpush2.bf16.msra.mxu0 0
        %1480 = vmatprep.subr.bf16.mxu0 0
        %1481 = vmatpush2.bf16.msra.mxu0 0
        %1482 = vmatprep.subr.bf16.mxu0 0
        %1483 = vmatpush2.bf16.msra.mxu0 0
        %1484 = vmatprep.mubr.bf16.mxu0 0
        %1485 = vmatmul.mubr.bf16.gmra.mxu0 %v601
        %v1486 = vpop.f32.mrf.mxu0
        %v1487 = vadd.f32 0.0, %v1486
        %v1488 = vpop.f32.mrf.mxu0
        %v1489 = vadd.f32 0.0, %v1488
        %v1490 = vpop.f32.mrf.mxu0
        %v1491 = vpop.f32.mrf.mxu0
        %1492 = vdwg.mxu0
        %1493 = vmatprep.subr.bf16.mxu0 %v1233
        %1494 = vmatpush1.bf16.msra.mxu0 %v1232
        %1495 = vmatprep.subr.bf16.mxu0 %v1217
        %1496 = vmatpush1.bf16.msra.mxu0 %v1216
        %1497 = vmatprep.subr.bf16.mxu0 %v1201
        %1498 = vmatpush1.bf16.msra.mxu0 %v1200
        %1499 = vmatprep.subr.bf16.mxu0 %v1185
        %1500 = vmatpush1.bf16.msra.mxu0 %v1184
        %1501 = vmatprep.subr.bf16.mxu0 %v1169
        %1502 = vmatpush1.bf16.msra.mxu0 %v1168
        %1503 = vmatprep.subr.bf16.mxu0 %v1153
        %1504 = vmatpush1.bf16.msra.mxu0 %v1152
        %1505 = vmatprep.subr.bf16.mxu0 %v1137
        %1506 = vmatpush1.bf16.msra.mxu0 %v1136
        %1507 = vmatprep.subr.bf16.mxu0 %v1121
        %1508 = vmatpush1.bf16.msra.mxu0 %v1120
        %1509 = vmatprep.subr.bf16.mxu0 0
        %1510 = vmatpush2.bf16.msra.mxu0 0
        %1511 = vmatprep.subr.bf16.mxu0 0
        %1512 = vmatpush2.bf16.msra.mxu0 0
        %1513 = vmatprep.subr.bf16.mxu0 0
        %1514 = vmatpush2.bf16.msra.mxu0 0
        %1515 = vmatprep.subr.bf16.mxu0 0
        %1516 = vmatpush2.bf16.msra.mxu0 0
        %1517 = vmatprep.subr.bf16.mxu0 0
        %1518 = vmatpush2.bf16.msra.mxu0 0
        %1519 = vmatprep.subr.bf16.mxu0 0
        %1520 = vmatpush2.bf16.msra.mxu0 0
        %1521 = vmatprep.subr.bf16.mxu0 0
        %1522 = vmatpush2.bf16.msra.mxu0 0
        %1523 = vmatprep.subr.bf16.mxu0 0
        %1524 = vmatpush2.bf16.msra.mxu0 0
        %1525 = vmatprep.mubr.bf16.mxu0 0
        %1526 = vmatmul.mubr.bf16.gmra.mxu0 %v601
        %v1527 = vpop.f32.mrf.mxu0
        %v1528 = vadd.f32 0.0, %v1527
        %v1529 = vpop.f32.mrf.mxu0
        %v1530 = vadd.f32 0.0, %v1529
        %v1531 = vpop.f32.mrf.mxu0
        %v1532 = vpop.f32.mrf.mxu0
        %1533 = vdwg.mxu0
        %1534 = vmatprep.subr.bf16.mxu0 %v1235
        %1535 = vmatpush1.bf16.msra.mxu0 %v1234
        %1536 = vmatprep.subr.bf16.mxu0 %v1219
        %1537 = vmatpush1.bf16.msra.mxu0 %v1218
        %1538 = vmatprep.subr.bf16.mxu0 %v1203
        %1539 = vmatpush1.bf16.msra.mxu0 %v1202
        %1540 = vmatprep.subr.bf16.mxu0 %v1187
        %1541 = vmatpush1.bf16.msra.mxu0 %v1186
        %1542 = vmatprep.subr.bf16.mxu0 %v1171
        %1543 = vmatpush1.bf16.msra.mxu0 %v1170
        %1544 = vmatprep.subr.bf16.mxu0 %v1155
        %1545 = vmatpush1.bf16.msra.mxu0 %v1154
        %1546 = vmatprep.subr.bf16.mxu0 %v1139
        %1547 = vmatpush1.bf16.msra.mxu0 %v1138
        %1548 = vmatprep.subr.bf16.mxu0 %v1123
        %1549 = vmatpush1.bf16.msra.mxu0 %v1122
        %1550 = vmatprep.subr.bf16.mxu0 0
        %1551 = vmatpush2.bf16.msra.mxu0 0
        %1552 = vmatprep.subr.bf16.mxu0 0
        %1553 = vmatpush2.bf16.msra.mxu0 0
        %1554 = vmatprep.subr.bf16.mxu0 0
        %1555 = vmatpush2.bf16.msra.mxu0 0
        %1556 = vmatprep.subr.bf16.mxu0 0
        %1557 = vmatpush2.bf16.msra.mxu0 0
        %1558 = vmatprep.subr.bf16.mxu0 0
        %1559 = vmatpush2.bf16.msra.mxu0 0
        %1560 = vmatprep.subr.bf16.mxu0 0
        %1561 = vmatpush2.bf16.msra.mxu0 0
        %1562 = vmatprep.subr.bf16.mxu0 0
        %1563 = vmatpush2.bf16.msra.mxu0 0
        %1564 = vmatprep.subr.bf16.mxu0 0
        %1565 = vmatpush2.bf16.msra.mxu0 0
        %1566 = vmatprep.mubr.bf16.mxu0 0
        %1567 = vmatmul.mubr.bf16.gmra.mxu0 %v601
        %v1568 = vpop.f32.mrf.mxu0
        %v1569 = vadd.f32 0.0, %v1568
        %v1570 = vpop.f32.mrf.mxu0
        %v1571 = vadd.f32 0.0, %v1570
        %v1572 = vpop.f32.mrf.mxu0
        %v1573 = vpop.f32.mrf.mxu0
        %1574 = vdwg.mxu0
        %1575 = vmatprep.subr.bf16.mxu0 %v1237
        %1576 = vmatpush1.bf16.msra.mxu0 %v1236
        %1577 = vmatprep.subr.bf16.mxu0 %v1221
        %1578 = vmatpush1.bf16.msra.mxu0 %v1220
        %1579 = vmatprep.subr.bf16.mxu0 %v1205
        %1580 = vmatpush1.bf16.msra.mxu0 %v1204
        %1581 = vmatprep.subr.bf16.mxu0 %v1189
        %1582 = vmatpush1.bf16.msra.mxu0 %v1188
        %1583 = vmatprep.subr.bf16.mxu0 %v1173
        %1584 = vmatpush1.bf16.msra.mxu0 %v1172
        %1585 = vmatprep.subr.bf16.mxu0 %v1157
        %1586 = vmatpush1.bf16.msra.mxu0 %v1156
        %1587 = vmatprep.subr.bf16.mxu0 %v1141
        %1588 = vmatpush1.bf16.msra.mxu0 %v1140
        %1589 = vmatprep.subr.bf16.mxu0 %v1125
        %1590 = vmatpush1.bf16.msra.mxu0 %v1124
        %1591 = vmatprep.subr.bf16.mxu0 0
        %1592 = vmatpush2.bf16.msra.mxu0 0
        %1593 = vmatprep.subr.bf16.mxu0 0
        %1594 = vmatpush2.bf16.msra.mxu0 0
        %1595 = vmatprep.subr.bf16.mxu0 0
        %1596 = vmatpush2.bf16.msra.mxu0 0
        %1597 = vmatprep.subr.bf16.mxu0 0
        %1598 = vmatpush2.bf16.msra.mxu0 0
        %1599 = vmatprep.subr.bf16.mxu0 0
        %1600 = vmatpush2.bf16.msra.mxu0 0
        %1601 = vmatprep.subr.bf16.mxu0 0
        %1602 = vmatpush2.bf16.msra.mxu0 0
        %1603 = vmatprep.subr.bf16.mxu0 0
        %1604 = vmatpush2.bf16.msra.mxu0 0
        %1605 = vmatprep.subr.bf16.mxu0 0
        %1606 = vmatpush2.bf16.msra.mxu0 0
        %1607 = vmatprep.mubr.bf16.mxu0 0
        %1608 = vmatmul.mubr.bf16.gmra.mxu0 %v601
        %v1609 = vpop.f32.mrf.mxu0
        %v1610 = vadd.f32 0.0, %v1609
        %v1611 = vpop.f32.mrf.mxu0
        %v1612 = vadd.f32 0.0, %v1611
        %v1613 = vpop.f32.mrf.mxu0
        %v1614 = vpop.f32.mrf.mxu0
        %1615 = vdwg.mxu0
        %1616 = vmatprep.subr.bf16.mxu0 %v1239
        %1617 = vmatpush1.bf16.msra.mxu0 %v1238
        %1618 = vmatprep.subr.bf16.mxu0 %v1223
        %1619 = vmatpush1.bf16.msra.mxu0 %v1222
        %1620 = vmatprep.subr.bf16.mxu0 %v1207
        %1621 = vmatpush1.bf16.msra.mxu0 %v1206
        %1622 = vmatprep.subr.bf16.mxu0 %v1191
        %1623 = vmatpush1.bf16.msra.mxu0 %v1190
        %1624 = vmatprep.subr.bf16.mxu0 %v1175
        %1625 = vmatpush1.bf16.msra.mxu0 %v1174
        %1626 = vmatprep.subr.bf16.mxu0 %v1159
        %1627 = vmatpush1.bf16.msra.mxu0 %v1158
        %1628 = vmatprep.subr.bf16.mxu0 %v1143
        %1629 = vmatpush1.bf16.msra.mxu0 %v1142
        %1630 = vmatprep.subr.bf16.mxu0 %v1127
        %1631 = vmatpush1.bf16.msra.mxu0 %v1126
        %1632 = vmatprep.subr.bf16.mxu0 0
        %1633 = vmatpush2.bf16.msra.mxu0 0
        %1634 = vmatprep.subr.bf16.mxu0 0
        %1635 = vmatpush2.bf16.msra.mxu0 0
        %1636 = vmatprep.subr.bf16.mxu0 0
        %1637 = vmatpush2.bf16.msra.mxu0 0
        %1638 = vmatprep.subr.bf16.mxu0 0
        %1639 = vmatpush2.bf16.msra.mxu0 0
        %1640 = vmatprep.subr.bf16.mxu0 0
        %1641 = vmatpush2.bf16.msra.mxu0 0
        %1642 = vmatprep.subr.bf16.mxu0 0
        %1643 = vmatpush2.bf16.msra.mxu0 0
        %1644 = vmatprep.subr.bf16.mxu0 0
        %1645 = vmatpush2.bf16.msra.mxu0 0
        %1646 = vmatprep.subr.bf16.mxu0 0
        %1647 = vmatpush2.bf16.msra.mxu0 0
        %1648 = vmatprep.mubr.bf16.mxu0 0
        %1649 = vmatmul.mubr.bf16.gmra.mxu0 %v601
        %v1650 = vpop.f32.mrf.mxu0
        %v1651 = vadd.f32 0.0, %v1650
        %v1652 = vpop.f32.mrf.mxu0
        %v1653 = vadd.f32 0.0, %v1652
        %v1654 = vpop.f32.mrf.mxu0
        %v1655 = vpop.f32.mrf.mxu0
        %1656 = vdwg.mxu0
        %1657 = vmatprep.subr.bf16.mxu0 %v1241
        %1658 = vmatpush1.bf16.msra.mxu0 %v1240
        %1659 = vmatprep.subr.bf16.mxu0 %v1225
        %1660 = vmatpush1.bf16.msra.mxu0 %v1224
        %1661 = vmatprep.subr.bf16.mxu0 %v1209
        %1662 = vmatpush1.bf16.msra.mxu0 %v1208
        %1663 = vmatprep.subr.bf16.mxu0 %v1193
        %1664 = vmatpush1.bf16.msra.mxu0 %v1192
        %1665 = vmatprep.subr.bf16.mxu0 %v1177
        %1666 = vmatpush1.bf16.msra.mxu0 %v1176
        %1667 = vmatprep.subr.bf16.mxu0 %v1161
        %1668 = vmatpush1.bf16.msra.mxu0 %v1160
        %1669 = vmatprep.subr.bf16.mxu0 %v1145
        %1670 = vmatpush1.bf16.msra.mxu0 %v1144
        %1671 = vmatprep.subr.bf16.mxu0 %v1129
        %1672 = vmatpush1.bf16.msra.mxu0 %v1128
        %1673 = vmatprep.subr.bf16.mxu0 0
        %1674 = vmatpush2.bf16.msra.mxu0 0
        %1675 = vmatprep.subr.bf16.mxu0 0
        %1676 = vmatpush2.bf16.msra.mxu0 0
        %1677 = vmatprep.subr.bf16.mxu0 0
        %1678 = vmatpush2.bf16.msra.mxu0 0
        %1679 = vmatprep.subr.bf16.mxu0 0
        %1680 = vmatpush2.bf16.msra.mxu0 0
        %1681 = vmatprep.subr.bf16.mxu0 0
        %1682 = vmatpush2.bf16.msra.mxu0 0
        %1683 = vmatprep.subr.bf16.mxu0 0
        %1684 = vmatpush2.bf16.msra.mxu0 0
        %1685 = vmatprep.subr.bf16.mxu0 0
        %1686 = vmatpush2.bf16.msra.mxu0 0
        %1687 = vmatprep.subr.bf16.mxu0 0
        %1688 = vmatpush2.bf16.msra.mxu0 0
        %1689 = vmatprep.mubr.bf16.mxu0 0
        %1690 = vmatmul.mubr.bf16.gmra.mxu0 %v601
        %v1691 = vpop.f32.mrf.mxu0
        %v1692 = vadd.f32 0.0, %v1691
        %v1693 = vpop.f32.mrf.mxu0
        %v1694 = vadd.f32 0.0, %v1693
        %v1695 = vpop.f32.mrf.mxu0
        %v1696 = vpop.f32.mrf.mxu0
        %1697 = vdwg.mxu0
        %s1698 = smul.u32 %s26, 8
        %s1699 = sshra.s32 %s1698, 3
        %s1700 = sand.u32 %s1698, 7
        %s1701 = smul.u32 %s1699, 16
        %s1702 = smul.addr %s1701, 8
        %s1703 = scalar_lea.vmem [#allocation2], %s1702
        %1704 = vst [vmem:[%s1703] sm:$0xff] %v1405
        %1705 = vst [vmem:[%s1703 + $0x8] sm:$0xff] %v1407
        %1706 = vst [vmem:[%s1703 + $0x10] sm:$0xff] %v1446
        %1707 = vst [vmem:[%s1703 + $0x18] sm:$0xff] %v1448
        %1708 = vst [vmem:[%s1703 + $0x20] sm:$0xff] %v1487
        %1709 = vst [vmem:[%s1703 + $0x28] sm:$0xff] %v1489
        %1710 = vst [vmem:[%s1703 + $0x30] sm:$0xff] %v1528
        %1711 = vst [vmem:[%s1703 + $0x38] sm:$0xff] %v1530
        %1712 = vst [vmem:[%s1703 + $0x40] sm:$0xff] %v1569
        %1713 = vst [vmem:[%s1703 + $0x48] sm:$0xff] %v1571
        %1714 = vst [vmem:[%s1703 + $0x50] sm:$0xff] %v1610
        %1715 = vst [vmem:[%s1703 + $0x58] sm:$0xff] %v1612
        %1716 = vst [vmem:[%s1703 + $0x60] sm:$0xff] %v1651
        %1717 = vst [vmem:[%s1703 + $0x68] sm:$0xff] %v1653
        %1718 = vst [vmem:[%s1703 + $0x70] sm:$0xff] %v1692
        %1719 = vst [vmem:[%s1703 + $0x78] sm:$0xff] %v1694
        %v1720 = vld [vmem:[#allocation3] sm:$0xff]
        %v1721 = vld [vmem:[#allocation3 + $0x8] sm:$0xff]
        %v1722 = vrot.slane %v1405, 4
        %v1723 = vadd.f32 %v1405, %v1722
        %v1724 = vrot.slane %v1723, 2
        %v1725 = vadd.f32 %v1723, %v1724
        %v1726 = vrot.slane %v1725, 1
        %v1727 = vadd.f32 %v1725, %v1726
        %v1728 = vrot.slane %v1407, 4
        %v1729 = vadd.f32 %v1407, %v1728
        %v1730 = vrot.slane %v1729, 2
        %v1731 = vadd.f32 %v1729, %v1730
        %v1732 = vrot.slane %v1731, 1
        %v1733 = vadd.f32 %v1731, %v1732
        %v1734 = vrot.slane %v1446, 4
        %v1735 = vadd.f32 %v1446, %v1734
        %v1736 = vrot.slane %v1735, 2
        %v1737 = vadd.f32 %v1735, %v1736
        %v1738 = vrot.slane %v1737, 1
        %v1739 = vadd.f32 %v1737, %v1738
        %v1740 = vrot.slane %v1448, 4
        %v1741 = vadd.f32 %v1448, %v1740
        %v1742 = vrot.slane %v1741, 2
        %v1743 = vadd.f32 %v1741, %v1742
        %v1744 = vrot.slane %v1743, 1
        %v1745 = vadd.f32 %v1743, %v1744
        %v1746 = vrot.slane %v1487, 4
        %v1747 = vadd.f32 %v1487, %v1746
        %v1748 = vrot.slane %v1747, 2
        %v1749 = vadd.f32 %v1747, %v1748
        %v1750 = vrot.slane %v1749, 1
        %v1751 = vadd.f32 %v1749, %v1750
        %v1752 = vrot.slane %v1489, 4
        %v1753 = vadd.f32 %v1489, %v1752
        %v1754 = vrot.slane %v1753, 2
        %v1755 = vadd.f32 %v1753, %v1754
        %v1756 = vrot.slane %v1755, 1
        %v1757 = vadd.f32 %v1755, %v1756
        %v1758 = vrot.slane %v1528, 4
        %v1759 = vadd.f32 %v1528, %v1758
        %v1760 = vrot.slane %v1759, 2
        %v1761 = vadd.f32 %v1759, %v1760
        %v1762 = vrot.slane %v1761, 1
        %v1763 = vadd.f32 %v1761, %v1762
        %v1764 = vrot.slane %v1530, 4
        %v1765 = vadd.f32 %v1530, %v1764
        %v1766 = vrot.slane %v1765, 2
        %v1767 = vadd.f32 %v1765, %v1766
        %v1768 = vrot.slane %v1767, 1
        %v1769 = vadd.f32 %v1767, %v1768
        %v1770 = vrot.slane %v1569, 4
        %v1771 = vadd.f32 %v1569, %v1770
        %v1772 = vrot.slane %v1771, 2
        %v1773 = vadd.f32 %v1771, %v1772
        %v1774 = vrot.slane %v1773, 1
        %v1775 = vadd.f32 %v1773, %v1774
        %v1776 = vrot.slane %v1571, 4
        %v1777 = vadd.f32 %v1571, %v1776
        %v1778 = vrot.slane %v1777, 2
        %v1779 = vadd.f32 %v1777, %v1778
        %v1780 = vrot.slane %v1779, 1
        %v1781 = vadd.f32 %v1779, %v1780
        %v1782 = vrot.slane %v1610, 4
        %v1783 = vadd.f32 %v1610, %v1782
        %v1784 = vrot.slane %v1783, 2
        %v1785 = vadd.f32 %v1783, %v1784
        %v1786 = vrot.slane %v1785, 1
        %v1787 = vadd.f32 %v1785, %v1786
        %v1788 = vrot.slane %v1612, 4
        %v1789 = vadd.f32 %v1612, %v1788
        %v1790 = vrot.slane %v1789, 2
        %v1791 = vadd.f32 %v1789, %v1790
        %v1792 = vrot.slane %v1791, 1
        %v1793 = vadd.f32 %v1791, %v1792
        %v1794 = vrot.slane %v1651, 4
        %v1795 = vadd.f32 %v1651, %v1794
        %v1796 = vrot.slane %v1795, 2
        %v1797 = vadd.f32 %v1795, %v1796
        %v1798 = vrot.slane %v1797, 1
        %v1799 = vadd.f32 %v1797, %v1798
        %v1800 = vrot.slane %v1653, 4
        %v1801 = vadd.f32 %v1653, %v1800
        %v1802 = vrot.slane %v1801, 2
        %v1803 = vadd.f32 %v1801, %v1802
        %v1804 = vrot.slane %v1803, 1
        %v1805 = vadd.f32 %v1803, %v1804
        %v1806 = vrot.slane %v1692, 4
        %v1807 = vadd.f32 %v1692, %v1806
        %v1808 = vrot.slane %v1807, 2
        %v1809 = vadd.f32 %v1807, %v1808
        %v1810 = vrot.slane %v1809, 1
        %v1811 = vadd.f32 %v1809, %v1810
        %v1812 = vrot.slane %v1694, 4
        %v1813 = vadd.f32 %v1694, %v1812
        %v1814 = vrot.slane %v1813, 2
        %v1815 = vadd.f32 %v1813, %v1814
        %v1816 = vrot.slane %v1815, 1
        %v1817 = vadd.f32 %v1815, %v1816
        %v1834 = vcombine.low %v1727, %v1733
        %v1835 = vcombine.low %v1739, %v1745
        %v1836 = vcombine.low %v1751, %v1757
        %v1837 = vcombine.low %v1763, %v1769
        %v1839 = vunpack.c.l.s4 1966171168
        %v1840 = vunpack.c.0.s8 %v1839
        %v1841 = vlaneseq
        %v1842 = vshrl.u32 %v1841, 7
        %v1843 = vsub.s32 %v1840, %v1842
        %v1844 = vrot.slane %v1834, %v1843
        %v1846 = vunpack.c.l.s4 1966171168
        %v1847 = vunpack.c.0.s8 %v1846
        %v1848 = vlaneseq
        %v1849 = vshrl.u32 %v1848, 7
        %v1850 = vsub.s32 %v1847, %v1849
        %v1851 = vrot.slane %v1835, %v1850
        %v1853 = vunpack.c.l.s4 1966171168
        %v1854 = vunpack.c.0.s8 %v1853
        %v1855 = vlaneseq
        %v1856 = vshrl.u32 %v1855, 7
        %v1857 = vsub.s32 %v1854, %v1856
        %v1858 = vrot.slane %v1836, %v1857
        %v1860 = vunpack.c.l.s4 1966171168
        %v1861 = vunpack.c.0.s8 %v1860
        %v1862 = vlaneseq
        %v1863 = vshrl.u32 %v1862, 7
        %v1864 = vsub.s32 %v1861, %v1863
        %v1865 = vrot.slane %v1837, %v1864
        %v1866 = vcombine.low %v1844, %v1851
        %v1867 = vcombine.low %v1858, %v1865
        %v1869 = vunpack.c.l.s4 1966171168
        %v1870 = vunpack.c.0.s8 %v1869
        %v1871 = vlaneseq
        %v1872 = vshrl.u32 %v1871, 7
        %v1873 = vsub.s32 %v1870, %v1872
        %v1874 = vrot.slane %v1866, %v1873
        %v1876 = vunpack.c.l.s4 1966171168
        %v1877 = vunpack.c.0.s8 %v1876
        %v1878 = vlaneseq
        %v1879 = vshrl.u32 %v1878, 7
        %v1880 = vsub.s32 %v1877, %v1879
        %v1881 = vrot.slane %v1867, %v1880
        %v1882 = vcombine.low %v1874, %v1881
        %v1883 = vcombine.low %v1775, %v1781
        %v1884 = vcombine.low %v1787, %v1793
        %v1885 = vcombine.low %v1799, %v1805
        %v1886 = vcombine.low %v1811, %v1817
        %v1888 = vunpack.c.l.s4 1966171168
        %v1889 = vunpack.c.0.s8 %v1888
        %v1890 = vlaneseq
        %v1891 = vshrl.u32 %v1890, 7
        %v1892 = vsub.s32 %v1889, %v1891
        %v1893 = vrot.slane %v1883, %v1892
        %v1895 = vunpack.c.l.s4 1966171168
        %v1896 = vunpack.c.0.s8 %v1895
        %v1897 = vlaneseq
        %v1898 = vshrl.u32 %v1897, 7
        %v1899 = vsub.s32 %v1896, %v1898
        %v1900 = vrot.slane %v1884, %v1899
        %v1902 = vunpack.c.l.s4 1966171168
        %v1903 = vunpack.c.0.s8 %v1902
        %v1904 = vlaneseq
        %v1905 = vshrl.u32 %v1904, 7
        %v1906 = vsub.s32 %v1903, %v1905
        %v1907 = vrot.slane %v1885, %v1906
        %v1909 = vunpack.c.l.s4 1966171168
        %v1910 = vunpack.c.0.s8 %v1909
        %v1911 = vlaneseq
        %v1912 = vshrl.u32 %v1911, 7
        %v1913 = vsub.s32 %v1910, %v1912
        %v1914 = vrot.slane %v1886, %v1913
        %v1915 = vcombine.low %v1893, %v1900
        %v1916 = vcombine.low %v1907, %v1914
        %v1918 = vunpack.c.l.s4 1966171168
        %v1919 = vunpack.c.0.s8 %v1918
        %v1920 = vlaneseq
        %v1921 = vshrl.u32 %v1920, 7
        %v1922 = vsub.s32 %v1919, %v1921
        %v1923 = vrot.slane %v1915, %v1922
        %v1925 = vunpack.c.l.s4 1966171168
        %v1926 = vunpack.c.0.s8 %v1925
        %v1927 = vlaneseq
        %v1928 = vshrl.u32 %v1927, 7
        %v1929 = vsub.s32 %v1926, %v1928
        %v1930 = vrot.slane %v1916, %v1929
        %v1931 = vcombine.low %v1923, %v1930
        %v1934 = vadd.f32 %v1720, %v1882
        %v1935 = vadd.f32 %v1721, %v1931
        %1936 = vst [vmem:[#allocation3] sm:$0xff] %v1934
        %1937 = vst [vmem:[#allocation3 + $0x8] sm:$0xff] %v1935
        %v1938 = vld [vmem:[#allocation4] sm:$0xff]
        %v1939 = vld [vmem:[#allocation4 + $0x8] sm:$0xff]
        %v1940 = vmul.f32 %v1405, %v1405
        %v1941 = vmul.f32 %v1407, %v1407
        %v1942 = vmul.f32 %v1446, %v1446
        %v1943 = vmul.f32 %v1448, %v1448
        %v1944 = vmul.f32 %v1487, %v1487
        %v1945 = vmul.f32 %v1489, %v1489
        %v1946 = vmul.f32 %v1528, %v1528
        %v1947 = vmul.f32 %v1530, %v1530
        %v1948 = vmul.f32 %v1569, %v1569
        %v1949 = vmul.f32 %v1571, %v1571
        %v1950 = vmul.f32 %v1610, %v1610
        %v1951 = vmul.f32 %v1612, %v1612
        %v1952 = vmul.f32 %v1651, %v1651
        %v1953 = vmul.f32 %v1653, %v1653
        %v1954 = vmul.f32 %v1692, %v1692
        %v1955 = vmul.f32 %v1694, %v1694
        %v1956 = vrot.slane %v1940, 4
        %v1957 = vadd.f32 %v1940, %v1956
        %v1958 = vrot.slane %v1957, 2
        %v1959 = vadd.f32 %v1957, %v1958
        %v1960 = vrot.slane %v1959, 1
        %v1961 = vadd.f32 %v1959, %v1960
        %v1962 = vrot.slane %v1941, 4
        %v1963 = vadd.f32 %v1941, %v1962
        %v1964 = vrot.slane %v1963, 2
        %v1965 = vadd.f32 %v1963, %v1964
        %v1966 = vrot.slane %v1965, 1
        %v1967 = vadd.f32 %v1965, %v1966
        %v1968 = vrot.slane %v1942, 4
        %v1969 = vadd.f32 %v1942, %v1968
        %v1970 = vrot.slane %v1969, 2
        %v1971 = vadd.f32 %v1969, %v1970
        %v1972 = vrot.slane %v1971, 1
        %v1973 = vadd.f32 %v1971, %v1972
        %v1974 = vrot.slane %v1943, 4
        %v1975 = vadd.f32 %v1943, %v1974
        %v1976 = vrot.slane %v1975, 2
        %v1977 = vadd.f32 %v1975, %v1976
        %v1978 = vrot.slane %v1977, 1
        %v1979 = vadd.f32 %v1977, %v1978
        %v1980 = vrot.slane %v1944, 4
        %v1981 = vadd.f32 %v1944, %v1980
        %v1982 = vrot.slane %v1981, 2
        %v1983 = vadd.f32 %v1981, %v1982
        %v1984 = vrot.slane %v1983, 1
        %v1985 = vadd.f32 %v1983, %v1984
        %v1986 = vrot.slane %v1945, 4
        %v1987 = vadd.f32 %v1945, %v1986
        %v1988 = vrot.slane %v1987, 2
        %v1989 = vadd.f32 %v1987, %v1988
        %v1990 = vrot.slane %v1989, 1
        %v1991 = vadd.f32 %v1989, %v1990
        %v1992 = vrot.slane %v1946, 4
        %v1993 = vadd.f32 %v1946, %v1992
        %v1994 = vrot.slane %v1993, 2
        %v1995 = vadd.f32 %v1993, %v1994
        %v1996 = vrot.slane %v1995, 1
        %v1997 = vadd.f32 %v1995, %v1996
        %v1998 = vrot.slane %v1947, 4
        %v1999 = vadd.f32 %v1947, %v1998
        %v2000 = vrot.slane %v1999, 2
        %v2001 = vadd.f32 %v1999, %v2000
        %v2002 = vrot.slane %v2001, 1
        %v2003 = vadd.f32 %v2001, %v2002
        %v2004 = vrot.slane %v1948, 4
        %v2005 = vadd.f32 %v1948, %v2004
        %v2006 = vrot.slane %v2005, 2
        %v2007 = vadd.f32 %v2005, %v2006
        %v2008 = vrot.slane %v2007, 1
        %v2009 = vadd.f32 %v2007, %v2008
        %v2010 = vrot.slane %v1949, 4
        %v2011 = vadd.f32 %v1949, %v2010
        %v2012 = vrot.slane %v2011, 2
        %v2013 = vadd.f32 %v2011, %v2012
        %v2014 = vrot.slane %v2013, 1
        %v2015 = vadd.f32 %v2013, %v2014
        %v2016 = vrot.slane %v1950, 4
        %v2017 = vadd.f32 %v1950, %v2016
        %v2018 = vrot.slane %v2017, 2
        %v2019 = vadd.f32 %v2017, %v2018
        %v2020 = vrot.slane %v2019, 1
        %v2021 = vadd.f32 %v2019, %v2020
        %v2022 = vrot.slane %v1951, 4
        %v2023 = vadd.f32 %v1951, %v2022
        %v2024 = vrot.slane %v2023, 2
        %v2025 = vadd.f32 %v2023, %v2024
        %v2026 = vrot.slane %v2025, 1
        %v2027 = vadd.f32 %v2025, %v2026
        %v2028 = vrot.slane %v1952, 4
        %v2029 = vadd.f32 %v1952, %v2028
        %v2030 = vrot.slane %v2029, 2
        %v2031 = vadd.f32 %v2029, %v2030
        %v2032 = vrot.slane %v2031, 1
        %v2033 = vadd.f32 %v2031, %v2032
        %v2034 = vrot.slane %v1953, 4
        %v2035 = vadd.f32 %v1953, %v2034
        %v2036 = vrot.slane %v2035, 2
        %v2037 = vadd.f32 %v2035, %v2036
        %v2038 = vrot.slane %v2037, 1
        %v2039 = vadd.f32 %v2037, %v2038
        %v2040 = vrot.slane %v1954, 4
        %v2041 = vadd.f32 %v1954, %v2040
        %v2042 = vrot.slane %v2041, 2
        %v2043 = vadd.f32 %v2041, %v2042
        %v2044 = vrot.slane %v2043, 1
        %v2045 = vadd.f32 %v2043, %v2044
        %v2046 = vrot.slane %v1955, 4
        %v2047 = vadd.f32 %v1955, %v2046
        %v2048 = vrot.slane %v2047, 2
        %v2049 = vadd.f32 %v2047, %v2048
        %v2050 = vrot.slane %v2049, 1
        %v2051 = vadd.f32 %v2049, %v2050
        %v2068 = vcombine.low %v1961, %v1967
        %v2069 = vcombine.low %v1973, %v1979
        %v2070 = vcombine.low %v1985, %v1991
        %v2071 = vcombine.low %v1997, %v2003
        %v2073 = vunpack.c.l.s4 1966171168
        %v2074 = vunpack.c.0.s8 %v2073
        %v2075 = vlaneseq
        %v2076 = vshrl.u32 %v2075, 7
        %v2077 = vsub.s32 %v2074, %v2076
        %v2078 = vrot.slane %v2068, %v2077
        %v2080 = vunpack.c.l.s4 1966171168
        %v2081 = vunpack.c.0.s8 %v2080
        %v2082 = vlaneseq
        %v2083 = vshrl.u32 %v2082, 7
        %v2084 = vsub.s32 %v2081, %v2083
        %v2085 = vrot.slane %v2069, %v2084
        %v2087 = vunpack.c.l.s4 1966171168
        %v2088 = vunpack.c.0.s8 %v2087
        %v2089 = vlaneseq
        %v2090 = vshrl.u32 %v2089, 7
        %v2091 = vsub.s32 %v2088, %v2090
        %v2092 = vrot.slane %v2070, %v2091
        %v2094 = vunpack.c.l.s4 1966171168
        %v2095 = vunpack.c.0.s8 %v2094
        %v2096 = vlaneseq
        %v2097 = vshrl.u32 %v2096, 7
        %v2098 = vsub.s32 %v2095, %v2097
        %v2099 = vrot.slane %v2071, %v2098
        %v2100 = vcombine.low %v2078, %v2085
        %v2101 = vcombine.low %v2092, %v2099
        %v2103 = vunpack.c.l.s4 1966171168
        %v2104 = vunpack.c.0.s8 %v2103
        %v2105 = vlaneseq
        %v2106 = vshrl.u32 %v2105, 7
        %v2107 = vsub.s32 %v2104, %v2106
        %v2108 = vrot.slane %v2100, %v2107
        %v2110 = vunpack.c.l.s4 1966171168
        %v2111 = vunpack.c.0.s8 %v2110
        %v2112 = vlaneseq
        %v2113 = vshrl.u32 %v2112, 7
        %v2114 = vsub.s32 %v2111, %v2113
        %v2115 = vrot.slane %v2101, %v2114
        %v2116 = vcombine.low %v2108, %v2115
        %v2117 = vcombine.low %v2009, %v2015
        %v2118 = vcombine.low %v2021, %v2027
        %v2119 = vcombine.low %v2033, %v2039
        %v2120 = vcombine.low %v2045, %v2051
        %v2122 = vunpack.c.l.s4 1966171168
        %v2123 = vunpack.c.0.s8 %v2122
        %v2124 = vlaneseq
        %v2125 = vshrl.u32 %v2124, 7
        %v2126 = vsub.s32 %v2123, %v2125
        %v2127 = vrot.slane %v2117, %v2126
        %v2129 = vunpack.c.l.s4 1966171168
        %v2130 = vunpack.c.0.s8 %v2129
        %v2131 = vlaneseq
        %v2132 = vshrl.u32 %v2131, 7
        %v2133 = vsub.s32 %v2130, %v2132
        %v2134 = vrot.slane %v2118, %v2133
        %v2136 = vunpack.c.l.s4 1966171168
        %v2137 = vunpack.c.0.s8 %v2136
        %v2138 = vlaneseq
        %v2139 = vshrl.u32 %v2138, 7
        %v2140 = vsub.s32 %v2137, %v2139
        %v2141 = vrot.slane %v2119, %v2140
        %v2143 = vunpack.c.l.s4 1966171168
        %v2144 = vunpack.c.0.s8 %v2143
        %v2145 = vlaneseq
        %v2146 = vshrl.u32 %v2145, 7
        %v2147 = vsub.s32 %v2144, %v2146
        %v2148 = vrot.slane %v2120, %v2147
        %v2149 = vcombine.low %v2127, %v2134
        %v2150 = vcombine.low %v2141, %v2148
        %v2152 = vunpack.c.l.s4 1966171168
        %v2153 = vunpack.c.0.s8 %v2152
        %v2154 = vlaneseq
        %v2155 = vshrl.u32 %v2154, 7
        %v2156 = vsub.s32 %v2153, %v2155
        %v2157 = vrot.slane %v2149, %v2156
        %v2159 = vunpack.c.l.s4 1966171168
        %v2160 = vunpack.c.0.s8 %v2159
        %v2161 = vlaneseq
        %v2162 = vshrl.u32 %v2161, 7
        %v2163 = vsub.s32 %v2160, %v2162
        %v2164 = vrot.slane %v2150, %v2163
        %v2165 = vcombine.low %v2157, %v2164
        %v2168 = vadd.f32 %v1938, %v2116
        %v2169 = vadd.f32 %v1939, %v2165
        %2170 = vst [vmem:[#allocation4] sm:$0xff] %v2168
        %2171 = vst [vmem:[#allocation4 + $0x8] sm:$0xff] %v2169
        %p2172 = scmp.eq.s32.totalorder %s26, 1
        // Predicated region
        $region81: #{tpu_custom_call.1} parent=51 // pred_check
          %p2173 = pneg %p2172
        $region82: #{tpu_custom_call.1} parent=51 // pred_check_branch
          %2175 = sbr.rel (%p2173) target = $region84
        $region83: #{tpu_custom_call.1} parent=51 // pred_region
          %v2176 = vld [vmem:[#allocation3] sm:$0xff]
          %v2177 = vld [vmem:[#allocation3 + $0x8] sm:$0xff]
          %v2178 = vmul.f32 %v2176, 0.0625
          %v2179 = vmul.f32 %v2177, 0.0625
          %v2180 = vld [vmem:[#allocation4] sm:$0xff]
          %v2181 = vld [vmem:[#allocation4 + $0x8] sm:$0xff]
          %v2182 = vmul.f32 %v2180, 0.0625
          %v2183 = vmul.f32 %v2181, 0.0625
          %v2184 = vmul.f32 %v2178, %v2178
          %v2185 = vmul.f32 %v2179, %v2179
          %v2186 = vsub.f32 %v2182, %v2184
          %v2187 = vsub.f32 %v2183, %v2185
          %v2188 = vadd.f32 %v2186, 1e-05
          %v2189 = vadd.f32 %v2187, 1e-05
          %v2190 = vrsqrt.pop %v2188
          %v2191 = vrsqrt.pop %v2189
          %v2192 = vld [vmem:[#allocation11] sm:$0xff]
          %v2193 = vld [vmem:[#allocation11 + $0x8] sm:$0xff]
          %v2194 = vmul.f32 %v2190, %v2192
          %v2195 = vmul.f32 %v2191, %v2193
          %v2196 = vld [vmem:[#allocation2] sm:$0xff]
          %v2197 = vld [vmem:[#allocation2 + $0x8] sm:$0xff]
          %v2198 = vld [vmem:[#allocation2 + $0x10] sm:$0xff]
          %v2199 = vld [vmem:[#allocation2 + $0x18] sm:$0xff]
          %v2200 = vld [vmem:[#allocation2 + $0x20] sm:$0xff]
          %v2201 = vld [vmem:[#allocation2 + $0x28] sm:$0xff]
          %v2202 = vld [vmem:[#allocation2 + $0x30] sm:$0xff]
          %v2203 = vld [vmem:[#allocation2 + $0x38] sm:$0xff]
          %v2204 = vld [vmem:[#allocation2 + $0x40] sm:$0xff]
          %v2205 = vld [vmem:[#allocation2 + $0x48] sm:$0xff]
          %v2206 = vld [vmem:[#allocation2 + $0x50] sm:$0xff]
          %v2207 = vld [vmem:[#allocation2 + $0x58] sm:$0xff]
          %v2208 = vld [vmem:[#allocation2 + $0x60] sm:$0xff]
          %v2209 = vld [vmem:[#allocation2 + $0x68] sm:$0xff]
          %v2210 = vld [vmem:[#allocation2 + $0x70] sm:$0xff]
          %v2211 = vld [vmem:[#allocation2 + $0x78] sm:$0xff]
          %v2212 = vld [vmem:[#allocation2 + $0x80] sm:$0xff]
          %v2213 = vld [vmem:[#allocation2 + $0x88] sm:$0xff]
          %v2214 = vld [vmem:[#allocation2 + $0x90] sm:$0xff]
          %v2215 = vld [vmem:[#allocation2 + $0x98] sm:$0xff]
          %v2216 = vld [vmem:[#allocation2 + $0xa0] sm:$0xff]
          %v2217 = vld [vmem:[#allocation2 + $0xa8] sm:$0xff]
          %v2218 = vld [vmem:[#allocation2 + $0xb0] sm:$0xff]
          %v2219 = vld [vmem:[#allocation2 + $0xb8] sm:$0xff]
          %v2220 = vld [vmem:[#allocation2 + $0xc0] sm:$0xff]
          %v2221 = vld [vmem:[#allocation2 + $0xc8] sm:$0xff]
          %v2222 = vld [vmem:[#allocation2 + $0xd0] sm:$0xff]
          %v2223 = vld [vmem:[#allocation2 + $0xd8] sm:$0xff]
          %v2224 = vld [vmem:[#allocation2 + $0xe0] sm:$0xff]
          %v2225 = vld [vmem:[#allocation2 + $0xe8] sm:$0xff]
          %v2226 = vld [vmem:[#allocation2 + $0xf0] sm:$0xff]
          %v2227 = vld [vmem:[#allocation2 + $0xf8] sm:$0xff]
          %v2230 = vlaneseq
          %v2231 = vshrl.u32 %v2230, 7
          %v2232 = vsub.s32 0, %v2231
          %v2233 = vrot.slane %v2178, %v2232
          %v2234 = vlaneseq
          %v2235 = vshrl.u32 %v2234, 7
          %v2236 = vsub.s32 1, %v2235
          %v2237 = vrot.slane %v2178, %v2236
          %v2238 = vlaneseq
          %v2239 = vshrl.u32 %v2238, 7
          %v2240 = vsub.s32 2, %v2239
          %v2241 = vrot.slane %v2178, %v2240
          %v2242 = vlaneseq
          %v2243 = vshrl.u32 %v2242, 7
          %v2244 = vsub.s32 3, %v2243
          %v2245 = vrot.slane %v2178, %v2244
          %v2246 = vlaneseq
          %v2247 = vshrl.u32 %v2246, 7
          %v2248 = vsub.s32 4, %v2247
          %v2249 = vrot.slane %v2178, %v2248
          %v2250 = vlaneseq
          %v2251 = vshrl.u32 %v2250, 7
          %v2252 = vsub.s32 5, %v2251
          %v2253 = vrot.slane %v2178, %v2252
          %v2254 = vlaneseq
          %v2255 = vshrl.u32 %v2254, 7
          %v2256 = vsub.s32 6, %v2255
          %v2257 = vrot.slane %v2178, %v2256
          %v2258 = vlaneseq
          %v2259 = vshrl.u32 %v2258, 7
          %v2260 = vsub.s32 7, %v2259
          %v2261 = vrot.slane %v2178, %v2260
          %v2262 = vlaneseq
          %v2263 = vshrl.u32 %v2262, 7
          %v2264 = vsub.s32 0, %v2263
          %v2265 = vrot.slane %v2179, %v2264
          %v2266 = vlaneseq
          %v2267 = vshrl.u32 %v2266, 7
          %v2268 = vsub.s32 1, %v2267
          %v2269 = vrot.slane %v2179, %v2268
          %v2270 = vlaneseq
          %v2271 = vshrl.u32 %v2270, 7
          %v2272 = vsub.s32 2, %v2271
          %v2273 = vrot.slane %v2179, %v2272
          %v2274 = vlaneseq
          %v2275 = vshrl.u32 %v2274, 7
          %v2276 = vsub.s32 3, %v2275
          %v2277 = vrot.slane %v2179, %v2276
          %v2278 = vlaneseq
          %v2279 = vshrl.u32 %v2278, 7
          %v2280 = vsub.s32 4, %v2279
          %v2281 = vrot.slane %v2179, %v2280
          %v2282 = vlaneseq
          %v2283 = vshrl.u32 %v2282, 7
          %v2284 = vsub.s32 5, %v2283
          %v2285 = vrot.slane %v2179, %v2284
          %v2286 = vlaneseq
          %v2287 = vshrl.u32 %v2286, 7
          %v2288 = vsub.s32 6, %v2287
          %v2289 = vrot.slane %v2179, %v2288
          %v2290 = vlaneseq
          %v2291 = vshrl.u32 %v2290, 7
          %v2292 = vsub.s32 7, %v2291
          %v2293 = vrot.slane %v2179, %v2292
          %v2310 = vsub.f32 %v2196, %v2233
          %v2311 = vsub.f32 %v2197, %v2237
          %v2312 = vsub.f32 %v2198, %v2241
          %v2313 = vsub.f32 %v2199, %v2245
          %v2314 = vsub.f32 %v2200, %v2249
          %v2315 = vsub.f32 %v2201, %v2253
          %v2316 = vsub.f32 %v2202, %v2257
          %v2317 = vsub.f32 %v2203, %v2261
          %v2318 = vsub.f32 %v2204, %v2265
          %v2319 = vsub.f32 %v2205, %v2269
          %v2320 = vsub.f32 %v2206, %v2273
          %v2321 = vsub.f32 %v2207, %v2277
          %v2322 = vsub.f32 %v2208, %v2281
          %v2323 = vsub.f32 %v2209, %v2285
          %v2324 = vsub.f32 %v2210, %v2289
          %v2325 = vsub.f32 %v2211, %v2293
          %v2326 = vsub.f32 %v2212, %v2233
          %v2327 = vsub.f32 %v2213, %v2237
          %v2328 = vsub.f32 %v2214, %v2241
          %v2329 = vsub.f32 %v2215, %v2245
          %v2330 = vsub.f32 %v2216, %v2249
          %v2331 = vsub.f32 %v2217, %v2253
          %v2332 = vsub.f32 %v2218, %v2257
          %v2333 = vsub.f32 %v2219, %v2261
          %v2334 = vsub.f32 %v2220, %v2265
          %v2335 = vsub.f32 %v2221, %v2269
          %v2336 = vsub.f32 %v2222, %v2273
          %v2337 = vsub.f32 %v2223, %v2277
          %v2338 = vsub.f32 %v2224, %v2281
          %v2339 = vsub.f32 %v2225, %v2285
          %v2340 = vsub.f32 %v2226, %v2289
          %v2341 = vsub.f32 %v2227, %v2293
          %v2344 = vlaneseq
          %v2345 = vshrl.u32 %v2344, 7
          %v2346 = vsub.s32 0, %v2345
          %v2347 = vrot.slane %v2194, %v2346
          %v2348 = vlaneseq
          %v2349 = vshrl.u32 %v2348, 7
          %v2350 = vsub.s32 1, %v2349
          %v2351 = vrot.slane %v2194, %v2350
          %v2352 = vlaneseq
          %v2353 = vshrl.u32 %v2352, 7
          %v2354 = vsub.s32 2, %v2353
          %v2355 = vrot.slane %v2194, %v2354
          %v2356 = vlaneseq
          %v2357 = vshrl.u32 %v2356, 7
          %v2358 = vsub.s32 3, %v2357
          %v2359 = vrot.slane %v2194, %v2358
          %v2360 = vlaneseq
          %v2361 = vshrl.u32 %v2360, 7
          %v2362 = vsub.s32 4, %v2361
          %v2363 = vrot.slane %v2194, %v2362
          %v2364 = vlaneseq
          %v2365 = vshrl.u32 %v2364, 7
          %v2366 = vsub.s32 5, %v2365
          %v2367 = vrot.slane %v2194, %v2366
          %v2368 = vlaneseq
          %v2369 = vshrl.u32 %v2368, 7
          %v2370 = vsub.s32 6, %v2369
          %v2371 = vrot.slane %v2194, %v2370
          %v2372 = vlaneseq
          %v2373 = vshrl.u32 %v2372, 7
          %v2374 = vsub.s32 7, %v2373
          %v2375 = vrot.slane %v2194, %v2374
          %v2376 = vlaneseq
          %v2377 = vshrl.u32 %v2376, 7
          %v2378 = vsub.s32 0, %v2377
          %v2379 = vrot.slane %v2195, %v2378
          %v2380 = vlaneseq
          %v2381 = vshrl.u32 %v2380, 7
          %v2382 = vsub.s32 1, %v2381
          %v2383 = vrot.slane %v2195, %v2382
          %v2384 = vlaneseq
          %v2385 = vshrl.u32 %v2384, 7
          %v2386 = vsub.s32 2, %v2385
          %v2387 = vrot.slane %v2195, %v2386
          %v2388 = vlaneseq
          %v2389 = vshrl.u32 %v2388, 7
          %v2390 = vsub.s32 3, %v2389
          %v2391 = vrot.slane %v2195, %v2390
          %v2392 = vlaneseq
          %v2393 = vshrl.u32 %v2392, 7
          %v2394 = vsub.s32 4, %v2393
          %v2395 = vrot.slane %v2195, %v2394
          %v2396 = vlaneseq
          %v2397 = vshrl.u32 %v2396, 7
          %v2398 = vsub.s32 5, %v2397
          %v2399 = vrot.slane %v2195, %v2398
          %v2400 = vlaneseq
          %v2401 = vshrl.u32 %v2400, 7
          %v2402 = vsub.s32 6, %v2401
          %v2403 = vrot.slane %v2195, %v2402
          %v2404 = vlaneseq
          %v2405 = vshrl.u32 %v2404, 7
          %v2406 = vsub.s32 7, %v2405
          %v2407 = vrot.slane %v2195, %v2406
          %v2424 = vmul.f32 %v2310, %v2347
          %v2425 = vmul.f32 %v2311, %v2351
          %v2426 = vmul.f32 %v2312, %v2355
          %v2427 = vmul.f32 %v2313, %v2359
          %v2428 = vmul.f32 %v2314, %v2363
          %v2429 = vmul.f32 %v2315, %v2367
          %v2430 = vmul.f32 %v2316, %v2371
          %v2431 = vmul.f32 %v2317, %v2375
          %v2432 = vmul.f32 %v2318, %v2379
          %v2433 = vmul.f32 %v2319, %v2383
          %v2434 = vmul.f32 %v2320, %v2387
          %v2435 = vmul.f32 %v2321, %v2391
          %v2436 = vmul.f32 %v2322, %v2395
          %v2437 = vmul.f32 %v2323, %v2399
          %v2438 = vmul.f32 %v2324, %v2403
          %v2439 = vmul.f32 %v2325, %v2407
          %v2440 = vmul.f32 %v2326, %v2347
          %v2441 = vmul.f32 %v2327, %v2351
          %v2442 = vmul.f32 %v2328, %v2355
          %v2443 = vmul.f32 %v2329, %v2359
          %v2444 = vmul.f32 %v2330, %v2363
          %v2445 = vmul.f32 %v2331, %v2367
          %v2446 = vmul.f32 %v2332, %v2371
          %v2447 = vmul.f32 %v2333, %v2375
          %v2448 = vmul.f32 %v2334, %v2379
          %v2449 = vmul.f32 %v2335, %v2383
          %v2450 = vmul.f32 %v2336, %v2387
          %v2451 = vmul.f32 %v2337, %v2391
          %v2452 = vmul.f32 %v2338, %v2395
          %v2453 = vmul.f32 %v2339, %v2399
          %v2454 = vmul.f32 %v2340, %v2403
          %v2455 = vmul.f32 %v2341, %v2407
          %v2456 = vld [vmem:[#allocation13] sm:$0xff]
          %v2457 = vld [vmem:[#allocation13 + $0x8] sm:$0xff]
          %v2460 = vlaneseq
          %v2461 = vshrl.u32 %v2460, 7
          %v2462 = vsub.s32 0, %v2461
          %v2463 = vrot.slane %v2456, %v2462
          %v2464 = vlaneseq
          %v2465 = vshrl.u32 %v2464, 7
          %v2466 = vsub.s32 1, %v2465
          %v2467 = vrot.slane %v2456, %v2466
          %v2468 = vlaneseq
          %v2469 = vshrl.u32 %v2468, 7
          %v2470 = vsub.s32 2, %v2469
          %v2471 = vrot.slane %v2456, %v2470
          %v2472 = vlaneseq
          %v2473 = vshrl.u32 %v2472, 7
          %v2474 = vsub.s32 3, %v2473
          %v2475 = vrot.slane %v2456, %v2474
          %v2476 = vlaneseq
          %v2477 = vshrl.u32 %v2476, 7
          %v2478 = vsub.s32 4, %v2477
          %v2479 = vrot.slane %v2456, %v2478
          %v2480 = vlaneseq
          %v2481 = vshrl.u32 %v2480, 7
          %v2482 = vsub.s32 5, %v2481
          %v2483 = vrot.slane %v2456, %v2482
          %v2484 = vlaneseq
          %v2485 = vshrl.u32 %v2484, 7
          %v2486 = vsub.s32 6, %v2485
          %v2487 = vrot.slane %v2456, %v2486
          %v2488 = vlaneseq
          %v2489 = vshrl.u32 %v2488, 7
          %v2490 = vsub.s32 7, %v2489
          %v2491 = vrot.slane %v2456, %v2490
          %v2492 = vlaneseq
          %v2493 = vshrl.u32 %v2492, 7
          %v2494 = vsub.s32 0, %v2493
          %v2495 = vrot.slane %v2457, %v2494
          %v2496 = vlaneseq
          %v2497 = vshrl.u32 %v2496, 7
          %v2498 = vsub.s32 1, %v2497
          %v2499 = vrot.slane %v2457, %v2498
          %v2500 = vlaneseq
          %v2501 = vshrl.u32 %v2500, 7
          %v2502 = vsub.s32 2, %v2501
          %v2503 = vrot.slane %v2457, %v2502
          %v2504 = vlaneseq
          %v2505 = vshrl.u32 %v2504, 7
          %v2506 = vsub.s32 3, %v2505
          %v2507 = vrot.slane %v2457, %v2506
          %v2508 = vlaneseq
          %v2509 = vshrl.u32 %v2508, 7
          %v2510 = vsub.s32 4, %v2509
          %v2511 = vrot.slane %v2457, %v2510
          %v2512 = vlaneseq
          %v2513 = vshrl.u32 %v2512, 7
          %v2514 = vsub.s32 5, %v2513
          %v2515 = vrot.slane %v2457, %v2514
          %v2516 = vlaneseq
          %v2517 = vshrl.u32 %v2516, 7
          %v2518 = vsub.s32 6, %v2517
          %v2519 = vrot.slane %v2457, %v2518
          %v2520 = vlaneseq
          %v2521 = vshrl.u32 %v2520, 7
          %v2522 = vsub.s32 7, %v2521
          %v2523 = vrot.slane %v2457, %v2522
          %v2540 = vadd.f32 %v2424, %v2463
          %v2541 = vadd.f32 %v2425, %v2467
          %v2542 = vadd.f32 %v2426, %v2471
          %v2543 = vadd.f32 %v2427, %v2475
          %v2544 = vadd.f32 %v2428, %v2479
          %v2545 = vadd.f32 %v2429, %v2483
          %v2546 = vadd.f32 %v2430, %v2487
          %v2547 = vadd.f32 %v2431, %v2491
          %v2548 = vadd.f32 %v2432, %v2495
          %v2549 = vadd.f32 %v2433, %v2499
          %v2550 = vadd.f32 %v2434, %v2503
          %v2551 = vadd.f32 %v2435, %v2507
          %v2552 = vadd.f32 %v2436, %v2511
          %v2553 = vadd.f32 %v2437, %v2515
          %v2554 = vadd.f32 %v2438, %v2519
          %v2555 = vadd.f32 %v2439, %v2523
          %v2556 = vadd.f32 %v2440, %v2463
          %v2557 = vadd.f32 %v2441, %v2467
          %v2558 = vadd.f32 %v2442, %v2471
          %v2559 = vadd.f32 %v2443, %v2475
          %v2560 = vadd.f32 %v2444, %v2479
          %v2561 = vadd.f32 %v2445, %v2483
          %v2562 = vadd.f32 %v2446, %v2487
          %v2563 = vadd.f32 %v2447, %v2491
          %v2564 = vadd.f32 %v2448, %v2495
          %v2565 = vadd.f32 %v2449, %v2499
          %v2566 = vadd.f32 %v2450, %v2503
          %v2567 = vadd.f32 %v2451, %v2507
          %v2568 = vadd.f32 %v2452, %v2511
          %v2569 = vadd.f32 %v2453, %v2515
          %v2570 = vadd.f32 %v2454, %v2519
          %v2571 = vadd.f32 %v2455, %v2523
          %v2572 = vmax.f32 %v2540, 0.0
          %v2573 = vmax.f32 %v2541, 0.0
          %v2574 = vmax.f32 %v2542, 0.0
          %v2575 = vmax.f32 %v2543, 0.0
          %v2576 = vmax.f32 %v2544, 0.0
          %v2577 = vmax.f32 %v2545, 0.0
          %v2578 = vmax.f32 %v2546, 0.0
          %v2579 = vmax.f32 %v2547, 0.0
          %v2580 = vmax.f32 %v2548, 0.0
          %v2581 = vmax.f32 %v2549, 0.0
          %v2582 = vmax.f32 %v2550, 0.0
          %v2583 = vmax.f32 %v2551, 0.0
          %v2584 = vmax.f32 %v2552, 0.0
          %v2585 = vmax.f32 %v2553, 0.0
          %v2586 = vmax.f32 %v2554, 0.0
          %v2587 = vmax.f32 %v2555, 0.0
          %v2588 = vmax.f32 %v2556, 0.0
          %v2589 = vmax.f32 %v2557, 0.0
          %v2590 = vmax.f32 %v2558, 0.0
          %v2591 = vmax.f32 %v2559, 0.0
          %v2592 = vmax.f32 %v2560, 0.0
          %v2593 = vmax.f32 %v2561, 0.0
          %v2594 = vmax.f32 %v2562, 0.0
          %v2595 = vmax.f32 %v2563, 0.0
          %v2596 = vmax.f32 %v2564, 0.0
          %v2597 = vmax.f32 %v2565, 0.0
          %v2598 = vmax.f32 %v2566, 0.0
          %v2599 = vmax.f32 %v2567, 0.0
          %v2600 = vmax.f32 %v2568, 0.0
          %v2601 = vmax.f32 %v2569, 0.0
          %v2602 = vmax.f32 %v2570, 0.0
          %v2603 = vmax.f32 %v2571, 0.0
          %v2604 = vpack.c.bf16 %v2588, %v2572
          %v2605 = vpack.c.bf16 %v2589, %v2573
          %v2606 = vpack.c.bf16 %v2590, %v2574
          %v2607 = vpack.c.bf16 %v2591, %v2575
          %v2608 = vpack.c.bf16 %v2592, %v2576
          %v2609 = vpack.c.bf16 %v2593, %v2577
          %v2610 = vpack.c.bf16 %v2594, %v2578
          %v2611 = vpack.c.bf16 %v2595, %v2579
          %v2612 = vpack.c.bf16 %v2596, %v2580
          %v2613 = vpack.c.bf16 %v2597, %v2581
          %v2614 = vpack.c.bf16 %v2598, %v2582
          %v2615 = vpack.c.bf16 %v2599, %v2583
          %v2616 = vpack.c.bf16 %v2600, %v2584
          %v2617 = vpack.c.bf16 %v2601, %v2585
          %v2618 = vpack.c.bf16 %v2602, %v2586
          %v2619 = vpack.c.bf16 %v2603, %v2587
          %v2620 = vld [vmem:[#allocation14] sm:$0xf]
          %v2621 = vld [vmem:[#allocation14 + $0x4] sm:$0xf]
          %v2622 = vld [vmem:[#allocation14 + $0x8] sm:$0xf]
          %v2623 = vld [vmem:[#allocation14 + $0xc] sm:$0xf]
          %v2624 = vld [vmem:[#allocation14 + $0x10] sm:$0xf]
          %v2625 = vld [vmem:[#allocation14 + $0x14] sm:$0xf]
          %v2626 = vld [vmem:[#allocation14 + $0x18] sm:$0xf]
          %v2627 = vld [vmem:[#allocation14 + $0x1c] sm:$0xf]
          %v2628 = vld [vmem:[#allocation14 + $0x20] sm:$0xf]
          %v2629 = vld [vmem:[#allocation14 + $0x24] sm:$0xf]
          %v2630 = vld [vmem:[#allocation14 + $0x28] sm:$0xf]
          %v2631 = vld [vmem:[#allocation14 + $0x2c] sm:$0xf]
          %v2632 = vld [vmem:[#allocation14 + $0x30] sm:$0xf]
          %v2633 = vld [vmem:[#allocation14 + $0x34] sm:$0xf]
          %v2634 = vld [vmem:[#allocation14 + $0x38] sm:$0xf]
          %v2635 = vld [vmem:[#allocation14 + $0x3c] sm:$0xf]
          %v2636 = vld [vmem:[#allocation14 + $0x40] sm:$0xf]
          %v2637 = vld [vmem:[#allocation14 + $0x44] sm:$0xf]
          %v2638 = vld [vmem:[#allocation14 + $0x48] sm:$0xf]
          %v2639 = vld [vmem:[#allocation14 + $0x4c] sm:$0xf]
          %v2640 = vld [vmem:[#allocation14 + $0x50] sm:$0xf]
          %v2641 = vld [vmem:[#allocation14 + $0x54] sm:$0xf]
          %v2642 = vld [vmem:[#allocation14 + $0x58] sm:$0xf]
          %v2643 = vld [vmem:[#allocation14 + $0x5c] sm:$0xf]
          %v2644 = vld [vmem:[#allocation14 + $0x60] sm:$0xf]
          %v2645 = vld [vmem:[#allocation14 + $0x64] sm:$0xf]
          %v2646 = vld [vmem:[#allocation14 + $0x68] sm:$0xf]
          %v2647 = vld [vmem:[#allocation14 + $0x6c] sm:$0xf]
          %v2648 = vld [vmem:[#allocation14 + $0x70] sm:$0xf]
          %v2649 = vld [vmem:[#allocation14 + $0x74] sm:$0xf]
          %v2650 = vld [vmem:[#allocation14 + $0x78] sm:$0xf]
          %v2651 = vld [vmem:[#allocation14 + $0x7c] sm:$0xf]
          %v2652 = vld [vmem:[#allocation14 + $0x80] sm:$0xf]
          %v2653 = vld [vmem:[#allocation14 + $0x84] sm:$0xf]
          %v2654 = vld [vmem:[#allocation14 + $0x88] sm:$0xf]
          %v2655 = vld [vmem:[#allocation14 + $0x8c] sm:$0xf]
          %v2656 = vld [vmem:[#allocation14 + $0x90] sm:$0xf]
          %v2657 = vld [vmem:[#allocation14 + $0x94] sm:$0xf]
          %v2658 = vld [vmem:[#allocation14 + $0x98] sm:$0xf]
          %v2659 = vld [vmem:[#allocation14 + $0x9c] sm:$0xf]
          %v2660 = vld [vmem:[#allocation14 + $0xa0] sm:$0xf]
          %v2661 = vld [vmem:[#allocation14 + $0xa4] sm:$0xf]
          %v2662 = vld [vmem:[#allocation14 + $0xa8] sm:$0xf]
          %v2663 = vld [vmem:[#allocation14 + $0xac] sm:$0xf]
          %v2664 = vld [vmem:[#allocation14 + $0xb0] sm:$0xf]
          %v2665 = vld [vmem:[#allocation14 + $0xb4] sm:$0xf]
          %v2666 = vld [vmem:[#allocation14 + $0xb8] sm:$0xf]
          %v2667 = vld [vmem:[#allocation14 + $0xbc] sm:$0xf]
          %v2668 = vld [vmem:[#allocation14 + $0xc0] sm:$0xf]
          %v2669 = vld [vmem:[#allocation14 + $0xc4] sm:$0xf]
          %v2670 = vld [vmem:[#allocation14 + $0xc8] sm:$0xf]
          %v2671 = vld [vmem:[#allocation14 + $0xcc] sm:$0xf]
          %v2672 = vld [vmem:[#allocation14 + $0xd0] sm:$0xf]
          %v2673 = vld [vmem:[#allocation14 + $0xd4] sm:$0xf]
          %v2674 = vld [vmem:[#allocation14 + $0xd8] sm:$0xf]
          %v2675 = vld [vmem:[#allocation14 + $0xdc] sm:$0xf]
          %v2676 = vld [vmem:[#allocation14 + $0xe0] sm:$0xf]
          %v2677 = vld [vmem:[#allocation14 + $0xe4] sm:$0xf]
          %v2678 = vld [vmem:[#allocation14 + $0xe8] sm:$0xf]
          %v2679 = vld [vmem:[#allocation14 + $0xec] sm:$0xf]
          %v2680 = vld [vmem:[#allocation14 + $0xf0] sm:$0xf]
          %v2681 = vld [vmem:[#allocation14 + $0xf4] sm:$0xf]
          %v2682 = vld [vmem:[#allocation14 + $0xf8] sm:$0xf]
          %v2683 = vld [vmem:[#allocation14 + $0xfc] sm:$0xf]
          %v2684 = vld [vmem:[#allocation14 + $0x100] sm:$0xf]
          %v2685 = vld [vmem:[#allocation14 + $0x104] sm:$0xf]
          %v2686 = vld [vmem:[#allocation14 + $0x108] sm:$0xf]
          %v2687 = vld [vmem:[#allocation14 + $0x10c] sm:$0xf]
          %v2688 = vld [vmem:[#allocation14 + $0x110] sm:$0xf]
          %v2689 = vld [vmem:[#allocation14 + $0x114] sm:$0xf]
          %v2690 = vld [vmem:[#allocation14 + $0x118] sm:$0xf]
          %v2691 = vld [vmem:[#allocation14 + $0x11c] sm:$0xf]
          %v2692 = vld [vmem:[#allocation14 + $0x120] sm:$0xf]
          %v2693 = vld [vmem:[#allocation14 + $0x124] sm:$0xf]
          %v2694 = vld [vmem:[#allocation14 + $0x128] sm:$0xf]
          %v2695 = vld [vmem:[#allocation14 + $0x12c] sm:$0xf]
          %v2696 = vld [vmem:[#allocation14 + $0x130] sm:$0xf]
          %v2697 = vld [vmem:[#allocation14 + $0x134] sm:$0xf]
          %v2698 = vld [vmem:[#allocation14 + $0x138] sm:$0xf]
          %v2699 = vld [vmem:[#allocation14 + $0x13c] sm:$0xf]
          %v2700 = vld [vmem:[#allocation14 + $0x140] sm:$0xf]
          %v2701 = vld [vmem:[#allocation14 + $0x144] sm:$0xf]
          %v2702 = vld [vmem:[#allocation14 + $0x148] sm:$0xf]
          %v2703 = vld [vmem:[#allocation14 + $0x14c] sm:$0xf]
          %v2704 = vld [vmem:[#allocation14 + $0x150] sm:$0xf]
          %v2705 = vld [vmem:[#allocation14 + $0x154] sm:$0xf]
          %v2706 = vld [vmem:[#allocation14 + $0x158] sm:$0xf]
          %v2707 = vld [vmem:[#allocation14 + $0x15c] sm:$0xf]
          %v2708 = vld [vmem:[#allocation14 + $0x160] sm:$0xf]
          %v2709 = vld [vmem:[#allocation14 + $0x164] sm:$0xf]
          %v2710 = vld [vmem:[#allocation14 + $0x168] sm:$0xf]
          %v2711 = vld [vmem:[#allocation14 + $0x16c] sm:$0xf]
          %v2712 = vld [vmem:[#allocation14 + $0x170] sm:$0xf]
          %v2713 = vld [vmem:[#allocation14 + $0x174] sm:$0xf]
          %v2714 = vld [vmem:[#allocation14 + $0x178] sm:$0xf]
          %v2715 = vld [vmem:[#allocation14 + $0x17c] sm:$0xf]
          %v2716 = vld [vmem:[#allocation14 + $0x180] sm:$0xf]
          %v2717 = vld [vmem:[#allocation14 + $0x184] sm:$0xf]
          %v2718 = vld [vmem:[#allocation14 + $0x188] sm:$0xf]
          %v2719 = vld [vmem:[#allocation14 + $0x18c] sm:$0xf]
          %v2720 = vld [vmem:[#allocation14 + $0x190] sm:$0xf]
          %v2721 = vld [vmem:[#allocation14 + $0x194] sm:$0xf]
          %v2722 = vld [vmem:[#allocation14 + $0x198] sm:$0xf]
          %v2723 = vld [vmem:[#allocation14 + $0x19c] sm:$0xf]
          %v2724 = vld [vmem:[#allocation14 + $0x1a0] sm:$0xf]
          %v2725 = vld [vmem:[#allocation14 + $0x1a4] sm:$0xf]
          %v2726 = vld [vmem:[#allocation14 + $0x1a8] sm:$0xf]
          %v2727 = vld [vmem:[#allocation14 + $0x1ac] sm:$0xf]
          %v2728 = vld [vmem:[#allocation14 + $0x1b0] sm:$0xf]
          %v2729 = vld [vmem:[#allocation14 + $0x1b4] sm:$0xf]
          %v2730 = vld [vmem:[#allocation14 + $0x1b8] sm:$0xf]
          %v2731 = vld [vmem:[#allocation14 + $0x1bc] sm:$0xf]
          %v2732 = vld [vmem:[#allocation14 + $0x1c0] sm:$0xf]
          %v2733 = vld [vmem:[#allocation14 + $0x1c4] sm:$0xf]
          %v2734 = vld [vmem:[#allocation14 + $0x1c8] sm:$0xf]
          %v2735 = vld [vmem:[#allocation14 + $0x1cc] sm:$0xf]
          %v2736 = vld [vmem:[#allocation14 + $0x1d0] sm:$0xf]
          %v2737 = vld [vmem:[#allocation14 + $0x1d4] sm:$0xf]
          %v2738 = vld [vmem:[#allocation14 + $0x1d8] sm:$0xf]
          %v2739 = vld [vmem:[#allocation14 + $0x1dc] sm:$0xf]
          %v2740 = vld [vmem:[#allocation14 + $0x1e0] sm:$0xf]
          %v2741 = vld [vmem:[#allocation14 + $0x1e4] sm:$0xf]
          %v2742 = vld [vmem:[#allocation14 + $0x1e8] sm:$0xf]
          %v2743 = vld [vmem:[#allocation14 + $0x1ec] sm:$0xf]
          %v2744 = vld [vmem:[#allocation14 + $0x1f0] sm:$0xf]
          %v2745 = vld [vmem:[#allocation14 + $0x1f4] sm:$0xf]
          %v2746 = vld [vmem:[#allocation14 + $0x1f8] sm:$0xf]
          %v2747 = vld [vmem:[#allocation14 + $0x1fc] sm:$0xf]
          %v2748 = vld [vmem:[#allocation14 + $0x200] sm:$0xf]
          %v2749 = vld [vmem:[#allocation14 + $0x204] sm:$0xf]
          %v2750 = vld [vmem:[#allocation14 + $0x208] sm:$0xf]
          %v2751 = vld [vmem:[#allocation14 + $0x20c] sm:$0xf]
          %v2752 = vld [vmem:[#allocation14 + $0x210] sm:$0xf]
          %v2753 = vld [vmem:[#allocation14 + $0x214] sm:$0xf]
          %v2754 = vld [vmem:[#allocation14 + $0x218] sm:$0xf]
          %v2755 = vld [vmem:[#allocation14 + $0x21c] sm:$0xf]
          %v2756 = vld [vmem:[#allocation14 + $0x220] sm:$0xf]
          %v2757 = vld [vmem:[#allocation14 + $0x224] sm:$0xf]
          %v2758 = vld [vmem:[#allocation14 + $0x228] sm:$0xf]
          %v2759 = vld [vmem:[#allocation14 + $0x22c] sm:$0xf]
          %v2760 = vld [vmem:[#allocation14 + $0x230] sm:$0xf]
          %v2761 = vld [vmem:[#allocation14 + $0x234] sm:$0xf]
          %v2762 = vld [vmem:[#allocation14 + $0x238] sm:$0xf]
          %v2763 = vld [vmem:[#allocation14 + $0x23c] sm:$0xf]
          %v2764 = vld [vmem:[#allocation14 + $0x240] sm:$0xf]
          %v2765 = vld [vmem:[#allocation14 + $0x244] sm:$0xf]
          %v2766 = vld [vmem:[#allocation14 + $0x248] sm:$0xf]
          %v2767 = vld [vmem:[#allocation14 + $0x24c] sm:$0xf]
          %v2768 = vld [vmem:[#allocation14 + $0x250] sm:$0xf]
          %v2769 = vld [vmem:[#allocation14 + $0x254] sm:$0xf]
          %v2770 = vld [vmem:[#allocation14 + $0x258] sm:$0xf]
          %v2771 = vld [vmem:[#allocation14 + $0x25c] sm:$0xf]
          %v2772 = vld [vmem:[#allocation14 + $0x260] sm:$0xf]
          %v2773 = vld [vmem:[#allocation14 + $0x264] sm:$0xf]
          %v2774 = vld [vmem:[#allocation14 + $0x268] sm:$0xf]
          %v2775 = vld [vmem:[#allocation14 + $0x26c] sm:$0xf]
          %v2776 = vld [vmem:[#allocation14 + $0x270] sm:$0xf]
          %v2777 = vld [vmem:[#allocation14 + $0x274] sm:$0xf]
          %v2778 = vld [vmem:[#allocation14 + $0x278] sm:$0xf]
          %v2779 = vld [vmem:[#allocation14 + $0x27c] sm:$0xf]
          %v2780 = vld [vmem:[#allocation14 + $0x280] sm:$0xf]
          %v2781 = vld [vmem:[#allocation14 + $0x284] sm:$0xf]
          %v2782 = vld [vmem:[#allocation14 + $0x288] sm:$0xf]
          %v2783 = vld [vmem:[#allocation14 + $0x28c] sm:$0xf]
          %v2784 = vld [vmem:[#allocation14 + $0x290] sm:$0xf]
          %v2785 = vld [vmem:[#allocation14 + $0x294] sm:$0xf]
          %v2786 = vld [vmem:[#allocation14 + $0x298] sm:$0xf]
          %v2787 = vld [vmem:[#allocation14 + $0x29c] sm:$0xf]
          %v2788 = vld [vmem:[#allocation14 + $0x2a0] sm:$0xf]
          %v2789 = vld [vmem:[#allocation14 + $0x2a4] sm:$0xf]
          %v2790 = vld [vmem:[#allocation14 + $0x2a8] sm:$0xf]
          %v2791 = vld [vmem:[#allocation14 + $0x2ac] sm:$0xf]
          %v2792 = vld [vmem:[#allocation14 + $0x2b0] sm:$0xf]
          %v2793 = vld [vmem:[#allocation14 + $0x2b4] sm:$0xf]
          %v2794 = vld [vmem:[#allocation14 + $0x2b8] sm:$0xf]
          %v2795 = vld [vmem:[#allocation14 + $0x2bc] sm:$0xf]
          %v2796 = vld [vmem:[#allocation14 + $0x2c0] sm:$0xf]
          %v2797 = vld [vmem:[#allocation14 + $0x2c4] sm:$0xf]
          %v2798 = vld [vmem:[#allocation14 + $0x2c8] sm:$0xf]
          %v2799 = vld [vmem:[#allocation14 + $0x2cc] sm:$0xf]
          %v2800 = vld [vmem:[#allocation14 + $0x2d0] sm:$0xf]
          %v2801 = vld [vmem:[#allocation14 + $0x2d4] sm:$0xf]
          %v2802 = vld [vmem:[#allocation14 + $0x2d8] sm:$0xf]
          %v2803 = vld [vmem:[#allocation14 + $0x2dc] sm:$0xf]
          %v2804 = vld [vmem:[#allocation14 + $0x2e0] sm:$0xf]
          %v2805 = vld [vmem:[#allocation14 + $0x2e4] sm:$0xf]
          %v2806 = vld [vmem:[#allocation14 + $0x2e8] sm:$0xf]
          %v2807 = vld [vmem:[#allocation14 + $0x2ec] sm:$0xf]
          %v2808 = vld [vmem:[#allocation14 + $0x2f0] sm:$0xf]
          %v2809 = vld [vmem:[#allocation14 + $0x2f4] sm:$0xf]
          %v2810 = vld [vmem:[#allocation14 + $0x2f8] sm:$0xf]
          %v2811 = vld [vmem:[#allocation14 + $0x2fc] sm:$0xf]
          %v2812 = vld [vmem:[#allocation14 + $0x300] sm:$0xf]
          %v2813 = vld [vmem:[#allocation14 + $0x304] sm:$0xf]
          %v2814 = vld [vmem:[#allocation14 + $0x308] sm:$0xf]
          %v2815 = vld [vmem:[#allocation14 + $0x30c] sm:$0xf]
          %v2816 = vld [vmem:[#allocation14 + $0x310] sm:$0xf]
          %v2817 = vld [vmem:[#allocation14 + $0x314] sm:$0xf]
          %v2818 = vld [vmem:[#allocation14 + $0x318] sm:$0xf]
          %v2819 = vld [vmem:[#allocation14 + $0x31c] sm:$0xf]
          %v2820 = vld [vmem:[#allocation14 + $0x320] sm:$0xf]
          %v2821 = vld [vmem:[#allocation14 + $0x324] sm:$0xf]
          %v2822 = vld [vmem:[#allocation14 + $0x328] sm:$0xf]
          %v2823 = vld [vmem:[#allocation14 + $0x32c] sm:$0xf]
          %v2824 = vld [vmem:[#allocation14 + $0x330] sm:$0xf]
          %v2825 = vld [vmem:[#allocation14 + $0x334] sm:$0xf]
          %v2826 = vld [vmem:[#allocation14 + $0x338] sm:$0xf]
          %v2827 = vld [vmem:[#allocation14 + $0x33c] sm:$0xf]
          %v2828 = vld [vmem:[#allocation14 + $0x340] sm:$0xf]
          %v2829 = vld [vmem:[#allocation14 + $0x344] sm:$0xf]
          %v2830 = vld [vmem:[#allocation14 + $0x348] sm:$0xf]
          %v2831 = vld [vmem:[#allocation14 + $0x34c] sm:$0xf]
          %v2832 = vld [vmem:[#allocation14 + $0x350] sm:$0xf]
          %v2833 = vld [vmem:[#allocation14 + $0x354] sm:$0xf]
          %v2834 = vld [vmem:[#allocation14 + $0x358] sm:$0xf]
          %v2835 = vld [vmem:[#allocation14 + $0x35c] sm:$0xf]
          %v2836 = vld [vmem:[#allocation14 + $0x360] sm:$0xf]
          %v2837 = vld [vmem:[#allocation14 + $0x364] sm:$0xf]
          %v2838 = vld [vmem:[#allocation14 + $0x368] sm:$0xf]
          %v2839 = vld [vmem:[#allocation14 + $0x36c] sm:$0xf]
          %v2840 = vld [vmem:[#allocation14 + $0x370] sm:$0xf]
          %v2841 = vld [vmem:[#allocation14 + $0x374] sm:$0xf]
          %v2842 = vld [vmem:[#allocation14 + $0x378] sm:$0xf]
          %v2843 = vld [vmem:[#allocation14 + $0x37c] sm:$0xf]
          %v2844 = vld [vmem:[#allocation14 + $0x380] sm:$0xf]
          %v2845 = vld [vmem:[#allocation14 + $0x384] sm:$0xf]
          %v2846 = vld [vmem:[#allocation14 + $0x388] sm:$0xf]
          %v2847 = vld [vmem:[#allocation14 + $0x38c] sm:$0xf]
          %v2848 = vld [vmem:[#allocation14 + $0x390] sm:$0xf]
          %v2849 = vld [vmem:[#allocation14 + $0x394] sm:$0xf]
          %v2850 = vld [vmem:[#allocation14 + $0x398] sm:$0xf]
          %v2851 = vld [vmem:[#allocation14 + $0x39c] sm:$0xf]
          %v2852 = vld [vmem:[#allocation14 + $0x3a0] sm:$0xf]
          %v2853 = vld [vmem:[#allocation14 + $0x3a4] sm:$0xf]
          %v2854 = vld [vmem:[#allocation14 + $0x3a8] sm:$0xf]
          %v2855 = vld [vmem:[#allocation14 + $0x3ac] sm:$0xf]
          %v2856 = vld [vmem:[#allocation14 + $0x3b0] sm:$0xf]
          %v2857 = vld [vmem:[#allocation14 + $0x3b4] sm:$0xf]
          %v2858 = vld [vmem:[#allocation14 + $0x3b8] sm:$0xf]
          %v2859 = vld [vmem:[#allocation14 + $0x3bc] sm:$0xf]
          %v2860 = vld [vmem:[#allocation14 + $0x3c0] sm:$0xf]
          %v2861 = vld [vmem:[#allocation14 + $0x3c4] sm:$0xf]
          %v2862 = vld [vmem:[#allocation14 + $0x3c8] sm:$0xf]
          %v2863 = vld [vmem:[#allocation14 + $0x3cc] sm:$0xf]
          %v2864 = vld [vmem:[#allocation14 + $0x3d0] sm:$0xf]
          %v2865 = vld [vmem:[#allocation14 + $0x3d4] sm:$0xf]
          %v2866 = vld [vmem:[#allocation14 + $0x3d8] sm:$0xf]
          %v2867 = vld [vmem:[#allocation14 + $0x3dc] sm:$0xf]
          %v2868 = vld [vmem:[#allocation14 + $0x3e0] sm:$0xf]
          %v2869 = vld [vmem:[#allocation14 + $0x3e4] sm:$0xf]
          %v2870 = vld [vmem:[#allocation14 + $0x3e8] sm:$0xf]
          %v2871 = vld [vmem:[#allocation14 + $0x3ec] sm:$0xf]
          %v2872 = vld [vmem:[#allocation14 + $0x3f0] sm:$0xf]
          %v2873 = vld [vmem:[#allocation14 + $0x3f4] sm:$0xf]
          %v2874 = vld [vmem:[#allocation14 + $0x3f8] sm:$0xf]
          %v2875 = vld [vmem:[#allocation14 + $0x3fc] sm:$0xf]
          %v2876 = vld [vmem:[%s7] sm:$0x1]
          %v2878 = vlaneseq
          %v2879 = vshrl.u32 %v2878, 7
          %v2880 = vsub.s32 0, %v2879
          %v2881 = vrot.slane %v2876, %v2880
          %v3139 = vunpack.c.l.b16 %v2620
          %v3140 = vunpack.c.l.b16 %v2621
          %v3141 = vunpack.c.l.b16 %v2622
          %v3142 = vunpack.c.l.b16 %v2623
          %v3143 = vunpack.c.l.b16 %v2624
          %v3144 = vunpack.c.l.b16 %v2625
          %v3145 = vunpack.c.l.b16 %v2626
          %v3146 = vunpack.c.l.b16 %v2627
          %v3147 = vunpack.c.l.b16 %v2628
          %v3148 = vunpack.c.l.b16 %v2629
          %v3149 = vunpack.c.l.b16 %v2630
          %v3150 = vunpack.c.l.b16 %v2631
          %v3151 = vunpack.c.l.b16 %v2632
          %v3152 = vunpack.c.l.b16 %v2633
          %v3153 = vunpack.c.l.b16 %v2634
          %v3154 = vunpack.c.l.b16 %v2635
          %v3155 = vunpack.c.l.b16 %v2636
          %v3156 = vunpack.c.l.b16 %v2637
          %v3157 = vunpack.c.l.b16 %v2638
          %v3158 = vunpack.c.l.b16 %v2639
          %v3159 = vunpack.c.l.b16 %v2640
          %v3160 = vunpack.c.l.b16 %v2641
          %v3161 = vunpack.c.l.b16 %v2642
          %v3162 = vunpack.c.l.b16 %v2643
          %v3163 = vunpack.c.l.b16 %v2644
          %v3164 = vunpack.c.l.b16 %v2645
          %v3165 = vunpack.c.l.b16 %v2646
          %v3166 = vunpack.c.l.b16 %v2647
          %v3167 = vunpack.c.l.b16 %v2648
          %v3168 = vunpack.c.l.b16 %v2649
          %v3169 = vunpack.c.l.b16 %v2650
          %v3170 = vunpack.c.l.b16 %v2651
          %v3171 = vunpack.c.l.b16 %v2652
          %v3172 = vunpack.c.l.b16 %v2653
          %v3173 = vunpack.c.l.b16 %v2654
          %v3174 = vunpack.c.l.b16 %v2655
          %v3175 = vunpack.c.l.b16 %v2656
          %v3176 = vunpack.c.l.b16 %v2657
          %v3177 = vunpack.c.l.b16 %v2658
          %v3178 = vunpack.c.l.b16 %v2659
          %v3179 = vunpack.c.l.b16 %v2660
          %v3180 = vunpack.c.l.b16 %v2661
          %v3181 = vunpack.c.l.b16 %v2662
          %v3182 = vunpack.c.l.b16 %v2663
          %v3183 = vunpack.c.l.b16 %v2664
          %v3184 = vunpack.c.l.b16 %v2665
          %v3185 = vunpack.c.l.b16 %v2666
          %v3186 = vunpack.c.l.b16 %v2667
          %v3187 = vunpack.c.l.b16 %v2668
          %v3188 = vunpack.c.l.b16 %v2669
          %v3189 = vunpack.c.l.b16 %v2670
          %v3190 = vunpack.c.l.b16 %v2671
          %v3191 = vunpack.c.l.b16 %v2672
          %v3192 = vunpack.c.l.b16 %v2673
          %v3193 = vunpack.c.l.b16 %v2674
          %v3194 = vunpack.c.l.b16 %v2675
          %v3195 = vunpack.c.l.b16 %v2676
          %v3196 = vunpack.c.l.b16 %v2677
          %v3197 = vunpack.c.l.b16 %v2678
          %v3198 = vunpack.c.l.b16 %v2679
          %v3199 = vunpack.c.l.b16 %v2680
          %v3200 = vunpack.c.l.b16 %v2681
          %v3201 = vunpack.c.l.b16 %v2682
          %v3202 = vunpack.c.l.b16 %v2683
          %v3203 = vunpack.c.l.b16 %v2684
          %v3204 = vunpack.c.l.b16 %v2685
          %v3205 = vunpack.c.l.b16 %v2686
          %v3206 = vunpack.c.l.b16 %v2687
          %v3207 = vunpack.c.l.b16 %v2688
          %v3208 = vunpack.c.l.b16 %v2689
          %v3209 = vunpack.c.l.b16 %v2690
          %v3210 = vunpack.c.l.b16 %v2691
          %v3211 = vunpack.c.l.b16 %v2692
          %v3212 = vunpack.c.l.b16 %v2693
          %v3213 = vunpack.c.l.b16 %v2694
          %v3214 = vunpack.c.l.b16 %v2695
          %v3215 = vunpack.c.l.b16 %v2696
          %v3216 = vunpack.c.l.b16 %v2697
          %v3217 = vunpack.c.l.b16 %v2698
          %v3218 = vunpack.c.l.b16 %v2699
          %v3219 = vunpack.c.l.b16 %v2700
          %v3220 = vunpack.c.l.b16 %v2701
          %v3221 = vunpack.c.l.b16 %v2702
          %v3222 = vunpack.c.l.b16 %v2703
          %v3223 = vunpack.c.l.b16 %v2704
          %v3224 = vunpack.c.l.b16 %v2705
          %v3225 = vunpack.c.l.b16 %v2706
          %v3226 = vunpack.c.l.b16 %v2707
          %v3227 = vunpack.c.l.b16 %v2708
          %v3228 = vunpack.c.l.b16 %v2709
          %v3229 = vunpack.c.l.b16 %v2710
          %v3230 = vunpack.c.l.b16 %v2711
          %v3231 = vunpack.c.l.b16 %v2712
          %v3232 = vunpack.c.l.b16 %v2713
          %v3233 = vunpack.c.l.b16 %v2714
          %v3234 = vunpack.c.l.b16 %v2715
          %v3235 = vunpack.c.l.b16 %v2716
          %v3236 = vunpack.c.l.b16 %v2717
          %v3237 = vunpack.c.l.b16 %v2718
          %v3238 = vunpack.c.l.b16 %v2719
          %v3239 = vunpack.c.l.b16 %v2720
          %v3240 = vunpack.c.l.b16 %v2721
          %v3241 = vunpack.c.l.b16 %v2722
          %v3242 = vunpack.c.l.b16 %v2723
          %v3243 = vunpack.c.l.b16 %v2724
          %v3244 = vunpack.c.l.b16 %v2725
          %v3245 = vunpack.c.l.b16 %v2726
          %v3246 = vunpack.c.l.b16 %v2727
          %v3247 = vunpack.c.l.b16 %v2728
          %v3248 = vunpack.c.l.b16 %v2729
          %v3249 = vunpack.c.l.b16 %v2730
          %v3250 = vunpack.c.l.b16 %v2731
          %v3251 = vunpack.c.l.b16 %v2732
          %v3252 = vunpack.c.l.b16 %v2733
          %v3253 = vunpack.c.l.b16 %v2734
          %v3254 = vunpack.c.l.b16 %v2735
          %v3255 = vunpack.c.l.b16 %v2736
          %v3256 = vunpack.c.l.b16 %v2737
          %v3257 = vunpack.c.l.b16 %v2738
          %v3258 = vunpack.c.l.b16 %v2739
          %v3259 = vunpack.c.l.b16 %v2740
          %v3260 = vunpack.c.l.b16 %v2741
          %v3261 = vunpack.c.l.b16 %v2742
          %v3262 = vunpack.c.l.b16 %v2743
          %v3263 = vunpack.c.l.b16 %v2744
          %v3264 = vunpack.c.l.b16 %v2745
          %v3265 = vunpack.c.l.b16 %v2746
          %v3266 = vunpack.c.l.b16 %v2747
          %v3267 = vunpack.c.l.b16 %v2748
          %v3268 = vunpack.c.l.b16 %v2749
          %v3269 = vunpack.c.l.b16 %v2750
          %v3270 = vunpack.c.l.b16 %v2751
          %v3271 = vunpack.c.l.b16 %v2752
          %v3272 = vunpack.c.l.b16 %v2753
          %v3273 = vunpack.c.l.b16 %v2754
          %v3274 = vunpack.c.l.b16 %v2755
          %v3275 = vunpack.c.l.b16 %v2756
          %v3276 = vunpack.c.l.b16 %v2757
          %v3277 = vunpack.c.l.b16 %v2758
          %v3278 = vunpack.c.l.b16 %v2759
          %v3279 = vunpack.c.l.b16 %v2760
          %v3280 = vunpack.c.l.b16 %v2761
          %v3281 = vunpack.c.l.b16 %v2762
          %v3282 = vunpack.c.l.b16 %v2763
          %v3283 = vunpack.c.l.b16 %v2764
          %v3284 = vunpack.c.l.b16 %v2765
          %v3285 = vunpack.c.l.b16 %v2766
          %v3286 = vunpack.c.l.b16 %v2767
          %v3287 = vunpack.c.l.b16 %v2768
          %v3288 = vunpack.c.l.b16 %v2769
          %v3289 = vunpack.c.l.b16 %v2770
          %v3290 = vunpack.c.l.b16 %v2771
          %v3291 = vunpack.c.l.b16 %v2772
          %v3292 = vunpack.c.l.b16 %v2773
          %v3293 = vunpack.c.l.b16 %v2774
          %v3294 = vunpack.c.l.b16 %v2775
          %v3295 = vunpack.c.l.b16 %v2776
          %v3296 = vunpack.c.l.b16 %v2777
          %v3297 = vunpack.c.l.b16 %v2778
          %v3298 = vunpack.c.l.b16 %v2779
          %v3299 = vunpack.c.l.b16 %v2780
          %v3300 = vunpack.c.l.b16 %v2781
          %v3301 = vunpack.c.l.b16 %v2782
          %v3302 = vunpack.c.l.b16 %v2783
          %v3303 = vunpack.c.l.b16 %v2784
          %v3304 = vunpack.c.l.b16 %v2785
          %v3305 = vunpack.c.l.b16 %v2786
          %v3306 = vunpack.c.l.b16 %v2787
          %v3307 = vunpack.c.l.b16 %v2788
          %v3308 = vunpack.c.l.b16 %v2789
          %v3309 = vunpack.c.l.b16 %v2790
          %v3310 = vunpack.c.l.b16 %v2791
          %v3311 = vunpack.c.l.b16 %v2792
          %v3312 = vunpack.c.l.b16 %v2793
          %v3313 = vunpack.c.l.b16 %v2794
          %v3314 = vunpack.c.l.b16 %v2795
          %v3315 = vunpack.c.l.b16 %v2796
          %v3316 = vunpack.c.l.b16 %v2797
          %v3317 = vunpack.c.l.b16 %v2798
          %v3318 = vunpack.c.l.b16 %v2799
          %v3319 = vunpack.c.l.b16 %v2800
          %v3320 = vunpack.c.l.b16 %v2801
          %v3321 = vunpack.c.l.b16 %v2802
          %v3322 = vunpack.c.l.b16 %v2803
          %v3323 = vunpack.c.l.b16 %v2804
          %v3324 = vunpack.c.l.b16 %v2805
          %v3325 = vunpack.c.l.b16 %v2806
          %v3326 = vunpack.c.l.b16 %v2807
          %v3327 = vunpack.c.l.b16 %v2808
          %v3328 = vunpack.c.l.b16 %v2809
          %v3329 = vunpack.c.l.b16 %v2810
          %v3330 = vunpack.c.l.b16 %v2811
          %v3331 = vunpack.c.l.b16 %v2812
          %v3332 = vunpack.c.l.b16 %v2813
          %v3333 = vunpack.c.l.b16 %v2814
          %v3334 = vunpack.c.l.b16 %v2815
          %v3335 = vunpack.c.l.b16 %v2816
          %v3336 = vunpack.c.l.b16 %v2817
          %v3337 = vunpack.c.l.b16 %v2818
          %v3338 = vunpack.c.l.b16 %v2819
          %v3339 = vunpack.c.l.b16 %v2820
          %v3340 = vunpack.c.l.b16 %v2821
          %v3341 = vunpack.c.l.b16 %v2822
          %v3342 = vunpack.c.l.b16 %v2823
          %v3343 = vunpack.c.l.b16 %v2824
          %v3344 = vunpack.c.l.b16 %v2825
          %v3345 = vunpack.c.l.b16 %v2826
          %v3346 = vunpack.c.l.b16 %v2827
          %v3347 = vunpack.c.l.b16 %v2828
          %v3348 = vunpack.c.l.b16 %v2829
          %v3349 = vunpack.c.l.b16 %v2830
          %v3350 = vunpack.c.l.b16 %v2831
          %v3351 = vunpack.c.l.b16 %v2832
          %v3352 = vunpack.c.l.b16 %v2833
          %v3353 = vunpack.c.l.b16 %v2834
          %v3354 = vunpack.c.l.b16 %v2835
          %v3355 = vunpack.c.l.b16 %v2836
          %v3356 = vunpack.c.l.b16 %v2837
          %v3357 = vunpack.c.l.b16 %v2838
          %v3358 = vunpack.c.l.b16 %v2839
          %v3359 = vunpack.c.l.b16 %v2840
          %v3360 = vunpack.c.l.b16 %v2841
          %v3361 = vunpack.c.l.b16 %v2842
          %v3362 = vunpack.c.l.b16 %v2843
          %v3363 = vunpack.c.l.b16 %v2844
          %v3364 = vunpack.c.l.b16 %v2845
          %v3365 = vunpack.c.l.b16 %v2846
          %v3366 = vunpack.c.l.b16 %v2847
          %v3367 = vunpack.c.l.b16 %v2848
          %v3368 = vunpack.c.l.b16 %v2849
          %v3369 = vunpack.c.l.b16 %v2850
          %v3370 = vunpack.c.l.b16 %v2851
          %v3371 = vunpack.c.l.b16 %v2852
          %v3372 = vunpack.c.l.b16 %v2853
          %v3373 = vunpack.c.l.b16 %v2854
          %v3374 = vunpack.c.l.b16 %v2855
          %v3375 = vunpack.c.l.b16 %v2856
          %v3376 = vunpack.c.l.b16 %v2857
          %v3377 = vunpack.c.l.b16 %v2858
          %v3378 = vunpack.c.l.b16 %v2859
          %v3379 = vunpack.c.l.b16 %v2860
          %v3380 = vunpack.c.l.b16 %v2861
          %v3381 = vunpack.c.l.b16 %v2862
          %v3382 = vunpack.c.l.b16 %v2863
          %v3383 = vunpack.c.l.b16 %v2864
          %v3384 = vunpack.c.l.b16 %v2865
          %v3385 = vunpack.c.l.b16 %v2866
          %v3386 = vunpack.c.l.b16 %v2867
          %v3387 = vunpack.c.l.b16 %v2868
          %v3388 = vunpack.c.l.b16 %v2869
          %v3389 = vunpack.c.l.b16 %v2870
          %v3390 = vunpack.c.l.b16 %v2871
          %v3391 = vunpack.c.l.b16 %v2872
          %v3392 = vunpack.c.l.b16 %v2873
          %v3393 = vunpack.c.l.b16 %v2874
          %v3394 = vunpack.c.l.b16 %v2875
          %v3395 = vpack.c.b16 %v3140, %v3139
          %v3396 = vpack.c.b16 %v3142, %v3141
          %v3397 = vpack.c.b16 %v3144, %v3143
          %v3398 = vpack.c.b16 %v3146, %v3145
          %v3399 = vpack.c.b16 %v3148, %v3147
          %v3400 = vpack.c.b16 %v3150, %v3149
          %v3401 = vpack.c.b16 %v3152, %v3151
          %v3402 = vpack.c.b16 %v3154, %v3153
          %v3403 = vpack.c.b16 %v3156, %v3155
          %v3404 = vpack.c.b16 %v3158, %v3157
          %v3405 = vpack.c.b16 %v3160, %v3159
          %v3406 = vpack.c.b16 %v3162, %v3161
          %v3407 = vpack.c.b16 %v3164, %v3163
          %v3408 = vpack.c.b16 %v3166, %v3165
          %v3409 = vpack.c.b16 %v3168, %v3167
          %v3410 = vpack.c.b16 %v3170, %v3169
          %v3411 = vpack.c.b16 %v3172, %v3171
          %v3412 = vpack.c.b16 %v3174, %v3173
          %v3413 = vpack.c.b16 %v3176, %v3175
          %v3414 = vpack.c.b16 %v3178, %v3177
          %v3415 = vpack.c.b16 %v3180, %v3179
          %v3416 = vpack.c.b16 %v3182, %v3181
          %v3417 = vpack.c.b16 %v3184, %v3183
          %v3418 = vpack.c.b16 %v3186, %v3185
          %v3419 = vpack.c.b16 %v3188, %v3187
          %v3420 = vpack.c.b16 %v3190, %v3189
          %v3421 = vpack.c.b16 %v3192, %v3191
          %v3422 = vpack.c.b16 %v3194, %v3193
          %v3423 = vpack.c.b16 %v3196, %v3195
          %v3424 = vpack.c.b16 %v3198, %v3197
          %v3425 = vpack.c.b16 %v3200, %v3199
          %v3426 = vpack.c.b16 %v3202, %v3201
          %v3427 = vpack.c.b16 %v3204, %v3203
          %v3428 = vpack.c.b16 %v3206, %v3205
          %v3429 = vpack.c.b16 %v3208, %v3207
          %v3430 = vpack.c.b16 %v3210, %v3209
          %v3431 = vpack.c.b16 %v3212, %v3211
          %v3432 = vpack.c.b16 %v3214, %v3213
          %v3433 = vpack.c.b16 %v3216, %v3215
          %v3434 = vpack.c.b16 %v3218, %v3217
          %v3435 = vpack.c.b16 %v3220, %v3219
          %v3436 = vpack.c.b16 %v3222, %v3221
          %v3437 = vpack.c.b16 %v3224, %v3223
          %v3438 = vpack.c.b16 %v3226, %v3225
          %v3439 = vpack.c.b16 %v3228, %v3227
          %v3440 = vpack.c.b16 %v3230, %v3229
          %v3441 = vpack.c.b16 %v3232, %v3231
          %v3442 = vpack.c.b16 %v3234, %v3233
          %v3443 = vpack.c.b16 %v3236, %v3235
          %v3444 = vpack.c.b16 %v3238, %v3237
          %v3445 = vpack.c.b16 %v3240, %v3239
          %v3446 = vpack.c.b16 %v3242, %v3241
          %v3447 = vpack.c.b16 %v3244, %v3243
          %v3448 = vpack.c.b16 %v3246, %v3245
          %v3449 = vpack.c.b16 %v3248, %v3247
          %v3450 = vpack.c.b16 %v3250, %v3249
          %v3451 = vpack.c.b16 %v3252, %v3251
          %v3452 = vpack.c.b16 %v3254, %v3253
          %v3453 = vpack.c.b16 %v3256, %v3255
          %v3454 = vpack.c.b16 %v3258, %v3257
          %v3455 = vpack.c.b16 %v3260, %v3259
          %v3456 = vpack.c.b16 %v3262, %v3261
          %v3457 = vpack.c.b16 %v3264, %v3263
          %v3458 = vpack.c.b16 %v3266, %v3265
          %v3459 = vpack.c.b16 %v3268, %v3267
          %v3460 = vpack.c.b16 %v3270, %v3269
          %v3461 = vpack.c.b16 %v3272, %v3271
          %v3462 = vpack.c.b16 %v3274, %v3273
          %v3463 = vpack.c.b16 %v3276, %v3275
          %v3464 = vpack.c.b16 %v3278, %v3277
          %v3465 = vpack.c.b16 %v3280, %v3279
          %v3466 = vpack.c.b16 %v3282, %v3281
          %v3467 = vpack.c.b16 %v3284, %v3283
          %v3468 = vpack.c.b16 %v3286, %v3285
          %v3469 = vpack.c.b16 %v3288, %v3287
          %v3470 = vpack.c.b16 %v3290, %v3289
          %v3471 = vpack.c.b16 %v3292, %v3291
          %v3472 = vpack.c.b16 %v3294, %v3293
          %v3473 = vpack.c.b16 %v3296, %v3295
          %v3474 = vpack.c.b16 %v3298, %v3297
          %v3475 = vpack.c.b16 %v3300, %v3299
          %v3476 = vpack.c.b16 %v3302, %v3301
          %v3477 = vpack.c.b16 %v3304, %v3303
          %v3478 = vpack.c.b16 %v3306, %v3305
          %v3479 = vpack.c.b16 %v3308, %v3307
          %v3480 = vpack.c.b16 %v3310, %v3309
          %v3481 = vpack.c.b16 %v3312, %v3311
          %v3482 = vpack.c.b16 %v3314, %v3313
          %v3483 = vpack.c.b16 %v3316, %v3315
          %v3484 = vpack.c.b16 %v3318, %v3317
          %v3485 = vpack.c.b16 %v3320, %v3319
          %v3486 = vpack.c.b16 %v3322, %v3321
          %v3487 = vpack.c.b16 %v3324, %v3323
          %v3488 = vpack.c.b16 %v3326, %v3325
          %v3489 = vpack.c.b16 %v3328, %v3327
          %v3490 = vpack.c.b16 %v3330, %v3329
          %v3491 = vpack.c.b16 %v3332, %v3331
          %v3492 = vpack.c.b16 %v3334, %v3333
          %v3493 = vpack.c.b16 %v3336, %v3335
          %v3494 = vpack.c.b16 %v3338, %v3337
          %v3495 = vpack.c.b16 %v3340, %v3339
          %v3496 = vpack.c.b16 %v3342, %v3341
          %v3497 = vpack.c.b16 %v3344, %v3343
          %v3498 = vpack.c.b16 %v3346, %v3345
          %v3499 = vpack.c.b16 %v3348, %v3347
          %v3500 = vpack.c.b16 %v3350, %v3349
          %v3501 = vpack.c.b16 %v3352, %v3351
          %v3502 = vpack.c.b16 %v3354, %v3353
          %v3503 = vpack.c.b16 %v3356, %v3355
          %v3504 = vpack.c.b16 %v3358, %v3357
          %v3505 = vpack.c.b16 %v3360, %v3359
          %v3506 = vpack.c.b16 %v3362, %v3361
          %v3507 = vpack.c.b16 %v3364, %v3363
          %v3508 = vpack.c.b16 %v3366, %v3365
          %v3509 = vpack.c.b16 %v3368, %v3367
          %v3510 = vpack.c.b16 %v3370, %v3369
          %v3511 = vpack.c.b16 %v3372, %v3371
          %v3512 = vpack.c.b16 %v3374, %v3373
          %v3513 = vpack.c.b16 %v3376, %v3375
          %v3514 = vpack.c.b16 %v3378, %v3377
          %v3515 = vpack.c.b16 %v3380, %v3379
          %v3516 = vpack.c.b16 %v3382, %v3381
          %v3517 = vpack.c.b16 %v3384, %v3383
          %v3518 = vpack.c.b16 %v3386, %v3385
          %v3519 = vpack.c.b16 %v3388, %v3387
          %v3520 = vpack.c.b16 %v3390, %v3389
          %v3521 = vpack.c.b16 %v3392, %v3391
          %v3522 = vpack.c.b16 %v3394, %v3393
          %3651 = vmatprep.subr.bf16.mxu0 0
          %3652 = vmatpush1.bf16.msra.mxu0 %v3402
          %3653 = vmatprep.subr.bf16.mxu0 0
          %3654 = vmatpush1.bf16.msra.mxu0 %v3401
          %3655 = vmatprep.subr.bf16.mxu0 0
          %3656 = vmatpush1.bf16.msra.mxu0 %v3400
          %3657 = vmatprep.subr.bf16.mxu0 0
          %3658 = vmatpush1.bf16.msra.mxu0 %v3399
          %3659 = vmatprep.subr.bf16.mxu0 0
          %3660 = vmatpush1.bf16.msra.mxu0 %v3398
          %3661 = vmatprep.subr.bf16.mxu0 0
          %3662 = vmatpush1.bf16.msra.mxu0 %v3397
          %3663 = vmatprep.subr.bf16.mxu0 0
          %3664 = vmatpush1.bf16.msra.mxu0 %v3396
          %3665 = vmatprep.subr.bf16.mxu0 0
          %3666 = vmatpush1.bf16.msra.mxu0 %v3395
          %3667 = vmatprep.subr.bf16.mxu0 0
          %3668 = vmatpush2.bf16.msra.mxu0 %v3410
          %3669 = vmatprep.subr.bf16.mxu0 0
          %3670 = vmatpush2.bf16.msra.mxu0 %v3409
          %3671 = vmatprep.subr.bf16.mxu0 0
          %3672 = vmatpush2.bf16.msra.mxu0 %v3408
          %3673 = vmatprep.subr.bf16.mxu0 0
          %3674 = vmatpush2.bf16.msra.mxu0 %v3407
          %3675 = vmatprep.subr.bf16.mxu0 0
          %3676 = vmatpush2.bf16.msra.mxu0 %v3406
          %3677 = vmatprep.subr.bf16.mxu0 0
          %3678 = vmatpush2.bf16.msra.mxu0 %v3405
          %3679 = vmatprep.subr.bf16.mxu0 0
          %3680 = vmatpush2.bf16.msra.mxu0 %v3404
          %3681 = vmatprep.subr.bf16.mxu0 0
          %3682 = vmatpush2.bf16.msra.mxu0 %v3403
          %3683 = vmatprep.mubr.bf16.mxu0 %v2605
          %3684 = vmatmul.mubr.bf16.gmra.mxu0 %v2604
          %v3685 = vpop.f32.mrf.mxu0
          %v3686 = vadd.f32 %v2881, %v3685
          %v3687 = vpop.f32.mrf.mxu0
          %v3688 = vpop.f32.mrf.mxu0
          %v3689 = vadd.f32 %v2881, %v3688
          %v3690 = vpop.f32.mrf.mxu0
          %3691 = vdwg.mxu0
          %3692 = vmatprep.subr.bf16.mxu0 0
          %3693 = vmatpush1.bf16.msra.mxu0 %v3418
          %3694 = vmatprep.subr.bf16.mxu0 0
          %3695 = vmatpush1.bf16.msra.mxu0 %v3417
          %3696 = vmatprep.subr.bf16.mxu0 0
          %3697 = vmatpush1.bf16.msra.mxu0 %v3416
          %3698 = vmatprep.subr.bf16.mxu0 0
          %3699 = vmatpush1.bf16.msra.mxu0 %v3415
          %3700 = vmatprep.subr.bf16.mxu0 0
          %3701 = vmatpush1.bf16.msra.mxu0 %v3414
          %3702 = vmatprep.subr.bf16.mxu0 0
          %3703 = vmatpush1.bf16.msra.mxu0 %v3413
          %3704 = vmatprep.subr.bf16.mxu0 0
          %3705 = vmatpush1.bf16.msra.mxu0 %v3412
          %3706 = vmatprep.subr.bf16.mxu0 0
          %3707 = vmatpush1.bf16.msra.mxu0 %v3411
          %3708 = vmatprep.subr.bf16.mxu0 0
          %3709 = vmatpush2.bf16.msra.mxu0 %v3426
          %3710 = vmatprep.subr.bf16.mxu0 0
          %3711 = vmatpush2.bf16.msra.mxu0 %v3425
          %3712 = vmatprep.subr.bf16.mxu0 0
          %3713 = vmatpush2.bf16.msra.mxu0 %v3424
          %3714 = vmatprep.subr.bf16.mxu0 0
          %3715 = vmatpush2.bf16.msra.mxu0 %v3423
          %3716 = vmatprep.subr.bf16.mxu0 0
          %3717 = vmatpush2.bf16.msra.mxu0 %v3422
          %3718 = vmatprep.subr.bf16.mxu0 0
          %3719 = vmatpush2.bf16.msra.mxu0 %v3421
          %3720 = vmatprep.subr.bf16.mxu0 0
          %3721 = vmatpush2.bf16.msra.mxu0 %v3420
          %3722 = vmatprep.subr.bf16.mxu0 0
          %3723 = vmatpush2.bf16.msra.mxu0 %v3419
          %3724 = vmatprep.mubr.bf16.mxu0 %v2607
          %3725 = vmatmul.mubr.bf16.gmra.mxu0 %v2606
          %v3726 = vpop.f32.mrf.mxu0
          %v3727 = vadd.f32 %v3686, %v3726
          %v3728 = vpop.f32.mrf.mxu0
          %v3729 = vpop.f32.mrf.mxu0
          %v3730 = vadd.f32 %v3689, %v3729
          %v3731 = vpop.f32.mrf.mxu0
          %3732 = vdwg.mxu0
          %3733 = vmatprep.subr.bf16.mxu0 0
          %3734 = vmatpush1.bf16.msra.mxu0 %v3434
          %3735 = vmatprep.subr.bf16.mxu0 0
          %3736 = vmatpush1.bf16.msra.mxu0 %v3433
          %3737 = vmatprep.subr.bf16.mxu0 0
          %3738 = vmatpush1.bf16.msra.mxu0 %v3432
          %3739 = vmatprep.subr.bf16.mxu0 0
          %3740 = vmatpush1.bf16.msra.mxu0 %v3431
          %3741 = vmatprep.subr.bf16.mxu0 0
          %3742 = vmatpush1.bf16.msra.mxu0 %v3430
          %3743 = vmatprep.subr.bf16.mxu0 0
          %3744 = vmatpush1.bf16.msra.mxu0 %v3429
          %3745 = vmatprep.subr.bf16.mxu0 0
          %3746 = vmatpush1.bf16.msra.mxu0 %v3428
          %3747 = vmatprep.subr.bf16.mxu0 0
          %3748 = vmatpush1.bf16.msra.mxu0 %v3427
          %3749 = vmatprep.subr.bf16.mxu0 0
          %3750 = vmatpush2.bf16.msra.mxu0 %v3442
          %3751 = vmatprep.subr.bf16.mxu0 0
          %3752 = vmatpush2.bf16.msra.mxu0 %v3441
          %3753 = vmatprep.subr.bf16.mxu0 0
          %3754 = vmatpush2.bf16.msra.mxu0 %v3440
          %3755 = vmatprep.subr.bf16.mxu0 0
          %3756 = vmatpush2.bf16.msra.mxu0 %v3439
          %3757 = vmatprep.subr.bf16.mxu0 0
          %3758 = vmatpush2.bf16.msra.mxu0 %v3438
          %3759 = vmatprep.subr.bf16.mxu0 0
          %3760 = vmatpush2.bf16.msra.mxu0 %v3437
          %3761 = vmatprep.subr.bf16.mxu0 0
          %3762 = vmatpush2.bf16.msra.mxu0 %v3436
          %3763 = vmatprep.subr.bf16.mxu0 0
          %3764 = vmatpush2.bf16.msra.mxu0 %v3435
          %3765 = vmatprep.mubr.bf16.mxu0 %v2609
          %3766 = vmatmul.mubr.bf16.gmra.mxu0 %v2608
          %v3767 = vpop.f32.mrf.mxu0
          %v3768 = vadd.f32 %v3727, %v3767
          %v3769 = vpop.f32.mrf.mxu0
          %v3770 = vpop.f32.mrf.mxu0
          %v3771 = vadd.f32 %v3730, %v3770
          %v3772 = vpop.f32.mrf.mxu0
          %3773 = vdwg.mxu0
          %3774 = vmatprep.subr.bf16.mxu0 0
          %3775 = vmatpush1.bf16.msra.mxu0 %v3450
          %3776 = vmatprep.subr.bf16.mxu0 0
          %3777 = vmatpush1.bf16.msra.mxu0 %v3449
          %3778 = vmatprep.subr.bf16.mxu0 0
          %3779 = vmatpush1.bf16.msra.mxu0 %v3448
          %3780 = vmatprep.subr.bf16.mxu0 0
          %3781 = vmatpush1.bf16.msra.mxu0 %v3447
          %3782 = vmatprep.subr.bf16.mxu0 0
          %3783 = vmatpush1.bf16.msra.mxu0 %v3446
          %3784 = vmatprep.subr.bf16.mxu0 0
          %3785 = vmatpush1.bf16.msra.mxu0 %v3445
          %3786 = vmatprep.subr.bf16.mxu0 0
          %3787 = vmatpush1.bf16.msra.mxu0 %v3444
          %3788 = vmatprep.subr.bf16.mxu0 0
          %3789 = vmatpush1.bf16.msra.mxu0 %v3443
          %3790 = vmatprep.subr.bf16.mxu0 0
          %3791 = vmatpush2.bf16.msra.mxu0 %v3458
          %3792 = vmatprep.subr.bf16.mxu0 0
          %3793 = vmatpush2.bf16.msra.mxu0 %v3457
          %3794 = vmatprep.subr.bf16.mxu0 0
          %3795 = vmatpush2.bf16.msra.mxu0 %v3456
          %3796 = vmatprep.subr.bf16.mxu0 0
          %3797 = vmatpush2.bf16.msra.mxu0 %v3455
          %3798 = vmatprep.subr.bf16.mxu0 0
          %3799 = vmatpush2.bf16.msra.mxu0 %v3454
          %3800 = vmatprep.subr.bf16.mxu0 0
          %3801 = vmatpush2.bf16.msra.mxu0 %v3453
          %3802 = vmatprep.subr.bf16.mxu0 0
          %3803 = vmatpush2.bf16.msra.mxu0 %v3452
          %3804 = vmatprep.subr.bf16.mxu0 0
          %3805 = vmatpush2.bf16.msra.mxu0 %v3451
          %3806 = vmatprep.mubr.bf16.mxu0 %v2611
          %3807 = vmatmul.mubr.bf16.gmra.mxu0 %v2610
          %v3808 = vpop.f32.mrf.mxu0
          %v3809 = vadd.f32 %v3768, %v3808
          %v3810 = vpop.f32.mrf.mxu0
          %v3811 = vpop.f32.mrf.mxu0
          %v3812 = vadd.f32 %v3771, %v3811
          %v3813 = vpop.f32.mrf.mxu0
          %3814 = vdwg.mxu0
          %3815 = vmatprep.subr.bf16.mxu0 0
          %3816 = vmatpush1.bf16.msra.mxu0 %v3466
          %3817 = vmatprep.subr.bf16.mxu0 0
          %3818 = vmatpush1.bf16.msra.mxu0 %v3465
          %3819 = vmatprep.subr.bf16.mxu0 0
          %3820 = vmatpush1.bf16.msra.mxu0 %v3464
          %3821 = vmatprep.subr.bf16.mxu0 0
          %3822 = vmatpush1.bf16.msra.mxu0 %v3463
          %3823 = vmatprep.subr.bf16.mxu0 0
          %3824 = vmatpush1.bf16.msra.mxu0 %v3462
          %3825 = vmatprep.subr.bf16.mxu0 0
          %3826 = vmatpush1.bf16.msra.mxu0 %v3461
          %3827 = vmatprep.subr.bf16.mxu0 0
          %3828 = vmatpush1.bf16.msra.mxu0 %v3460
          %3829 = vmatprep.subr.bf16.mxu0 0
          %3830 = vmatpush1.bf16.msra.mxu0 %v3459
          %3831 = vmatprep.subr.bf16.mxu0 0
          %3832 = vmatpush2.bf16.msra.mxu0 %v3474
          %3833 = vmatprep.subr.bf16.mxu0 0
          %3834 = vmatpush2.bf16.msra.mxu0 %v3473
          %3835 = vmatprep.subr.bf16.mxu0 0
          %3836 = vmatpush2.bf16.msra.mxu0 %v3472
          %3837 = vmatprep.subr.bf16.mxu0 0
          %3838 = vmatpush2.bf16.msra.mxu0 %v3471
          %3839 = vmatprep.subr.bf16.mxu0 0
          %3840 = vmatpush2.bf16.msra.mxu0 %v3470
          %3841 = vmatprep.subr.bf16.mxu0 0
          %3842 = vmatpush2.bf16.msra.mxu0 %v3469
          %3843 = vmatprep.subr.bf16.mxu0 0
          %3844 = vmatpush2.bf16.msra.mxu0 %v3468
          %3845 = vmatprep.subr.bf16.mxu0 0
          %3846 = vmatpush2.bf16.msra.mxu0 %v3467
          %3847 = vmatprep.mubr.bf16.mxu0 %v2613
          %3848 = vmatmul.mubr.bf16.gmra.mxu0 %v2612
          %v3849 = vpop.f32.mrf.mxu0
          %v3850 = vadd.f32 %v3809, %v3849
          %v3851 = vpop.f32.mrf.mxu0
          %v3852 = vpop.f32.mrf.mxu0
          %v3853 = vadd.f32 %v3812, %v3852
          %v3854 = vpop.f32.mrf.mxu0
          %3855 = vdwg.mxu0
          %3856 = vmatprep.subr.bf16.mxu0 0
          %3857 = vmatpush1.bf16.msra.mxu0 %v3482
          %3858 = vmatprep.subr.bf16.mxu0 0
          %3859 = vmatpush1.bf16.msra.mxu0 %v3481
          %3860 = vmatprep.subr.bf16.mxu0 0
          %3861 = vmatpush1.bf16.msra.mxu0 %v3480
          %3862 = vmatprep.subr.bf16.mxu0 0
          %3863 = vmatpush1.bf16.msra.mxu0 %v3479
          %3864 = vmatprep.subr.bf16.mxu0 0
          %3865 = vmatpush1.bf16.msra.mxu0 %v3478
          %3866 = vmatprep.subr.bf16.mxu0 0
          %3867 = vmatpush1.bf16.msra.mxu0 %v3477
          %3868 = vmatprep.subr.bf16.mxu0 0
          %3869 = vmatpush1.bf16.msra.mxu0 %v3476
          %3870 = vmatprep.subr.bf16.mxu0 0
          %3871 = vmatpush1.bf16.msra.mxu0 %v3475
          %3872 = vmatprep.subr.bf16.mxu0 0
          %3873 = vmatpush2.bf16.msra.mxu0 %v3490
          %3874 = vmatprep.subr.bf16.mxu0 0
          %3875 = vmatpush2.bf16.msra.mxu0 %v3489
          %3876 = vmatprep.subr.bf16.mxu0 0
          %3877 = vmatpush2.bf16.msra.mxu0 %v3488
          %3878 = vmatprep.subr.bf16.mxu0 0
          %3879 = vmatpush2.bf16.msra.mxu0 %v3487
          %3880 = vmatprep.subr.bf16.mxu0 0
          %3881 = vmatpush2.bf16.msra.mxu0 %v3486
          %3882 = vmatprep.subr.bf16.mxu0 0
          %3883 = vmatpush2.bf16.msra.mxu0 %v3485
          %3884 = vmatprep.subr.bf16.mxu0 0
          %3885 = vmatpush2.bf16.msra.mxu0 %v3484
          %3886 = vmatprep.subr.bf16.mxu0 0
          %3887 = vmatpush2.bf16.msra.mxu0 %v3483
          %3888 = vmatprep.mubr.bf16.mxu0 %v2615
          %3889 = vmatmul.mubr.bf16.gmra.mxu0 %v2614
          %v3890 = vpop.f32.mrf.mxu0
          %v3891 = vadd.f32 %v3850, %v3890
          %v3892 = vpop.f32.mrf.mxu0
          %v3893 = vpop.f32.mrf.mxu0
          %v3894 = vadd.f32 %v3853, %v3893
          %v3895 = vpop.f32.mrf.mxu0
          %3896 = vdwg.mxu0
          %3897 = vmatprep.subr.bf16.mxu0 0
          %3898 = vmatpush1.bf16.msra.mxu0 %v3498
          %3899 = vmatprep.subr.bf16.mxu0 0
          %3900 = vmatpush1.bf16.msra.mxu0 %v3497
          %3901 = vmatprep.subr.bf16.mxu0 0
          %3902 = vmatpush1.bf16.msra.mxu0 %v3496
          %3903 = vmatprep.subr.bf16.mxu0 0
          %3904 = vmatpush1.bf16.msra.mxu0 %v3495
          %3905 = vmatprep.subr.bf16.mxu0 0
          %3906 = vmatpush1.bf16.msra.mxu0 %v3494
          %3907 = vmatprep.subr.bf16.mxu0 0
          %3908 = vmatpush1.bf16.msra.mxu0 %v3493
          %3909 = vmatprep.subr.bf16.mxu0 0
          %3910 = vmatpush1.bf16.msra.mxu0 %v3492
          %3911 = vmatprep.subr.bf16.mxu0 0
          %3912 = vmatpush1.bf16.msra.mxu0 %v3491
          %3913 = vmatprep.subr.bf16.mxu0 0
          %3914 = vmatpush2.bf16.msra.mxu0 %v3506
          %3915 = vmatprep.subr.bf16.mxu0 0
          %3916 = vmatpush2.bf16.msra.mxu0 %v3505
          %3917 = vmatprep.subr.bf16.mxu0 0
          %3918 = vmatpush2.bf16.msra.mxu0 %v3504
          %3919 = vmatprep.subr.bf16.mxu0 0
          %3920 = vmatpush2.bf16.msra.mxu0 %v3503
          %3921 = vmatprep.subr.bf16.mxu0 0
          %3922 = vmatpush2.bf16.msra.mxu0 %v3502
          %3923 = vmatprep.subr.bf16.mxu0 0
          %3924 = vmatpush2.bf16.msra.mxu0 %v3501
          %3925 = vmatprep.subr.bf16.mxu0 0
          %3926 = vmatpush2.bf16.msra.mxu0 %v3500
          %3927 = vmatprep.subr.bf16.mxu0 0
          %3928 = vmatpush2.bf16.msra.mxu0 %v3499
          %3929 = vmatprep.mubr.bf16.mxu0 %v2617
          %3930 = vmatmul.mubr.bf16.gmra.mxu0 %v2616
          %v3931 = vpop.f32.mrf.mxu0
          %v3932 = vadd.f32 %v3891, %v3931
          %v3933 = vpop.f32.mrf.mxu0
          %v3934 = vpop.f32.mrf.mxu0
          %v3935 = vadd.f32 %v3894, %v3934
          %v3936 = vpop.f32.mrf.mxu0
          %3937 = vdwg.mxu0
          %3938 = vmatprep.subr.bf16.mxu0 0
          %3939 = vmatpush1.bf16.msra.mxu0 %v3514
          %3940 = vmatprep.subr.bf16.mxu0 0
          %3941 = vmatpush1.bf16.msra.mxu0 %v3513
          %3942 = vmatprep.subr.bf16.mxu0 0
          %3943 = vmatpush1.bf16.msra.mxu0 %v3512
          %3944 = vmatprep.subr.bf16.mxu0 0
          %3945 = vmatpush1.bf16.msra.mxu0 %v3511
          %3946 = vmatprep.subr.bf16.mxu0 0
          %3947 = vmatpush1.bf16.msra.mxu0 %v3510
          %3948 = vmatprep.subr.bf16.mxu0 0
          %3949 = vmatpush1.bf16.msra.mxu0 %v3509
          %3950 = vmatprep.subr.bf16.mxu0 0
          %3951 = vmatpush1.bf16.msra.mxu0 %v3508
          %3952 = vmatprep.subr.bf16.mxu0 0
          %3953 = vmatpush1.bf16.msra.mxu0 %v3507
          %3954 = vmatprep.subr.bf16.mxu0 0
          %3955 = vmatpush2.bf16.msra.mxu0 %v3522
          %3956 = vmatprep.subr.bf16.mxu0 0
          %3957 = vmatpush2.bf16.msra.mxu0 %v3521
          %3958 = vmatprep.subr.bf16.mxu0 0
          %3959 = vmatpush2.bf16.msra.mxu0 %v3520
          %3960 = vmatprep.subr.bf16.mxu0 0
          %3961 = vmatpush2.bf16.msra.mxu0 %v3519
          %3962 = vmatprep.subr.bf16.mxu0 0
          %3963 = vmatpush2.bf16.msra.mxu0 %v3518
          %3964 = vmatprep.subr.bf16.mxu0 0
          %3965 = vmatpush2.bf16.msra.mxu0 %v3517
          %3966 = vmatprep.subr.bf16.mxu0 0
          %3967 = vmatpush2.bf16.msra.mxu0 %v3516
          %3968 = vmatprep.subr.bf16.mxu0 0
          %3969 = vmatpush2.bf16.msra.mxu0 %v3515
          %3970 = vmatprep.mubr.bf16.mxu0 %v2619
          %3971 = vmatmul.mubr.bf16.gmra.mxu0 %v2618
          %v3972 = vpop.f32.mrf.mxu0
          %v3973 = vadd.f32 %v3932, %v3972
          %v3974 = vpop.f32.mrf.mxu0
          %v3975 = vpop.f32.mrf.mxu0
          %v3976 = vadd.f32 %v3935, %v3975
          %v3977 = vpop.f32.mrf.mxu0
          %3978 = vdwg.mxu0
          %3979 = vst [vmem:[#allocation16] sm:$0xff] %v3973
          %3980 = vst [vmem:[#allocation16 + $0x8] sm:$0xff] %v3976
        $region84: #{tpu_custom_call.1} parent=51 // pred_fallthru
          _
        // Predicated region
        $region85: #{tpu_custom_call.1} parent=51 // pred_check
          %p3981 = pneg %p212
        $region86: #{tpu_custom_call.1} parent=51 // pred_check_branch
          %3983 = sbr.rel (%p3981) target = $region88
        $region87: #{tpu_custom_call.1} parent=51 // pred_region
          %s3985 = ssub.s32 256, 256
          %3986 = vsyncadd [#allocation7], %s3985
          %s3987 = sshll.u32 [#allocation16], 4
          %s3988 = int_to_ptr.vmem [resolvable:$true] %s3987
          %3993 = dma.vmem_to_hbm [thread:$0]  %s3988, 256, %s8, [#allocation7], 128, 128, 8
        $region88: #{tpu_custom_call.1} parent=51 // pred_fallthru
          _
        // Predicated region
        $region89: #{tpu_custom_call.1} parent=51 // pred_check
          %p3994 = pneg %p212
        $region90: #{tpu_custom_call.1} parent=51 // pred_check_branch
          %3996 = sbr.rel (%p3994) target = $region92
        $region91: #{tpu_custom_call.1} parent=51 // pred_region
          %3997 = dma.done [#allocation7], 256
        $region92: #{tpu_custom_call.1} parent=51 // pred_fallthru
          _
      $region52: #{tpu_custom_call.1} parent=5 // pred_fallthru
        _
      %p3998 = scmp.le.s32.totalorder 2, %s21
      // Predicated region
      $region93: #{tpu_custom_call.1} parent=5 // pred_check
        %p3999 = pneg %p3998
      $region94: #{tpu_custom_call.1} parent=5 // pred_check_branch
        %4001 = sbr.rel (%p3999) target = $region96
      $region95: #{tpu_custom_call.1} parent=5 // pred_region
        %s4002 = ssub.s32 %s21, 2
      $region96: #{tpu_custom_call.1} parent=5 // pred_fallthru
        _
    $region6: #{tpu_custom_call.1} parent=1 // loop_footer
      %s25 = sadd.s32 1, %s21
    $region7: #{tpu_custom_call.1} parent=1 // loop_footer_branch
      %20 = sbr.rel target = $region3
    $region8: #{tpu_custom_call.1} parent=1 // loop_exit
      _
    %4003 = vsyncpa [#allocation6], 1
    %s4004 = scalar_lea.sflag [#allocation6], 1
    %4005 = vsyncpa %s4004, 1
    %4006 = vsyncpa [#allocation9], 1
    %4007 = vsyncpa [#allocation12], 1
    %4008 = vsyncpa [#allocation15], 1
    %4009 = vsyncpa [#allocation7], 1
    %s4010 = scalar_lea.sflag [#allocation7], 1
    %4011 = vsyncpa %s4010, 1

</llo_original>
